<compile_context>
chip_gen: v6e
topology: v6e:2x2x1
jax: 0.10.0
libtpu: 0.0.40
codegen_flags: <defaults>
</compile_context>

<pallas_src>
import functools

import jax
import jax.numpy as jnp
from jax import lax
from jax.experimental import pallas as pl
from jax.experimental.pallas import tpu as pltpu


# ----------------------------------------------------------------------------
# Helpers
# ----------------------------------------------------------------------------
def _pick_vmem_limit():
    # ~3/4 of physical VMEM: ~96 MiB on v5e/v6e (128 MiB parts), ~48 MiB on v7x (64 MiB).
    try:
        cap = int(pltpu.get_tpu_info().vmem_capacity_bytes)
    except Exception:
        cap = 64 * 1024 * 1024
    return max(32 * 1024 * 1024, min(cap * 3 // 4, 96 * 1024 * 1024))


_VMEM_LIMIT = _pick_vmem_limit()


def _largest_divisor_leq(n, cap):
    cap = max(1, min(n, cap))
    for d in range(cap, 0, -1):
        if n % d == 0:
            return d
    return 1


# ----------------------------------------------------------------------------
# Kernels
# ----------------------------------------------------------------------------
def _conv3x3_kernel(x_ref, w_ref, b_ref, o_ref, *, apply_relu):
    # x_ref : (1, H+2, W+2, Cin) f32 (full padded image, resident across Cout/H tiles)
    # w_ref : (3, 3, Cin, CoTile) bf16 (f32 for the Cin=3 first layer)
    # b_ref : (1, CoTile) f32
    # o_ref : (1, TH, W, CoTile)
    _, TH, W, Co = o_ref.shape
    Cin = x_ref.shape[3]
    h0 = pl.program_id(2) * TH                      # row offset of this H-tile
    acc = jnp.zeros((TH * W, Co), jnp.float32)
    for ky in range(3):
        for kx in range(3):
            patch = x_ref[0, pl.ds(h0 + ky, TH), kx:kx + W, :]   # (TH, W, Cin)
            acc = acc + jnp.dot(patch.reshape(TH * W, Cin).astype(w_ref.dtype),
                                w_ref[ky, kx],
                                preferred_element_type=jnp.float32)
    acc = acc + b_ref[...]
    if apply_relu:
        acc = jnp.maximum(acc, 0.0)
    o_ref[...] = acc.reshape(1, TH, W, Co).astype(o_ref.dtype)


def _maxpool2x2_kernel(x_ref, o_ref):
    # x_ref : (1, 2*T, Wo, 2, C)  -> o_ref : (1, T, Wo, C)
    _, t2, wo, _, c = x_ref.shape
    x = jnp.max(x_ref[...], axis=3)                       # W-pair (sublane) reduce
    o_ref[...] = jnp.max(x.reshape(1, t2 // 2, 2, wo, c), axis=2)   # H-pair (leading dim)


def _detector_kernel(x_ref, w_ref, b_ref, o_ref):
    # Fused: per-pixel L2 normalization (rsqrt + eps; rescale folded into the weights)
    # followed by a single 3x3 conv whose output channels = [box | class | zero-pad] = 128.
    # x_ref : (1, H+2, W+2, Cin) f32 un-rescaled padded fmaps
    # w_ref : (3, 3, Cin, Co=128) bf16 (already scaled by rescale_factors)
    # b_ref : (1, Co) f32
    # o_ref : (1, TH, W, Co)
    _, TH, W, Co = o_ref.shape
    Cin = x_ref.shape[3]
    h0 = pl.program_id(1) * TH
    xin = x_ref[0, pl.ds(h0, TH + 2), :, :].astype(jnp.float32)     # (TH+2, W+2, Cin)
    inv_norm = lax.rsqrt(jnp.sum(xin * xin, axis=-1, keepdims=True) + 1e-10)
    xn = (xin * inv_norm).astype(w_ref.dtype)                       # bf16 normalized patch
    acc = jnp.zeros((TH * W, Co), jnp.float32)
    for ky in range(3):
        for kx in range(3):
            patch = xn[ky:ky + TH, kx:kx + W, :].reshape(TH * W, Cin)
            acc = acc + jnp.dot(patch, w_ref[ky, kx],
                                preferred_element_type=jnp.float32)
    o_ref[...] = (acc + b_ref[...]).reshape(1, TH, W, Co).astype(o_ref.dtype)


# ----------------------------------------------------------------------------
# Wrappers (pallas_call plumbing; pads/reshapes here are cheap XLA metadata ops)
# ----------------------------------------------------------------------------
def conv3x3_nhwc(x, w, b, *, relu):
    B, H, W, Cin = x.shape
    Cout = w.shape[3]
    xp = jnp.pad(x, ((0, 0), (1, 1), (1, 1), (0, 0)))
    # bf16 MXU operands (f32 accumulate); keep f32 for the tiny Cin=3 first layer.
    wb = w.astype(jnp.bfloat16) if Cin >= 8 else w
    co_tile = 256 if Cout % 256 == 0 else min(128, Cout)
    # H-tile so the (TH*W, co_tile) f32 accumulator stays ~<=128 KiB (~32 vregs).
    th = _largest_divisor_leq(H, max(1, (32768 // co_tile) // W))
    n_co, n_h = Cout // co_tile, H // th
    kernel = functools.partial(_conv3x3_kernel, apply_relu=relu)
    return pl.pallas_call(
        kernel,
        out_shape=jax.ShapeDtypeStruct((B, H, W, Cout), x.dtype),
        grid=(B, n_co, n_h),
        in_specs=[
            pl.BlockSpec((1, H + 2, W + 2, Cin), lambda bi, ci, hi: (bi, 0, 0, 0)),
            pl.BlockSpec((3, 3, Cin, co_tile), lambda bi, ci, hi: (0, 0, 0, ci)),
            pl.BlockSpec((1, co_tile), lambda bi, ci, hi: (0, ci)),
        ],
        out_specs=pl.BlockSpec((1, th, W, co_tile), lambda bi, ci, hi: (bi, hi, 0, ci)),
        compiler_params=pltpu.CompilerParams(
            dimension_semantics=("parallel", "parallel", "parallel"),
            vmem_limit_bytes=_VMEM_LIMIT),
    )(xp, wb, b)


def maxpool2x2_nhwc(x, *, ceil_mode=False):
    B, H, W, C = x.shape
    if ceil_mode:
        if (H % 2) or (W % 2):
            x = jnp.pad(x, ((0, 0), (0, H % 2), (0, W % 2), (0, 0)),
                        constant_values=-jnp.inf)
    else:
        x = x[:, :(H // 2) * 2, :(W // 2) * 2, :]
    B, H, W, C = x.shape
    Ho, Wo = H // 2, W // 2
    xr = x.reshape(B, H, Wo, 2, C)                        # free row-major split
    # Row-tile so the input block stays ~<=1 MiB regardless of resolution.
    rows_cap = max(1, (1 << 20) // max(1, W * C * x.dtype.itemsize))
    tp = _largest_divisor_leq(Ho, max(1, rows_cap // 2))
    out = pl.pallas_call(
        _maxpool2x2_kernel,
        out_shape=jax.ShapeDtypeStruct((B, Ho, Wo, C), x.dtype),
        grid=(B, Ho // tp),
        in_specs=[pl.BlockSpec((1, 2 * tp, Wo, 2, C), lambda b, h: (b, h, 0, 0, 0))],
        out_specs=pl.BlockSpec((1, tp, Wo, C), lambda b, h: (b, h, 0, 0)),
        compiler_params=pltpu.CompilerParams(
            dimension_semantics=("parallel", "parallel"),
            vmem_limit_bytes=_VMEM_LIMIT),
    )(xr)
    return out


def detection_head_nhwc(x, w_box, b_box, w_cls, b_cls, scale):
    # Fused L2-rescale + box/class convs.  The rescale factors are folded into the
    # concatenated weights (conv is linear in input channels); outputs are zero-padded
    # to 128 lanes so the store is unmasked/lane-dense, then split outside the kernel.
    B, H, W, Cin = x.shape
    nb4, ncs = w_box.shape[3], w_cls.shape[3]
    n_out = nb4 + ncs
    co_pad = ((n_out + 127) // 128) * 128
    w_cat = jnp.concatenate([w_box, w_cls], axis=3) * scale.reshape(1, 1, Cin, 1)
    w_cat = jnp.pad(w_cat, ((0, 0), (0, 0), (0, 0), (0, co_pad - n_out)))
    w_cat = w_cat.astype(jnp.bfloat16)
    b_cat = jnp.pad(jnp.concatenate([b_box, b_cls], axis=1),
                    ((0, 0), (0, co_pad - n_out)))
    xp = jnp.pad(x, ((0, 0), (1, 1), (1, 1), (0, 0)))
    th = _largest_divisor_leq(H, max(1, 128 // W))        # keep accumulator small
    out = pl.pallas_call(
        _detector_kernel,
        out_shape=jax.ShapeDtypeStruct((B, H, W, co_pad), x.dtype),
        grid=(B, H // th),
        in_specs=[
            pl.BlockSpec((1, H + 2, W + 2, Cin), lambda b, h: (b, 0, 0, 0)),
            pl.BlockSpec((3, 3, Cin, co_pad), lambda b, h: (0, 0, 0, 0)),
            pl.BlockSpec((1, co_pad), lambda b, h: (0, 0)),
        ],
        out_specs=pl.BlockSpec((1, th, W, co_pad), lambda b, h: (b, h, 0, 0)),
        compiler_params=pltpu.CompilerParams(
            dimension_semantics=("parallel", "parallel"),
            vmem_limit_bytes=_VMEM_LIMIT),
    )(xp, w_cat, b_cat)
    return out[..., :nb4], out[..., nb4:n_out]


# ----------------------------------------------------------------------------
# Stage1 module (VGG16 features[:23] -> fused L2-rescale+detector ; pool of fmaps)
# ----------------------------------------------------------------------------
# conv configs of vgg16.features[0:23]; "Mceil" is the layer-16 MaxPool(ceil_mode=True)
VGG_CFG = [(3, 64), (64, 64), "M",
           (64, 128), (128, 128), "M",
           (128, 256), (256, 256), (256, 256), "Mceil",
           (256, 512), (512, 512), (512, 512)]


def _xavier_uniform(key, shape):
    # shape = (kh, kw, cin, cout) -> fan_in/out like nn.init.xavier_uniform_ on OIHW
    fan_in = shape[0] * shape[1] * shape[2]
    fan_out = shape[0] * shape[1] * shape[3]
    bound = (6.0 / (fan_in + fan_out)) ** 0.5
    return jax.random.uniform(key, shape, jnp.float32, -bound, bound)


class Stage1:
    # TODO(synk): pretrained vgg16_features weights are not loadable in-script; the
    # conv stack uses Xavier-random weights of identical shapes (same ops, same math).
    def __init__(self, key, num_classes=21, num_db=4):
        self.num_classes = num_classes
        self.num_db = num_db
        n_conv = sum(1 for c in VGG_CFG if isinstance(c, tuple))
        keys = jax.random.split(key, n_conv + 2)
        self.vgg_params, ki = [], 0
        for item in VGG_CFG:
            if isinstance(item, tuple):
                cin, cout = item
                w = _xavier_uniform(keys[ki], (3, 3, cin, cout)); ki += 1
                self.vgg_params.append((w, jnp.zeros((1, cout), jnp.float32)))
        self.w_box = _xavier_uniform(keys[ki], (3, 3, 512, num_db * 4)); ki += 1
        self.b_box = jnp.zeros((1, num_db * 4), jnp.float32)
        self.w_cls = _xavier_uniform(keys[ki], (3, 3, 512, num_db * num_classes))
        self.b_cls = jnp.zeros((1, num_db * num_classes), jnp.float32)
        self.rescale_factors = jnp.full((1, 512), 20.0, jnp.float32)

    def forward(self, X_nchw):
        x = jnp.transpose(X_nchw, (0, 2, 3, 1))               # NCHW -> NHWC (lane-dense)
        pi = 0
        for item in VGG_CFG:
            if isinstance(item, tuple):
                w, b = self.vgg_params[pi]; pi += 1
                x = conv3x3_nhwc(x, w, b, relu=True)
            else:
                x = maxpool2x2_nhwc(x, ceil_mode=(item == "Mceil"))
        fmaps = x                                             # conv4_3 activations, NHWC
        locs4, cls4 = detection_head_nhwc(fmaps, self.w_box, self.b_box,
                                          self.w_cls, self.b_cls,
                                          self.rescale_factors)
        B, h, w, _ = fmaps.shape
        locs = locs4.reshape(B, h * w * self.num_db, 4)
        class_scores = cls4.reshape(B, h * w * self.num_db, self.num_classes)
        pooled = maxpool2x2_nhwc(fmaps, ceil_mode=False)      # self.pool on UN-rescaled fmaps
        fmaps_nchw = jnp.transpose(pooled, (0, 3, 1, 2))      # back to PyTorch NCHW contract
        return fmaps_nchw, locs, class_scores

    __call__ = forward


# ----------------------------------------------------------------------------
# Pure-JAX reference (mirrors the kernels' bf16-operand / f32-accumulate numerics)
# ----------------------------------------------------------------------------
def _ref_conv3x3(x, w, b, *, relu):
    if x.shape[-1] >= 8:                                  # same bf16 policy as the kernels
        x = x.astype(jnp.bfloat16)
        w = w.astype(jnp.bfloat16)
    y = lax.conv_general_dilated(
        x, w, window_strides=(1, 1), padding="SAME",
        dimension_numbers=("NHWC", "HWIO", "NHWC"),
        preferred_element_type=jnp.float32)
    y = y + b.reshape(1, 1, 1, -1)
    return jnp.maximum(y, 0.0) if relu else y


def _ref_maxpool(x, *, ceil_mode=False):
    B, H, W, C = x.shape
    if ceil_mode:
        if (H % 2) or (W % 2):
            x = jnp.pad(x, ((0, 0), (0, H % 2), (0, W % 2), (0, 0)),
                        constant_values=-jnp.inf)
    else:
        x = x[:, :(H // 2) * 2, :(W // 2) * 2, :]
    return lax.reduce_window(x, -jnp.inf, lax.max,
                             (1, 2, 2, 1), (1, 2, 2, 1), "VALID")


def _reference_forward(model, X_nchw):
    x = jnp.transpose(X_nchw, (0, 2, 3, 1))
    pi = 0
    for item in VGG_CFG:
        if isinstance(item, tuple):
            w, b = model.vgg_params[pi]; pi += 1
            x = _ref_conv3x3(x, w, b, relu=True)
        else:
            x = _ref_maxpool(x, ceil_mode=(item == "Mceil"))
    fmaps = x
    norm = jnp.sqrt(jnp.sum(fmaps * fmaps, axis=-1, keepdims=True))
    rescaled = fmaps / norm * model.rescale_factors.reshape(1, 1, 1, -1)
    locs4 = _ref_conv3x3(rescaled, model.w_box, model.b_box, relu=False)
    cls4 = _ref_conv3x3(rescaled, model.w_cls, model.b_cls, relu=False)
    B, h, w, _ = fmaps.shape
    locs = locs4.reshape(B, h * w * model.num_db, 4)
    scores = cls4.reshape(B, h * w * model.num_db, model.num_classes)
    pooled = _ref_maxpool(fmaps, ceil_mode=False)
    return jnp.transpose(pooled, (0, 3, 1, 2)), locs, scores


def _assert_close(name, got, want, tol=2e-2):
    denom = float(jnp.max(jnp.abs(want))) + 1e-6
    err = float(jnp.max(jnp.abs(got - want))) / denom
    assert err < tol, f"{name}: max relative error {err:.3e} >= {tol}"


# ----------------------------------------------------------------------------
# Demo / smoke test
# ----------------------------------------------------------------------------
if __name__ == "__main__":
    key = jax.random.PRNGKey(0)
    num_classes, num_db = 21, 4
    model = Stage1(key, num_classes=num_classes, num_db=num_db)

    X = jax.random.normal(jax.random.fold_in(key, 999), (2, 3, 32, 32), jnp.float32)

    fmaps, locs, scores = jax.block_until_ready(model(X))

    # conv4_3 spatial for a 32x32 input is 4x4; pooled fmaps are 2x2.
    assert fmaps.shape == (2, 512, 2, 2)
    assert locs.shape == (2, 4 * 4 * num_db, 4)
    assert scores.shape == (2, 4 * 4 * num_db, num_classes)
    assert bool(jnp.all(jnp.isfinite(fmaps)))
    assert bool(jnp.all(jnp.isfinite(locs)))
    assert bool(jnp.all(jnp.isfinite(scores)))

    ref_fmaps, ref_locs, ref_scores = _reference_forward(model, X)
    _assert_close("fmaps", fmaps, ref_fmaps)
    _assert_close("locs", locs, ref_locs)
    _assert_close("class_scores", scores, ref_scores)

    print("KERNEL_OK")
</pallas_src>

<mosaic_0001>
module attributes {stable_mosaic.version = 11 : i64} {
  func.func @_conv3x3_kernel(%arg0: i32, %arg1: i32, %arg2: i32, %arg3: memref<1x34x34x3xf32, #tpu.memory_space<vmem>>, %arg4: memref<3x3x3x64xf32, #tpu.memory_space<vmem>>, %arg5: memref<1x64xf32, #tpu.memory_space<vmem>>, %arg6: memref<1x16x32x64xf32, #tpu.memory_space<vmem>>) attributes {dimension_semantics = [#tpu.dimension_semantics<parallel>, #tpu.dimension_semantics<parallel>, #tpu.dimension_semantics<parallel>], iteration_bounds = array<i64: 2, 1, 2>, scalar_prefetch = 0 : i64, scratch_operands = 0 : i64, tpu.core_type = #tpu.core_type<tc>, window_params = [{transform_indices = @transform_0, window_bounds = array<i64: 1, 34, 34, 3>}, {transform_indices = @transform_1, window_bounds = array<i64: 3, 3, 3, 64>}, {transform_indices = @transform_2, window_bounds = array<i64: 1, 64>}, {transform_indices = @transform_3, window_bounds = array<i64: 1, 16, 32, 64>}]} {
    %c16_i32 = arith.constant 16 : i32
    %0 = arith.muli %arg2, %c16_i32 : i32
    %cst = arith.constant 0.000000e+00 : f32
    %1 = vector.broadcast %cst : f32 to vector<512x64xf32>
    %c0_i32 = arith.constant 0 : i32
    %2 = arith.addi %0, %c0_i32 : i32
    %c0 = arith.constant 0 : index
    %3 = arith.index_cast %2 : i32 to index
    %c0_0 = arith.constant 0 : index
    %c0_1 = arith.constant 0 : index
    %4 = vector.load %arg3[%c0, %3, %c0_0, %c0_1] : memref<1x34x34x3xf32, #tpu.memory_space<vmem>>, vector<1x16x32x3xf32>
    %5 = vector.shape_cast %4 : vector<1x16x32x3xf32> to vector<16x32x3xf32>
    %6 = vector.shape_cast %5 : vector<16x32x3xf32> to vector<512x3xf32>
    %c0_2 = arith.constant 0 : index
    %c0_3 = arith.constant 0 : index
    %c0_4 = arith.constant 0 : index
    %c0_5 = arith.constant 0 : index
    %7 = vector.load %arg4[%c0_2, %c0_3, %c0_4, %c0_5] : memref<3x3x3x64xf32, #tpu.memory_space<vmem>>, vector<1x1x3x64xf32>
    %8 = vector.shape_cast %7 : vector<1x1x3x64xf32> to vector<3x64xf32>
    %cst_6 = arith.constant dense<0.000000e+00> : vector<512x64xf32>
    %9 = tpu.matmul %6, %8, %cst_6 {dimension_numbers = #tpu.dot_dimension_numbers<[1], [0], [0], [1], [0, 0, 1, 1], [], []>} : vector<512x3xf32>, vector<3x64xf32>, vector<512x64xf32> -> vector<512x64xf32>
    %10 = arith.addf %1, %9 : vector<512x64xf32>
    %c0_i32_7 = arith.constant 0 : i32
    %11 = arith.addi %0, %c0_i32_7 : i32
    %c0_8 = arith.constant 0 : index
    %12 = arith.index_cast %11 : i32 to index
    %c1 = arith.constant 1 : index
    %c0_9 = arith.constant 0 : index
    %13 = vector.load %arg3[%c0_8, %12, %c1, %c0_9] : memref<1x34x34x3xf32, #tpu.memory_space<vmem>>, vector<1x16x32x3xf32>
    %14 = vector.shape_cast %13 : vector<1x16x32x3xf32> to vector<16x32x3xf32>
    %15 = vector.shape_cast %14 : vector<16x32x3xf32> to vector<512x3xf32>
    %c0_10 = arith.constant 0 : index
    %c1_11 = arith.constant 1 : index
    %c0_12 = arith.constant 0 : index
    %c0_13 = arith.constant 0 : index
    %16 = vector.load %arg4[%c0_10, %c1_11, %c0_12, %c0_13] : memref<3x3x3x64xf32, #tpu.memory_space<vmem>>, vector<1x1x3x64xf32>
    %17 = vector.shape_cast %16 : vector<1x1x3x64xf32> to vector<3x64xf32>
    %cst_14 = arith.constant dense<0.000000e+00> : vector<512x64xf32>
    %18 = tpu.matmul %15, %17, %cst_14 {dimension_numbers = #tpu.dot_dimension_numbers<[1], [0], [0], [1], [0, 0, 1, 1], [], []>} : vector<512x3xf32>, vector<3x64xf32>, vector<512x64xf32> -> vector<512x64xf32>
    %19 = arith.addf %10, %18 : vector<512x64xf32>
    %c0_i32_15 = arith.constant 0 : i32
    %20 = arith.addi %0, %c0_i32_15 : i32
    %c0_16 = arith.constant 0 : index
    %21 = arith.index_cast %20 : i32 to index
    %c2 = arith.constant 2 : index
    %c0_17 = arith.constant 0 : index
    %22 = vector.load %arg3[%c0_16, %21, %c2, %c0_17] : memref<1x34x34x3xf32, #tpu.memory_space<vmem>>, vector<1x16x32x3xf32>
    %23 = vector.shape_cast %22 : vector<1x16x32x3xf32> to vector<16x32x3xf32>
    %24 = vector.shape_cast %23 : vector<16x32x3xf32> to vector<512x3xf32>
    %c0_18 = arith.constant 0 : index
    %c2_19 = arith.constant 2 : index
    %c0_20 = arith.constant 0 : index
    %c0_21 = arith.constant 0 : index
    %25 = vector.load %arg4[%c0_18, %c2_19, %c0_20, %c0_21] : memref<3x3x3x64xf32, #tpu.memory_space<vmem>>, vector<1x1x3x64xf32>
    %26 = vector.shape_cast %25 : vector<1x1x3x64xf32> to vector<3x64xf32>
    %cst_22 = arith.constant dense<0.000000e+00> : vector<512x64xf32>
    %27 = tpu.matmul %24, %26, %cst_22 {dimension_numbers = #tpu.dot_dimension_numbers<[1], [0], [0], [1], [0, 0, 1, 1], [], []>} : vector<512x3xf32>, vector<3x64xf32>, vector<512x64xf32> -> vector<512x64xf32>
    %28 = arith.addf %19, %27 : vector<512x64xf32>
    %c1_i32 = arith.constant 1 : i32
    %29 = arith.addi %0, %c1_i32 : i32
    %c0_23 = arith.constant 0 : index
    %30 = arith.index_cast %29 : i32 to index
    %c0_24 = arith.constant 0 : index
    %c0_25 = arith.constant 0 : index
    %31 = vector.load %arg3[%c0_23, %30, %c0_24, %c0_25] : memref<1x34x34x3xf32, #tpu.memory_space<vmem>>, vector<1x16x32x3xf32>
    %32 = vector.shape_cast %31 : vector<1x16x32x3xf32> to vector<16x32x3xf32>
    %33 = vector.shape_cast %32 : vector<16x32x3xf32> to vector<512x3xf32>
    %c1_26 = arith.constant 1 : index
    %c0_27 = arith.constant 0 : index
    %c0_28 = arith.constant 0 : index
    %c0_29 = arith.constant 0 : index
    %34 = vector.load %arg4[%c1_26, %c0_27, %c0_28, %c0_29] : memref<3x3x3x64xf32, #tpu.memory_space<vmem>>, vector<1x1x3x64xf32>
    %35 = vector.shape_cast %34 : vector<1x1x3x64xf32> to vector<3x64xf32>
    %cst_30 = arith.constant dense<0.000000e+00> : vector<512x64xf32>
    %36 = tpu.matmul %33, %35, %cst_30 {dimension_numbers = #tpu.dot_dimension_numbers<[1], [0], [0], [1], [0, 0, 1, 1], [], []>} : vector<512x3xf32>, vector<3x64xf32>, vector<512x64xf32> -> vector<512x64xf32>
    %37 = arith.addf %28, %36 : vector<512x64xf32>
    %c1_i32_31 = arith.constant 1 : i32
    %38 = arith.addi %0, %c1_i32_31 : i32
    %c0_32 = arith.constant 0 : index
    %39 = arith.index_cast %38 : i32 to index
    %c1_33 = arith.constant 1 : index
    %c0_34 = arith.constant 0 : index
    %40 = vector.load %arg3[%c0_32, %39, %c1_33, %c0_34] : memref<1x34x34x3xf32, #tpu.memory_space<vmem>>, vector<1x16x32x3xf32>
    %41 = vector.shape_cast %40 : vector<1x16x32x3xf32> to vector<16x32x3xf32>
    %42 = vector.shape_cast %41 : vector<16x32x3xf32> to vector<512x3xf32>
    %c1_35 = arith.constant 1 : index
    %c1_36 = arith.constant 1 : index
    %c0_37 = arith.constant 0 : index
    %c0_38 = arith.constant 0 : index
    %43 = vector.load %arg4[%c1_35, %c1_36, %c0_37, %c0_38] : memref<3x3x3x64xf32, #tpu.memory_space<vmem>>, vector<1x1x3x64xf32>
    %44 = vector.shape_cast %43 : vector<1x1x3x64xf32> to vector<3x64xf32>
    %cst_39 = arith.constant dense<0.000000e+00> : vector<512x64xf32>
    %45 = tpu.matmul %42, %44, %cst_39 {dimension_numbers = #tpu.dot_dimension_numbers<[1], [0], [0], [1], [0, 0, 1, 1], [], []>} : vector<512x3xf32>, vector<3x64xf32>, vector<512x64xf32> -> vector<512x64xf32>
    %46 = arith.addf %37, %45 : vector<512x64xf32>
    %c1_i32_40 = arith.constant 1 : i32
    %47 = arith.addi %0, %c1_i32_40 : i32
    %c0_41 = arith.constant 0 : index
    %48 = arith.index_cast %47 : i32 to index
    %c2_42 = arith.constant 2 : index
    %c0_43 = arith.constant 0 : index
    %49 = vector.load %arg3[%c0_41, %48, %c2_42, %c0_43] : memref<1x34x34x3xf32, #tpu.memory_space<vmem>>, vector<1x16x32x3xf32>
    %50 = vector.shape_cast %49 : vector<1x16x32x3xf32> to vector<16x32x3xf32>
    %51 = vector.shape_cast %50 : vector<16x32x3xf32> to vector<512x3xf32>
    %c1_44 = arith.constant 1 : index
    %c2_45 = arith.constant 2 : index
    %c0_46 = arith.constant 0 : index
    %c0_47 = arith.constant 0 : index
    %52 = vector.load %arg4[%c1_44, %c2_45, %c0_46, %c0_47] : memref<3x3x3x64xf32, #tpu.memory_space<vmem>>, vector<1x1x3x64xf32>
    %53 = vector.shape_cast %52 : vector<1x1x3x64xf32> to vector<3x64xf32>
    %cst_48 = arith.constant dense<0.000000e+00> : vector<512x64xf32>
    %54 = tpu.matmul %51, %53, %cst_48 {dimension_numbers = #tpu.dot_dimension_numbers<[1], [0], [0], [1], [0, 0, 1, 1], [], []>} : vector<512x3xf32>, vector<3x64xf32>, vector<512x64xf32> -> vector<512x64xf32>
    %55 = arith.addf %46, %54 : vector<512x64xf32>
    %c2_i32 = arith.constant 2 : i32
    %56 = arith.addi %0, %c2_i32 : i32
    %c0_49 = arith.constant 0 : index
    %57 = arith.index_cast %56 : i32 to index
    %c0_50 = arith.constant 0 : index
    %c0_51 = arith.constant 0 : index
    %58 = vector.load %arg3[%c0_49, %57, %c0_50, %c0_51] : memref<1x34x34x3xf32, #tpu.memory_space<vmem>>, vector<1x16x32x3xf32>
    %59 = vector.shape_cast %58 : vector<1x16x32x3xf32> to vector<16x32x3xf32>
    %60 = vector.shape_cast %59 : vector<16x32x3xf32> to vector<512x3xf32>
    %c2_52 = arith.constant 2 : index
    %c0_53 = arith.constant 0 : index
    %c0_54 = arith.constant 0 : index
    %c0_55 = arith.constant 0 : index
    %61 = vector.load %arg4[%c2_52, %c0_53, %c0_54, %c0_55] : memref<3x3x3x64xf32, #tpu.memory_space<vmem>>, vector<1x1x3x64xf32>
    %62 = vector.shape_cast %61 : vector<1x1x3x64xf32> to vector<3x64xf32>
    %cst_56 = arith.constant dense<0.000000e+00> : vector<512x64xf32>
    %63 = tpu.matmul %60, %62, %cst_56 {dimension_numbers = #tpu.dot_dimension_numbers<[1], [0], [0], [1], [0, 0, 1, 1], [], []>} : vector<512x3xf32>, vector<3x64xf32>, vector<512x64xf32> -> vector<512x64xf32>
    %64 = arith.addf %55, %63 : vector<512x64xf32>
    %c2_i32_57 = arith.constant 2 : i32
    %65 = arith.addi %0, %c2_i32_57 : i32
    %c0_58 = arith.constant 0 : index
    %66 = arith.index_cast %65 : i32 to index
    %c1_59 = arith.constant 1 : index
    %c0_60 = arith.constant 0 : index
    %67 = vector.load %arg3[%c0_58, %66, %c1_59, %c0_60] : memref<1x34x34x3xf32, #tpu.memory_space<vmem>>, vector<1x16x32x3xf32>
    %68 = vector.shape_cast %67 : vector<1x16x32x3xf32> to vector<16x32x3xf32>
    %69 = vector.shape_cast %68 : vector<16x32x3xf32> to vector<512x3xf32>
    %c2_61 = arith.constant 2 : index
    %c1_62 = arith.constant 1 : index
    %c0_63 = arith.constant 0 : index
    %c0_64 = arith.constant 0 : index
    %70 = vector.load %arg4[%c2_61, %c1_62, %c0_63, %c0_64] : memref<3x3x3x64xf32, #tpu.memory_space<vmem>>, vector<1x1x3x64xf32>
    %71 = vector.shape_cast %70 : vector<1x1x3x64xf32> to vector<3x64xf32>
    %cst_65 = arith.constant dense<0.000000e+00> : vector<512x64xf32>
    %72 = tpu.matmul %69, %71, %cst_65 {dimension_numbers = #tpu.dot_dimension_numbers<[1], [0], [0], [1], [0, 0, 1, 1], [], []>} : vector<512x3xf32>, vector<3x64xf32>, vector<512x64xf32> -> vector<512x64xf32>
    %73 = arith.addf %64, %72 : vector<512x64xf32>
    %c2_i32_66 = arith.constant 2 : i32
    %74 = arith.addi %0, %c2_i32_66 : i32
    %c0_67 = arith.constant 0 : index
    %75 = arith.index_cast %74 : i32 to index
    %c2_68 = arith.constant 2 : index
    %c0_69 = arith.constant 0 : index
    %76 = vector.load %arg3[%c0_67, %75, %c2_68, %c0_69] : memref<1x34x34x3xf32, #tpu.memory_space<vmem>>, vector<1x16x32x3xf32>
    %77 = vector.shape_cast %76 : vector<1x16x32x3xf32> to vector<16x32x3xf32>
    %78 = vector.shape_cast %77 : vector<16x32x3xf32> to vector<512x3xf32>
    %c2_70 = arith.constant 2 : index
    %c2_71 = arith.constant 2 : index
    %c0_72 = arith.constant 0 : index
    %c0_73 = arith.constant 0 : index
    %79 = vector.load %arg4[%c2_70, %c2_71, %c0_72, %c0_73] : memref<3x3x3x64xf32, #tpu.memory_space<vmem>>, vector<1x1x3x64xf32>
    %80 = vector.shape_cast %79 : vector<1x1x3x64xf32> to vector<3x64xf32>
    %cst_74 = arith.constant dense<0.000000e+00> : vector<512x64xf32>
    %81 = tpu.matmul %78, %80, %cst_74 {dimension_numbers = #tpu.dot_dimension_numbers<[1], [0], [0], [1], [0, 0, 1, 1], [], []>} : vector<512x3xf32>, vector<3x64xf32>, vector<512x64xf32> -> vector<512x64xf32>
    %82 = arith.addf %73, %81 : vector<512x64xf32>
    %c0_75 = arith.constant 0 : index
    %c0_76 = arith.constant 0 : index
    %83 = vector.load %arg5[%c0_75, %c0_76] : memref<1x64xf32, #tpu.memory_space<vmem>>, vector<1x64xf32>
    %84 = vector.broadcast %83 : vector<1x64xf32> to vector<512x64xf32>
    %85 = arith.addf %82, %84 : vector<512x64xf32>
    %cst_77 = arith.constant 0.000000e+00 : f32
    %86 = vector.broadcast %cst_77 : f32 to vector<512x64xf32>
    %87 = arith.maximumf %85, %86 : vector<512x64xf32>
    %88 = vector.shape_cast %87 : vector<512x64xf32> to vector<1x16x32x64xf32>
    %c0_78 = arith.constant 0 : index
    %c0_79 = arith.constant 0 : index
    %c0_80 = arith.constant 0 : index
    %c0_81 = arith.constant 0 : index
    %89 = vector.load %arg6[%c0_78, %c0_79, %c0_80, %c0_81] : memref<1x16x32x64xf32, #tpu.memory_space<vmem>>, vector<1x16x32x64xf32>
    tpu.vector_store %arg6[%c0_78, %c0_79, %c0_80, %c0_81], %88 {strides = array<i32>} : memref<1x16x32x64xf32, #tpu.memory_space<vmem>>, vector<1x16x32x64xf32>,
    return
  }
  func.func @transform_0(%arg0: i32, %arg1: i32, %arg2: i32) -> (i32, i32, i32, i32) {
    %c0_i32 = arith.constant 0 : i32
    %c0_i32_0 = arith.constant 0 : i32
    %c0_i32_1 = arith.constant 0 : i32
    %c0_i32_2 = arith.constant 0 : i32
    return %arg0, %c0_i32, %c0_i32_0, %c0_i32_1 : i32, i32, i32, i32
  }
  func.func @transform_1(%arg0: i32, %arg1: i32, %arg2: i32) -> (i32, i32, i32, i32) {
    %c0_i32 = arith.constant 0 : i32
    %c0_i32_0 = arith.constant 0 : i32
    %c0_i32_1 = arith.constant 0 : i32
    %c0_i32_2 = arith.constant 0 : i32
    return %c0_i32, %c0_i32_0, %c0_i32_1, %arg1 : i32, i32, i32, i32
  }
  func.func @transform_2(%arg0: i32, %arg1: i32, %arg2: i32) -> (i32, i32) {
    %c0_i32 = arith.constant 0 : i32
    %c0_i32_0 = arith.constant 0 : i32
    return %c0_i32, %arg1 : i32, i32
  }
  func.func @transform_3(%arg0: i32, %arg1: i32, %arg2: i32) -> (i32, i32, i32, i32) {
    %c0_i32 = arith.constant 0 : i32
    %c0_i32_0 = arith.constant 0 : i32
    return %arg0, %arg2, %c0_i32, %arg1 : i32, i32, i32, i32
  }
}

</mosaic_0001>

<llo_original>
// kernel: tpu_custom_call.1
$region0: #{tpu_custom_call.1}
  #allocation0 [shape = 'u32[]', space=smem, size = 0x4, offset = 0x4, fixed_abs, tag = 'smem constant byte address 0x4 - core index']
  #allocation1 [shape = 'u32[144,128]{1,0:T(1,128)}', space=vmem, size = 0x12000, scoped, tag = 'internal scratch']
  %s0 = inlined_call_operand.vmem [shape: f32[2,34,34,3], index: 0, kind: input, shape index: {}]
  %s1 = inlined_call_operand.vmem [shape: f32[3,3,3,64], index: 1, kind: input, shape index: {}]
  %s2 = inlined_call_operand.vmem [shape: f32[1,64], index: 2, kind: input, shape index: {}]
  %s3 = inlined_call_operand.hbm [shape: f32[2,32,32,64], index: 3, kind: output, shape index: {}]
  %s4 = sld [smem:[#allocation0]]
  $region45: #{tpu_custom_call.1} parent=0
    _
  %s6 = ssub.s32 1, %s4
  %s7 = scalar_select 0, %s6, %s4
  $region1: #{tpu_custom_call.1} parent=0
    #allocation2 [shape = 'u8[524288]{0}', space=vmem, size = 0x80000, scoped, tag = 'output window, operand 0']
    #allocation3 [shape = 's32[2]{0}', space=sflag, size = 0x8, scoped, tag = 'scoped memory for tpu_custom_call.1']
    %8 = vsyncpa [#allocation3], 0
    %s9 = scalar_lea.sflag [#allocation3], 1
    %10 = vsyncpa %s9, 0
    loop: start=0, step=1, limit=6
    $region2: #{tpu_custom_call.1} parent=1 // loop_pre_header
      _
    $region3: #{tpu_custom_call.1} parent=1 // loop_header
      %s12 = sphi 0, %s16
      %p13 = scmp.ge.s32.totalorder %s12, 6
      %s19 = sphi 0, %s38
      %s20 = sphi 0, %s34
      %s21 = sphi 0, %s30
      %s22 = sphi 0, %s19
      %s23 = sphi 0, %s20
      %s24 = sphi 0, %s21
      %s25 = sphi 0, %s22
      %s26 = sphi 0, %s23
      %s27 = sphi 0, %s24
      %s41 = sphi 0, %s43
      %s44 = sphi 0, %s41
      %s45 = sphi 0, %s44
      %s61 = sphi 0, %s45
      %s67 = sphi 0, %s69
      %s70 = sphi 0, %s67
      %s71 = sphi 0, %s70
      %s87 = sphi 0, %s71
      %s93 = sphi 0, %s95
      %s96 = sphi 0, %s93
      %s97 = sphi 0, %s96
      %s113 = sphi 0, %s97
      %s123 = sphi 0, %s125
      %s126 = sphi 0, %s123
      %s127 = sphi 0, %s126
      %s143 = sphi 0, %s127
    $region4: #{tpu_custom_call.1} parent=1 // loop_header_branch
      %15 = sbr.rel (%p13) target = $region8
    $region5: #{tpu_custom_call.1} parent=1 // loop_body
      %s17 = ssub.s32 %s12, 1
      %s18 = ssub.s32 %s12, 2
      %s28 = sadd.s32 1, %s21
      %p29 = scmp.ge.s32.totalorder %s28, 2
      %s30 = scalar_select %p29, 0, %s28
      %s31 = sadd.s32 1, %s20
      %s32 = scalar_select %p29, %s31, %s20
      %p33 = scmp.ge.s32.totalorder %s32, 1
      %s34 = scalar_select %p33, 0, %s32
      %s35 = sadd.s32 1, %s19
      %s36 = scalar_select %p33, %s35, %s19
      %p37 = scmp.ge.s32.totalorder %s36, 2
      %s38 = scalar_select %p37, 0, %s36
      %s39 = ssub.s32 %s19, %s38
      %p40 = scmp.eq.s32.totalorder %s39, 0
      %s42 = sadd.s32 %s41, 1
      %s43 = scalar_select %p40, %s41, %s42
      %p46 = pneg %p40
      %p47 = scmp.eq.s32.totalorder %s12, 3
      %p48 = por %p46, %p47
      %p49 = scmp.ne.s32.totalorder %s41, %s44
      %p50 = scmp.eq.s32.totalorder %s12, 0
      %p51 = por %p49, %p50
      %p52 = scmp.ne.s32.totalorder %s41, %s44
      %p53 = scmp.eq.s32.totalorder %s17, 3
      %p54 = por %p52, %p53
      %p55 = scmp.ne.s32.totalorder %s44, %s45
      %p56 = scmp.eq.s32.totalorder %s17, 0
      %p57 = por %p55, %p56
      %p58 = scmp.ne.s32.totalorder %s44, %s45
      %p59 = scmp.eq.s32.totalorder %s18, 3
      %p60 = por %p58, %p59
      %p62 = scmp.ne.s32.totalorder %s45, %s61
      %p63 = scmp.eq.s32.totalorder %s18, 0
      %p64 = por %p62, %p63
      %s65 = ssub.s32 %s20, %s34
      %p66 = scmp.eq.s32.totalorder %s65, 0
      %s68 = sadd.s32 %s67, 1
      %s69 = scalar_select %p66, %s67, %s68
      %p72 = pneg %p66
      %p73 = scmp.eq.s32.totalorder %s12, 3
      %p74 = por %p72, %p73
      %p75 = scmp.ne.s32.totalorder %s67, %s70
      %p76 = scmp.eq.s32.totalorder %s12, 0
      %p77 = por %p75, %p76
      %p78 = scmp.ne.s32.totalorder %s67, %s70
      %p79 = scmp.eq.s32.totalorder %s17, 3
      %p80 = por %p78, %p79
      %p81 = scmp.ne.s32.totalorder %s70, %s71
      %p82 = scmp.eq.s32.totalorder %s17, 0
      %p83 = por %p81, %p82
      %p84 = scmp.ne.s32.totalorder %s70, %s71
      %p85 = scmp.eq.s32.totalorder %s18, 3
      %p86 = por %p84, %p85
      %p88 = scmp.ne.s32.totalorder %s71, %s87
      %p89 = scmp.eq.s32.totalorder %s18, 0
      %p90 = por %p88, %p89
      %s91 = ssub.s32 %s20, %s34
      %p92 = scmp.eq.s32.totalorder %s91, 0
      %s94 = sadd.s32 %s93, 1
      %s95 = scalar_select %p92, %s93, %s94
      %p98 = pneg %p92
      %p99 = scmp.eq.s32.totalorder %s12, 3
      %p100 = por %p98, %p99
      %p101 = scmp.ne.s32.totalorder %s93, %s96
      %p102 = scmp.eq.s32.totalorder %s12, 0
      %p103 = por %p101, %p102
      %p104 = scmp.ne.s32.totalorder %s93, %s96
      %p105 = scmp.eq.s32.totalorder %s17, 3
      %p106 = por %p104, %p105
      %p107 = scmp.ne.s32.totalorder %s96, %s97
      %p108 = scmp.eq.s32.totalorder %s17, 0
      %p109 = por %p107, %p108
      %p110 = scmp.ne.s32.totalorder %s96, %s97
      %p111 = scmp.eq.s32.totalorder %s18, 3
      %p112 = por %p110, %p111
      %p114 = scmp.ne.s32.totalorder %s97, %s113
      %p115 = scmp.eq.s32.totalorder %s18, 0
      %p116 = por %p114, %p115
      %s117 = ssub.s32 %s19, %s38
      %s118 = ssub.s32 %s21, %s30
      %s119 = sor.u32 %s117, %s118
      %s120 = ssub.s32 %s20, %s34
      %s121 = sor.u32 %s119, %s120
      %p122 = scmp.eq.s32.totalorder %s121, 0
      %s124 = sadd.s32 %s123, 1
      %s125 = scalar_select %p122, %s123, %s124
      %p128 = pneg %p122
      %p129 = scmp.eq.s32.totalorder %s12, 3
      %p130 = por %p128, %p129
      %p131 = scmp.ne.s32.totalorder %s123, %s126
      %p132 = scmp.eq.s32.totalorder %s12, 0
      %p133 = por %p131, %p132
      %p134 = scmp.ne.s32.totalorder %s123, %s126
      %p135 = scmp.eq.s32.totalorder %s17, 3
      %p136 = por %p134, %p135
      %p137 = scmp.ne.s32.totalorder %s126, %s127
      %p138 = scmp.eq.s32.totalorder %s17, 0
      %p139 = por %p137, %p138
      %p140 = scmp.ne.s32.totalorder %s126, %s127
      %p141 = scmp.eq.s32.totalorder %s18, 3
      %p142 = por %p140, %p141
      %p144 = scmp.ne.s32.totalorder %s127, %s143
      %p145 = scmp.eq.s32.totalorder %s18, 0
      %p146 = por %p144, %p145
      %p147 = scmp.le.s32.totalorder 1, %s12
      %p148 = scmp.lt.s32.totalorder %s12, 5
      %p149 = pnand %p147, %p148
      %p150 = pneg %p149
      // Predicated region
      $region9: #{tpu_custom_call.1} parent=5 // pred_check
        _
      $region10: #{tpu_custom_call.1} parent=5 // pred_check_branch
        %152 = sbr.rel (%p149) target = $region12
      $region11: #{tpu_custom_call.1} parent=5 // pred_region
        %s153 = ssub.s32 %s12, 1
        // Predicated region
        $region13: #{tpu_custom_call.1} parent=11 // pred_check
          %p154 = pneg %p83
        $region14: #{tpu_custom_call.1} parent=11 // pred_check_branch
          %156 = sbr.rel (%p154) target = $region16
        $region15: #{tpu_custom_call.1} parent=11 // pred_region
          %p157 = scmp.lt.s32.totalorder %s23, 0
          %s158 = scalar_select %p157, %s23, 0
          %s159 = smul.addr %s158, 4
          %s160 = scalar_lea.vmem %s1, %s159
        $region16: #{tpu_custom_call.1} parent=11 // pred_fallthru
          _
        // Predicated region
        $region17: #{tpu_custom_call.1} parent=11 // pred_check
          %p161 = pneg %p109
        $region18: #{tpu_custom_call.1} parent=11 // pred_check_branch
          %163 = sbr.rel (%p161) target = $region20
        $region19: #{tpu_custom_call.1} parent=11 // pred_region
          %p164 = scmp.lt.s32.totalorder %s23, 0
          %s165 = scalar_select %p164, %s23, 0
          %s166 = scalar_lea.vmem %s2, %s165
        $region20: #{tpu_custom_call.1} parent=11 // pred_fallthru
          _
      $region12: #{tpu_custom_call.1} parent=5 // pred_fallthru
        _
      %p167 = scmp.lt.s32.totalorder %s12, 4
      // Predicated region
      $region21: #{tpu_custom_call.1} parent=5 // pred_check
        %p168 = pneg %p167
      $region22: #{tpu_custom_call.1} parent=5 // pred_check_branch
        %170 = sbr.rel (%p168) target = $region24
      $region23: #{tpu_custom_call.1} parent=5 // pred_region
        // Predicated region
        $region25: #{tpu_custom_call.1} parent=23 // pred_check
          %p171 = pneg %p51
        $region26: #{tpu_custom_call.1} parent=23 // pred_check_branch
          %173 = sbr.rel (%p171) target = $region28
        $region27: #{tpu_custom_call.1} parent=23 // pred_region
          %p174 = scmp.lt.s32.totalorder %s19, 1
          %s175 = scalar_select %p174, %s19, 1
          %s176 = smul.addr %s175, 170
          %s177 = smul.addr %s176, 8
          %s178 = scalar_lea.vmem %s0, %s177
        $region28: #{tpu_custom_call.1} parent=23 // pred_fallthru
          _
      $region24: #{tpu_custom_call.1} parent=5 // pred_fallthru
        _
      %p179 = scmp.le.s32.totalorder 1, %s12
      %p180 = scmp.lt.s32.totalorder %s12, 5
      %p181 = pnand %p179, %p180
      %p182 = pneg %p181
      // Predicated region
      $region29: #{tpu_custom_call.1} parent=5 // pred_check
        _
      $region30: #{tpu_custom_call.1} parent=5 // pred_check_branch
        %184 = sbr.rel (%p181) target = $region32
      $region31: #{tpu_custom_call.1} parent=5 // pred_region
        %s185 = ssub.s32 %s12, 1
        %p186 = scmp.lt.s32.totalorder %s22, 1
        %s187 = scalar_select %p186, %s22, 1
        %s188 = smul.addr %s187, 170
        %s189 = smul.addr %s188, 8
        %s190 = scalar_lea.vmem %s0, %s189
        %p191 = pneg %p57
        %p192 = pneg %p54
        %p193 = scmp.lt.s32.totalorder %s23, 0
        %s194 = scalar_select %p193, %s23, 0
        %s195 = smul.addr %s194, 4
        %s196 = scalar_lea.vmem %s1, %s195
        %p197 = pneg %p83
        %p198 = pneg %p80
        %p199 = scmp.lt.s32.totalorder %s23, 0
        %s200 = scalar_select %p199, %s23, 0
        %s201 = scalar_lea.vmem %s2, %s200
        %p202 = pneg %p109
        %p203 = pneg %p106
        %p204 = pneg %p139
        %p205 = pneg %p136
        %s206 = sand.u32 %s126, 1
        %s207 = scalar_lea.sflag [#allocation3], %s206
        %s208 = sand.u32 %s126, 1
        %s209 = smul.addr %s208, 512
        %s210 = scalar_lea.vmem [#allocation2], %s209
        %p211 = scmp.lt.s32.totalorder %s22, 1
        %s212 = scalar_select %p211, %s22, 1
        %s213 = smul.addr %s212, 170
        %s214 = smul.addr %s213, 8
        %s215 = scalar_lea.vmem %s0, %s214
        %p216 = scmp.lt.s32.totalorder %s23, 0
        %s217 = scalar_select %p216, %s23, 0
        %s218 = smul.addr %s217, 4
        %s219 = scalar_lea.vmem %s1, %s218
        %p220 = scmp.lt.s32.totalorder %s23, 0
        %s221 = scalar_select %p220, %s23, 0
        %s222 = scalar_lea.vmem %s2, %s221
        %s223 = smul.u32 16, %s24
        %s224 = smul.u32 %s24, 16
        %s225 = smul.u32 %s224, 40
        %s226 = scalar_lea.vmem %s215, %s225
        %v227 = vld [vmem:[%s226] sm:$0xff]
        %v228 = vld [vmem:[%s226 + $0x8] sm:$0xff]
        %v229 = vld [vmem:[%s226 + $0x10] sm:$0xff]
        %v230 = vld [vmem:[%s226 + $0x18] sm:$0xff]
        %v231 = vld [vmem:[%s226 + $0x28] sm:$0xff]
        %v232 = vld [vmem:[%s226 + $0x30] sm:$0xff]
        %v233 = vld [vmem:[%s226 + $0x38] sm:$0xff]
        %v234 = vld [vmem:[%s226 + $0x40] sm:$0xff]
        %v235 = vld [vmem:[%s226 + $0x50] sm:$0xff]
        %v236 = vld [vmem:[%s226 + $0x58] sm:$0xff]
        %v237 = vld [vmem:[%s226 + $0x60] sm:$0xff]
        %v238 = vld [vmem:[%s226 + $0x68] sm:$0xff]
        %v239 = vld [vmem:[%s226 + $0x78] sm:$0xff]
        %v240 = vld [vmem:[%s226 + $0x80] sm:$0xff]
        %v241 = vld [vmem:[%s226 + $0x88] sm:$0xff]
        %v242 = vld [vmem:[%s226 + $0x90] sm:$0xff]
        %v243 = vld [vmem:[%s226 + $0xa0] sm:$0xff]
        %v244 = vld [vmem:[%s226 + $0xa8] sm:$0xff]
        %v245 = vld [vmem:[%s226 + $0xb0] sm:$0xff]
        %v246 = vld [vmem:[%s226 + $0xb8] sm:$0xff]
        %v247 = vld [vmem:[%s226 + $0xc8] sm:$0xff]
        %v248 = vld [vmem:[%s226 + $0xd0] sm:$0xff]
        %v249 = vld [vmem:[%s226 + $0xd8] sm:$0xff]
        %v250 = vld [vmem:[%s226 + $0xe0] sm:$0xff]
        %v251 = vld [vmem:[%s226 + $0xf0] sm:$0xff]
        %v252 = vld [vmem:[%s226 + $0xf8] sm:$0xff]
        %v253 = vld [vmem:[%s226 + $0x100] sm:$0xff]
        %v254 = vld [vmem:[%s226 + $0x108] sm:$0xff]
        %v255 = vld [vmem:[%s226 + $0x118] sm:$0xff]
        %v256 = vld [vmem:[%s226 + $0x120] sm:$0xff]
        %v257 = vld [vmem:[%s226 + $0x128] sm:$0xff]
        %v258 = vld [vmem:[%s226 + $0x130] sm:$0xff]
        %v259 = vld [vmem:[%s226 + $0x140] sm:$0xff]
        %v260 = vld [vmem:[%s226 + $0x148] sm:$0xff]
        %v261 = vld [vmem:[%s226 + $0x150] sm:$0xff]
        %v262 = vld [vmem:[%s226 + $0x158] sm:$0xff]
        %v263 = vld [vmem:[%s226 + $0x168] sm:$0xff]
        %v264 = vld [vmem:[%s226 + $0x170] sm:$0xff]
        %v265 = vld [vmem:[%s226 + $0x178] sm:$0xff]
        %v266 = vld [vmem:[%s226 + $0x180] sm:$0xff]
        %v267 = vld [vmem:[%s226 + $0x190] sm:$0xff]
        %v268 = vld [vmem:[%s226 + $0x198] sm:$0xff]
        %v269 = vld [vmem:[%s226 + $0x1a0] sm:$0xff]
        %v270 = vld [vmem:[%s226 + $0x1a8] sm:$0xff]
        %v271 = vld [vmem:[%s226 + $0x1b8] sm:$0xff]
        %v272 = vld [vmem:[%s226 + $0x1c0] sm:$0xff]
        %v273 = vld [vmem:[%s226 + $0x1c8] sm:$0xff]
        %v274 = vld [vmem:[%s226 + $0x1d0] sm:$0xff]
        %v275 = vld [vmem:[%s226 + $0x1e0] sm:$0xff]
        %v276 = vld [vmem:[%s226 + $0x1e8] sm:$0xff]
        %v277 = vld [vmem:[%s226 + $0x1f0] sm:$0xff]
        %v278 = vld [vmem:[%s226 + $0x1f8] sm:$0xff]
        %v279 = vld [vmem:[%s226 + $0x208] sm:$0xff]
        %v280 = vld [vmem:[%s226 + $0x210] sm:$0xff]
        %v281 = vld [vmem:[%s226 + $0x218] sm:$0xff]
        %v282 = vld [vmem:[%s226 + $0x220] sm:$0xff]
        %v283 = vld [vmem:[%s226 + $0x230] sm:$0xff]
        %v284 = vld [vmem:[%s226 + $0x238] sm:$0xff]
        %v285 = vld [vmem:[%s226 + $0x240] sm:$0xff]
        %v286 = vld [vmem:[%s226 + $0x248] sm:$0xff]
        %v287 = vld [vmem:[%s226 + $0x258] sm:$0xff]
        %v288 = vld [vmem:[%s226 + $0x260] sm:$0xff]
        %v289 = vld [vmem:[%s226 + $0x268] sm:$0xff]
        %v290 = vld [vmem:[%s226 + $0x270] sm:$0xff]
        %v291 = vld [vmem:[%s219] sm:$0x7]
        %v292 = vld [vmem:[%s226 + $0x1] sm:$0xff]
        %v293 = vld [vmem:[%s226 + $0x9] sm:$0xff]
        %v294 = vld [vmem:[%s226 + $0x11] sm:$0xff]
        %v295 = vld [vmem:[%s226 + $0x19] sm:$0xff]
        %v296 = vld [vmem:[%s226 + $0x29] sm:$0xff]
        %v297 = vld [vmem:[%s226 + $0x31] sm:$0xff]
        %v298 = vld [vmem:[%s226 + $0x39] sm:$0xff]
        %v299 = vld [vmem:[%s226 + $0x41] sm:$0xff]
        %v300 = vld [vmem:[%s226 + $0x51] sm:$0xff]
        %v301 = vld [vmem:[%s226 + $0x59] sm:$0xff]
        %v302 = vld [vmem:[%s226 + $0x61] sm:$0xff]
        %v303 = vld [vmem:[%s226 + $0x69] sm:$0xff]
        %v304 = vld [vmem:[%s226 + $0x79] sm:$0xff]
        %v305 = vld [vmem:[%s226 + $0x81] sm:$0xff]
        %v306 = vld [vmem:[%s226 + $0x89] sm:$0xff]
        %v307 = vld [vmem:[%s226 + $0x91] sm:$0xff]
        %v308 = vld [vmem:[%s226 + $0xa1] sm:$0xff]
        %v309 = vld [vmem:[%s226 + $0xa9] sm:$0xff]
        %v310 = vld [vmem:[%s226 + $0xb1] sm:$0xff]
        %v311 = vld [vmem:[%s226 + $0xb9] sm:$0xff]
        %v312 = vld [vmem:[%s226 + $0xc9] sm:$0xff]
        %v313 = vld [vmem:[%s226 + $0xd1] sm:$0xff]
        %v314 = vld [vmem:[%s226 + $0xd9] sm:$0xff]
        %v315 = vld [vmem:[%s226 + $0xe1] sm:$0xff]
        %v316 = vld [vmem:[%s226 + $0xf1] sm:$0xff]
        %v317 = vld [vmem:[%s226 + $0xf9] sm:$0xff]
        %v318 = vld [vmem:[%s226 + $0x101] sm:$0xff]
        %v319 = vld [vmem:[%s226 + $0x109] sm:$0xff]
        %v320 = vld [vmem:[%s226 + $0x119] sm:$0xff]
        %v321 = vld [vmem:[%s226 + $0x121] sm:$0xff]
        %v322 = vld [vmem:[%s226 + $0x129] sm:$0xff]
        %v323 = vld [vmem:[%s226 + $0x131] sm:$0xff]
        %v324 = vld [vmem:[%s226 + $0x141] sm:$0xff]
        %v325 = vld [vmem:[%s226 + $0x149] sm:$0xff]
        %v326 = vld [vmem:[%s226 + $0x151] sm:$0xff]
        %v327 = vld [vmem:[%s226 + $0x159] sm:$0xff]
        %v328 = vld [vmem:[%s226 + $0x169] sm:$0xff]
        %v329 = vld [vmem:[%s226 + $0x171] sm:$0xff]
        %v330 = vld [vmem:[%s226 + $0x179] sm:$0xff]
        %v331 = vld [vmem:[%s226 + $0x181] sm:$0xff]
        %v332 = vld [vmem:[%s226 + $0x191] sm:$0xff]
        %v333 = vld [vmem:[%s226 + $0x199] sm:$0xff]
        %v334 = vld [vmem:[%s226 + $0x1a1] sm:$0xff]
        %v335 = vld [vmem:[%s226 + $0x1a9] sm:$0xff]
        %v336 = vld [vmem:[%s226 + $0x1b9] sm:$0xff]
        %v337 = vld [vmem:[%s226 + $0x1c1] sm:$0xff]
        %v338 = vld [vmem:[%s226 + $0x1c9] sm:$0xff]
        %v339 = vld [vmem:[%s226 + $0x1d1] sm:$0xff]
        %v340 = vld [vmem:[%s226 + $0x1e1] sm:$0xff]
        %v341 = vld [vmem:[%s226 + $0x1e9] sm:$0xff]
        %v342 = vld [vmem:[%s226 + $0x1f1] sm:$0xff]
        %v343 = vld [vmem:[%s226 + $0x1f9] sm:$0xff]
        %v344 = vld [vmem:[%s226 + $0x209] sm:$0xff]
        %v345 = vld [vmem:[%s226 + $0x211] sm:$0xff]
        %v346 = vld [vmem:[%s226 + $0x219] sm:$0xff]
        %v347 = vld [vmem:[%s226 + $0x221] sm:$0xff]
        %v348 = vld [vmem:[%s226 + $0x231] sm:$0xff]
        %v349 = vld [vmem:[%s226 + $0x239] sm:$0xff]
        %v350 = vld [vmem:[%s226 + $0x241] sm:$0xff]
        %v351 = vld [vmem:[%s226 + $0x249] sm:$0xff]
        %v352 = vld [vmem:[%s226 + $0x259] sm:$0xff]
        %v353 = vld [vmem:[%s226 + $0x261] sm:$0xff]
        %v354 = vld [vmem:[%s226 + $0x269] sm:$0xff]
        %v355 = vld [vmem:[%s226 + $0x271] sm:$0xff]
        %s356 = scalar_lea.vmem %s219, 4
        %v357 = vld [vmem:[%s356] sm:$0x7]
        %vm358 = vcmask 23552
        %v360 = vsel %vm358, %v292, 0
        %v363 = vsel %vm358, %v293, 0
        %v366 = vsel %vm358, %v294, 0
        %v369 = vsel %vm358, %v295, 0
        %v372 = vsel %vm358, %v296, 0
        %v375 = vsel %vm358, %v297, 0
        %v378 = vsel %vm358, %v298, 0
        %v381 = vsel %vm358, %v299, 0
        %v384 = vsel %vm358, %v300, 0
        %v387 = vsel %vm358, %v301, 0
        %v390 = vsel %vm358, %v302, 0
        %v393 = vsel %vm358, %v303, 0
        %v396 = vsel %vm358, %v304, 0
        %v399 = vsel %vm358, %v305, 0
        %v402 = vsel %vm358, %v306, 0
        %v405 = vsel %vm358, %v307, 0
        %v408 = vsel %vm358, %v308, 0
        %v411 = vsel %vm358, %v309, 0
        %v414 = vsel %vm358, %v310, 0
        %v417 = vsel %vm358, %v311, 0
        %v420 = vsel %vm358, %v312, 0
        %v423 = vsel %vm358, %v313, 0
        %v426 = vsel %vm358, %v314, 0
        %v429 = vsel %vm358, %v315, 0
        %v432 = vsel %vm358, %v316, 0
        %v435 = vsel %vm358, %v317, 0
        %v438 = vsel %vm358, %v318, 0
        %v441 = vsel %vm358, %v319, 0
        %v444 = vsel %vm358, %v320, 0
        %v447 = vsel %vm358, %v321, 0
        %v450 = vsel %vm358, %v322, 0
        %v453 = vsel %vm358, %v323, 0
        %v456 = vsel %vm358, %v324, 0
        %v459 = vsel %vm358, %v325, 0
        %v462 = vsel %vm358, %v326, 0
        %v465 = vsel %vm358, %v327, 0
        %v468 = vsel %vm358, %v328, 0
        %v471 = vsel %vm358, %v329, 0
        %v474 = vsel %vm358, %v330, 0
        %v477 = vsel %vm358, %v331, 0
        %v480 = vsel %vm358, %v332, 0
        %v483 = vsel %vm358, %v333, 0
        %v486 = vsel %vm358, %v334, 0
        %v489 = vsel %vm358, %v335, 0
        %v492 = vsel %vm358, %v336, 0
        %v495 = vsel %vm358, %v337, 0
        %v498 = vsel %vm358, %v338, 0
        %v501 = vsel %vm358, %v339, 0
        %v504 = vsel %vm358, %v340, 0
        %v507 = vsel %vm358, %v341, 0
        %v510 = vsel %vm358, %v342, 0
        %v513 = vsel %vm358, %v343, 0
        %v516 = vsel %vm358, %v344, 0
        %v519 = vsel %vm358, %v345, 0
        %v522 = vsel %vm358, %v346, 0
        %v525 = vsel %vm358, %v347, 0
        %v528 = vsel %vm358, %v348, 0
        %v531 = vsel %vm358, %v349, 0
        %v534 = vsel %vm358, %v350, 0
        %v537 = vsel %vm358, %v351, 0
        %v540 = vsel %vm358, %v352, 0
        %v543 = vsel %vm358, %v353, 0
        %v546 = vsel %vm358, %v354, 0
        %v549 = vsel %vm358, %v355, 0
        %vm551 = vcmask 1042432
        %v553 = vsel %vm551, %v357, 0
        %555 = vmatprep.subr.mxu0 0.0
        %556 = vmatpush1.msra.mxu0 0.0
        %557 = vmatprep.subr.mxu0 0.0
        %558 = vmatpush1.msra.mxu0 0.0
        %559 = vmatprep.subr.mxu0 0.0
        %560 = vmatpush1.msra.mxu0 0.0
        %561 = vmatprep.subr.mxu0 0.0
        %562 = vmatpush1.msra.mxu0 0.0
        %563 = vmatprep.subr.mxu0 0.0
        %564 = vmatpush1.msra.mxu0 0.0
        %565 = vmatprep.subr.mxu0 0.0
        %566 = vmatpush1.msra.mxu0 0.0
        %567 = vmatprep.subr.mxu0 0.0
        %568 = vmatpush1.msra.mxu0 0.0
        %569 = vmatprep.subr.mxu0 0.0
        %570 = vmatpush1.msra.mxu0 0.0
        %571 = vmatprep.subr.mxu0 0.0
        %572 = vmatpush1.msra.mxu0 0.0
        %573 = vmatprep.subr.mxu0 0.0
        %574 = vmatpush1.msra.mxu0 0.0
        %575 = vmatprep.subr.mxu0 0.0
        %576 = vmatpush1.msra.mxu0 0.0
        %577 = vmatprep.subr.mxu0 0.0
        %578 = vmatpush1.msra.mxu0 0.0
        %579 = vmatprep.subr.mxu0 0.0
        %580 = vmatpush1.msra.mxu0 0.0
        %581 = vmatprep.subr.mxu0 0.0
        %582 = vmatpush1.msra.mxu0 0.0
        %583 = vmatprep.subr.mxu0 0.0
        %584 = vmatpush1.msra.mxu0 0.0
        %585 = vmatprep.subr.mxu0 0.0
        %586 = vmatpush1.msra.mxu0 %v553
        %587 = vmatprep.subr.mxu0 0.0
        %588 = vmatpush2.msra.mxu0 0.0
        %589 = vmatprep.subr.mxu0 0.0
        %590 = vmatpush2.msra.mxu0 0.0
        %591 = vmatprep.subr.mxu0 0.0
        %592 = vmatpush2.msra.mxu0 0.0
        %593 = vmatprep.subr.mxu0 0.0
        %594 = vmatpush2.msra.mxu0 0.0
        %595 = vmatprep.subr.mxu0 0.0
        %596 = vmatpush2.msra.mxu0 0.0
        %597 = vmatprep.subr.mxu0 0.0
        %598 = vmatpush2.msra.mxu0 0.0
        %599 = vmatprep.subr.mxu0 0.0
        %600 = vmatpush2.msra.mxu0 0.0
        %601 = vmatprep.subr.mxu0 0.0
        %602 = vmatpush2.msra.mxu0 0.0
        %603 = vmatprep.subr.mxu0 0.0
        %604 = vmatpush2.msra.mxu0 0.0
        %605 = vmatprep.subr.mxu0 0.0
        %606 = vmatpush2.msra.mxu0 0.0
        %607 = vmatprep.subr.mxu0 0.0
        %608 = vmatpush2.msra.mxu0 0.0
        %609 = vmatprep.subr.mxu0 0.0
        %610 = vmatpush2.msra.mxu0 0.0
        %611 = vmatprep.subr.mxu0 0.0
        %612 = vmatpush2.msra.mxu0 0.0
        %613 = vmatprep.subr.mxu0 0.0
        %614 = vmatpush2.msra.mxu0 0.0
        %615 = vmatprep.subr.mxu0 0.0
        %616 = vmatpush2.msra.mxu0 0.0
        %617 = vmatprep.subr.mxu0 0.0
        %618 = vmatpush2.msra.mxu0 0.0
        %619 = vmatprep.mubr.f32.mxu0 0.0
        %620 = vmatmul.mubr.f32.gmra.mxu0 %v360
        %v621 = vpop.f32.mrf.mxu0
        %v622 = vadd.f32 0.0, %v621
        %v623 = vpop.f32.mrf.mxu0
        %624 = vmatprep.mubr.f32.mxu0 0.0
        %625 = vmatmul.mubr.f32.gmra.mxu0 %v363
        %v626 = vpop.f32.mrf.mxu0
        %v627 = vadd.f32 0.0, %v626
        %v628 = vpop.f32.mrf.mxu0
        %629 = vmatprep.mubr.f32.mxu0 0.0
        %630 = vmatmul.mubr.f32.gmra.mxu0 %v366
        %v631 = vpop.f32.mrf.mxu0
        %v632 = vadd.f32 0.0, %v631
        %v633 = vpop.f32.mrf.mxu0
        %634 = vmatprep.mubr.f32.mxu0 0.0
        %635 = vmatmul.mubr.f32.gmra.mxu0 %v369
        %v636 = vpop.f32.mrf.mxu0
        %v637 = vadd.f32 0.0, %v636
        %v638 = vpop.f32.mrf.mxu0
        %639 = vmatprep.mubr.f32.mxu0 0.0
        %640 = vmatmul.mubr.f32.gmra.mxu0 %v372
        %v641 = vpop.f32.mrf.mxu0
        %v642 = vadd.f32 0.0, %v641
        %v643 = vpop.f32.mrf.mxu0
        %644 = vmatprep.mubr.f32.mxu0 0.0
        %645 = vmatmul.mubr.f32.gmra.mxu0 %v375
        %v646 = vpop.f32.mrf.mxu0
        %v647 = vadd.f32 0.0, %v646
        %v648 = vpop.f32.mrf.mxu0
        %649 = vmatprep.mubr.f32.mxu0 0.0
        %650 = vmatmul.mubr.f32.gmra.mxu0 %v378
        %v651 = vpop.f32.mrf.mxu0
        %v652 = vadd.f32 0.0, %v651
        %v653 = vpop.f32.mrf.mxu0
        %654 = vmatprep.mubr.f32.mxu0 0.0
        %655 = vmatmul.mubr.f32.gmra.mxu0 %v381
        %v656 = vpop.f32.mrf.mxu0
        %v657 = vadd.f32 0.0, %v656
        %v658 = vpop.f32.mrf.mxu0
        %659 = vmatprep.mubr.f32.mxu0 0.0
        %660 = vmatmul.mubr.f32.gmra.mxu0 %v384
        %v661 = vpop.f32.mrf.mxu0
        %v662 = vadd.f32 0.0, %v661
        %v663 = vpop.f32.mrf.mxu0
        %664 = vmatprep.mubr.f32.mxu0 0.0
        %665 = vmatmul.mubr.f32.gmra.mxu0 %v387
        %v666 = vpop.f32.mrf.mxu0
        %v667 = vadd.f32 0.0, %v666
        %v668 = vpop.f32.mrf.mxu0
        %669 = vmatprep.mubr.f32.mxu0 0.0
        %670 = vmatmul.mubr.f32.gmra.mxu0 %v390
        %v671 = vpop.f32.mrf.mxu0
        %v672 = vadd.f32 0.0, %v671
        %v673 = vpop.f32.mrf.mxu0
        %674 = vmatprep.mubr.f32.mxu0 0.0
        %675 = vmatmul.mubr.f32.gmra.mxu0 %v393
        %v676 = vpop.f32.mrf.mxu0
        %v677 = vadd.f32 0.0, %v676
        %v678 = vpop.f32.mrf.mxu0
        %679 = vmatprep.mubr.f32.mxu0 0.0
        %680 = vmatmul.mubr.f32.gmra.mxu0 %v396
        %v681 = vpop.f32.mrf.mxu0
        %v682 = vadd.f32 0.0, %v681
        %v683 = vpop.f32.mrf.mxu0
        %684 = vmatprep.mubr.f32.mxu0 0.0
        %685 = vmatmul.mubr.f32.gmra.mxu0 %v399
        %v686 = vpop.f32.mrf.mxu0
        %v687 = vadd.f32 0.0, %v686
        %v688 = vpop.f32.mrf.mxu0
        %689 = vmatprep.mubr.f32.mxu0 0.0
        %690 = vmatmul.mubr.f32.gmra.mxu0 %v402
        %v691 = vpop.f32.mrf.mxu0
        %v692 = vadd.f32 0.0, %v691
        %v693 = vpop.f32.mrf.mxu0
        %694 = vmatprep.mubr.f32.mxu0 0.0
        %695 = vmatmul.mubr.f32.gmra.mxu0 %v405
        %v696 = vpop.f32.mrf.mxu0
        %v697 = vadd.f32 0.0, %v696
        %v698 = vpop.f32.mrf.mxu0
        %699 = vmatprep.mubr.f32.mxu0 0.0
        %700 = vmatmul.mubr.f32.gmra.mxu0 %v408
        %v701 = vpop.f32.mrf.mxu0
        %v702 = vadd.f32 0.0, %v701
        %v703 = vpop.f32.mrf.mxu0
        %704 = vmatprep.mubr.f32.mxu0 0.0
        %705 = vmatmul.mubr.f32.gmra.mxu0 %v411
        %v706 = vpop.f32.mrf.mxu0
        %v707 = vadd.f32 0.0, %v706
        %v708 = vpop.f32.mrf.mxu0
        %709 = vmatprep.mubr.f32.mxu0 0.0
        %710 = vmatmul.mubr.f32.gmra.mxu0 %v414
        %v711 = vpop.f32.mrf.mxu0
        %v712 = vadd.f32 0.0, %v711
        %v713 = vpop.f32.mrf.mxu0
        %714 = vmatprep.mubr.f32.mxu0 0.0
        %715 = vmatmul.mubr.f32.gmra.mxu0 %v417
        %v716 = vpop.f32.mrf.mxu0
        %v717 = vadd.f32 0.0, %v716
        %v718 = vpop.f32.mrf.mxu0
        %719 = vmatprep.mubr.f32.mxu0 0.0
        %720 = vmatmul.mubr.f32.gmra.mxu0 %v420
        %v721 = vpop.f32.mrf.mxu0
        %v722 = vadd.f32 0.0, %v721
        %v723 = vpop.f32.mrf.mxu0
        %724 = vmatprep.mubr.f32.mxu0 0.0
        %725 = vmatmul.mubr.f32.gmra.mxu0 %v423
        %v726 = vpop.f32.mrf.mxu0
        %v727 = vadd.f32 0.0, %v726
        %v728 = vpop.f32.mrf.mxu0
        %729 = vmatprep.mubr.f32.mxu0 0.0
        %730 = vmatmul.mubr.f32.gmra.mxu0 %v426
        %v731 = vpop.f32.mrf.mxu0
        %v732 = vadd.f32 0.0, %v731
        %v733 = vpop.f32.mrf.mxu0
        %734 = vmatprep.mubr.f32.mxu0 0.0
        %735 = vmatmul.mubr.f32.gmra.mxu0 %v429
        %v736 = vpop.f32.mrf.mxu0
        %v737 = vadd.f32 0.0, %v736
        %v738 = vpop.f32.mrf.mxu0
        %739 = vmatprep.mubr.f32.mxu0 0.0
        %740 = vmatmul.mubr.f32.gmra.mxu0 %v432
        %v741 = vpop.f32.mrf.mxu0
        %v742 = vadd.f32 0.0, %v741
        %v743 = vpop.f32.mrf.mxu0
        %744 = vmatprep.mubr.f32.mxu0 0.0
        %745 = vmatmul.mubr.f32.gmra.mxu0 %v435
        %v746 = vpop.f32.mrf.mxu0
        %v747 = vadd.f32 0.0, %v746
        %v748 = vpop.f32.mrf.mxu0
        %749 = vmatprep.mubr.f32.mxu0 0.0
        %750 = vmatmul.mubr.f32.gmra.mxu0 %v438
        %v751 = vpop.f32.mrf.mxu0
        %v752 = vadd.f32 0.0, %v751
        %v753 = vpop.f32.mrf.mxu0
        %754 = vmatprep.mubr.f32.mxu0 0.0
        %755 = vmatmul.mubr.f32.gmra.mxu0 %v441
        %v756 = vpop.f32.mrf.mxu0
        %v757 = vadd.f32 0.0, %v756
        %v758 = vpop.f32.mrf.mxu0
        %759 = vmatprep.mubr.f32.mxu0 0.0
        %760 = vmatmul.mubr.f32.gmra.mxu0 %v444
        %v761 = vpop.f32.mrf.mxu0
        %v762 = vadd.f32 0.0, %v761
        %v763 = vpop.f32.mrf.mxu0
        %764 = vmatprep.mubr.f32.mxu0 0.0
        %765 = vmatmul.mubr.f32.gmra.mxu0 %v447
        %v766 = vpop.f32.mrf.mxu0
        %v767 = vadd.f32 0.0, %v766
        %v768 = vpop.f32.mrf.mxu0
        %769 = vmatprep.mubr.f32.mxu0 0.0
        %770 = vmatmul.mubr.f32.gmra.mxu0 %v450
        %v771 = vpop.f32.mrf.mxu0
        %v772 = vadd.f32 0.0, %v771
        %v773 = vpop.f32.mrf.mxu0
        %774 = vmatprep.mubr.f32.mxu0 0.0
        %775 = vmatmul.mubr.f32.gmra.mxu0 %v453
        %v776 = vpop.f32.mrf.mxu0
        %v777 = vadd.f32 0.0, %v776
        %v778 = vpop.f32.mrf.mxu0
        %779 = vmatprep.mubr.f32.mxu0 0.0
        %780 = vmatmul.mubr.f32.gmra.mxu0 %v456
        %v781 = vpop.f32.mrf.mxu0
        %v782 = vadd.f32 0.0, %v781
        %v783 = vpop.f32.mrf.mxu0
        %784 = vmatprep.mubr.f32.mxu0 0.0
        %785 = vmatmul.mubr.f32.gmra.mxu0 %v459
        %v786 = vpop.f32.mrf.mxu0
        %v787 = vadd.f32 0.0, %v786
        %v788 = vpop.f32.mrf.mxu0
        %789 = vmatprep.mubr.f32.mxu0 0.0
        %790 = vmatmul.mubr.f32.gmra.mxu0 %v462
        %v791 = vpop.f32.mrf.mxu0
        %v792 = vadd.f32 0.0, %v791
        %v793 = vpop.f32.mrf.mxu0
        %794 = vmatprep.mubr.f32.mxu0 0.0
        %795 = vmatmul.mubr.f32.gmra.mxu0 %v465
        %v796 = vpop.f32.mrf.mxu0
        %v797 = vadd.f32 0.0, %v796
        %v798 = vpop.f32.mrf.mxu0
        %799 = vmatprep.mubr.f32.mxu0 0.0
        %800 = vmatmul.mubr.f32.gmra.mxu0 %v468
        %v801 = vpop.f32.mrf.mxu0
        %v802 = vadd.f32 0.0, %v801
        %v803 = vpop.f32.mrf.mxu0
        %804 = vmatprep.mubr.f32.mxu0 0.0
        %805 = vmatmul.mubr.f32.gmra.mxu0 %v471
        %v806 = vpop.f32.mrf.mxu0
        %v807 = vadd.f32 0.0, %v806
        %v808 = vpop.f32.mrf.mxu0
        %809 = vmatprep.mubr.f32.mxu0 0.0
        %810 = vmatmul.mubr.f32.gmra.mxu0 %v474
        %v811 = vpop.f32.mrf.mxu0
        %v812 = vadd.f32 0.0, %v811
        %v813 = vpop.f32.mrf.mxu0
        %814 = vmatprep.mubr.f32.mxu0 0.0
        %815 = vmatmul.mubr.f32.gmra.mxu0 %v477
        %v816 = vpop.f32.mrf.mxu0
        %v817 = vadd.f32 0.0, %v816
        %v818 = vpop.f32.mrf.mxu0
        %819 = vmatprep.mubr.f32.mxu0 0.0
        %820 = vmatmul.mubr.f32.gmra.mxu0 %v480
        %v821 = vpop.f32.mrf.mxu0
        %v822 = vadd.f32 0.0, %v821
        %v823 = vpop.f32.mrf.mxu0
        %824 = vmatprep.mubr.f32.mxu0 0.0
        %825 = vmatmul.mubr.f32.gmra.mxu0 %v483
        %v826 = vpop.f32.mrf.mxu0
        %v827 = vadd.f32 0.0, %v826
        %v828 = vpop.f32.mrf.mxu0
        %829 = vmatprep.mubr.f32.mxu0 0.0
        %830 = vmatmul.mubr.f32.gmra.mxu0 %v486
        %v831 = vpop.f32.mrf.mxu0
        %v832 = vadd.f32 0.0, %v831
        %v833 = vpop.f32.mrf.mxu0
        %834 = vmatprep.mubr.f32.mxu0 0.0
        %835 = vmatmul.mubr.f32.gmra.mxu0 %v489
        %v836 = vpop.f32.mrf.mxu0
        %v837 = vadd.f32 0.0, %v836
        %v838 = vpop.f32.mrf.mxu0
        %839 = vmatprep.mubr.f32.mxu0 0.0
        %840 = vmatmul.mubr.f32.gmra.mxu0 %v492
        %v841 = vpop.f32.mrf.mxu0
        %v842 = vadd.f32 0.0, %v841
        %v843 = vpop.f32.mrf.mxu0
        %844 = vmatprep.mubr.f32.mxu0 0.0
        %845 = vmatmul.mubr.f32.gmra.mxu0 %v495
        %v846 = vpop.f32.mrf.mxu0
        %v847 = vadd.f32 0.0, %v846
        %v848 = vpop.f32.mrf.mxu0
        %849 = vmatprep.mubr.f32.mxu0 0.0
        %850 = vmatmul.mubr.f32.gmra.mxu0 %v498
        %v851 = vpop.f32.mrf.mxu0
        %v852 = vadd.f32 0.0, %v851
        %v853 = vpop.f32.mrf.mxu0
        %854 = vmatprep.mubr.f32.mxu0 0.0
        %855 = vmatmul.mubr.f32.gmra.mxu0 %v501
        %v856 = vpop.f32.mrf.mxu0
        %v857 = vadd.f32 0.0, %v856
        %v858 = vpop.f32.mrf.mxu0
        %859 = vmatprep.mubr.f32.mxu0 0.0
        %860 = vmatmul.mubr.f32.gmra.mxu0 %v504
        %v861 = vpop.f32.mrf.mxu0
        %v862 = vadd.f32 0.0, %v861
        %v863 = vpop.f32.mrf.mxu0
        %864 = vmatprep.mubr.f32.mxu0 0.0
        %865 = vmatmul.mubr.f32.gmra.mxu0 %v507
        %v866 = vpop.f32.mrf.mxu0
        %v867 = vadd.f32 0.0, %v866
        %v868 = vpop.f32.mrf.mxu0
        %869 = vmatprep.mubr.f32.mxu0 0.0
        %870 = vmatmul.mubr.f32.gmra.mxu0 %v510
        %v871 = vpop.f32.mrf.mxu0
        %v872 = vadd.f32 0.0, %v871
        %v873 = vpop.f32.mrf.mxu0
        %874 = vmatprep.mubr.f32.mxu0 0.0
        %875 = vmatmul.mubr.f32.gmra.mxu0 %v513
        %v876 = vpop.f32.mrf.mxu0
        %v877 = vadd.f32 0.0, %v876
        %v878 = vpop.f32.mrf.mxu0
        %879 = vmatprep.mubr.f32.mxu0 0.0
        %880 = vmatmul.mubr.f32.gmra.mxu0 %v516
        %v881 = vpop.f32.mrf.mxu0
        %v882 = vadd.f32 0.0, %v881
        %v883 = vpop.f32.mrf.mxu0
        %884 = vmatprep.mubr.f32.mxu0 0.0
        %885 = vmatmul.mubr.f32.gmra.mxu0 %v519
        %v886 = vpop.f32.mrf.mxu0
        %v887 = vadd.f32 0.0, %v886
        %v888 = vpop.f32.mrf.mxu0
        %889 = vmatprep.mubr.f32.mxu0 0.0
        %890 = vmatmul.mubr.f32.gmra.mxu0 %v522
        %v891 = vpop.f32.mrf.mxu0
        %v892 = vadd.f32 0.0, %v891
        %v893 = vpop.f32.mrf.mxu0
        %894 = vmatprep.mubr.f32.mxu0 0.0
        %895 = vmatmul.mubr.f32.gmra.mxu0 %v525
        %v896 = vpop.f32.mrf.mxu0
        %v897 = vadd.f32 0.0, %v896
        %v898 = vpop.f32.mrf.mxu0
        %899 = vmatprep.mubr.f32.mxu0 0.0
        %900 = vmatmul.mubr.f32.gmra.mxu0 %v528
        %v901 = vpop.f32.mrf.mxu0
        %v902 = vadd.f32 0.0, %v901
        %v903 = vpop.f32.mrf.mxu0
        %904 = vmatprep.mubr.f32.mxu0 0.0
        %905 = vmatmul.mubr.f32.gmra.mxu0 %v531
        %v906 = vpop.f32.mrf.mxu0
        %v907 = vadd.f32 0.0, %v906
        %v908 = vpop.f32.mrf.mxu0
        %909 = vmatprep.mubr.f32.mxu0 0.0
        %910 = vmatmul.mubr.f32.gmra.mxu0 %v534
        %v911 = vpop.f32.mrf.mxu0
        %v912 = vadd.f32 0.0, %v911
        %v913 = vpop.f32.mrf.mxu0
        %914 = vmatprep.mubr.f32.mxu0 0.0
        %915 = vmatmul.mubr.f32.gmra.mxu0 %v537
        %v916 = vpop.f32.mrf.mxu0
        %v917 = vadd.f32 0.0, %v916
        %v918 = vpop.f32.mrf.mxu0
        %919 = vmatprep.mubr.f32.mxu0 0.0
        %920 = vmatmul.mubr.f32.gmra.mxu0 %v540
        %v921 = vpop.f32.mrf.mxu0
        %v922 = vadd.f32 0.0, %v921
        %v923 = vpop.f32.mrf.mxu0
        %924 = vmatprep.mubr.f32.mxu0 0.0
        %925 = vmatmul.mubr.f32.gmra.mxu0 %v543
        %v926 = vpop.f32.mrf.mxu0
        %v927 = vadd.f32 0.0, %v926
        %v928 = vpop.f32.mrf.mxu0
        %929 = vmatprep.mubr.f32.mxu0 0.0
        %930 = vmatmul.mubr.f32.gmra.mxu0 %v546
        %v931 = vpop.f32.mrf.mxu0
        %v932 = vadd.f32 0.0, %v931
        %v933 = vpop.f32.mrf.mxu0
        %934 = vmatprep.mubr.f32.mxu0 0.0
        %935 = vmatmul.mubr.f32.gmra.mxu0 %v549
        %v936 = vpop.f32.mrf.mxu0
        %v937 = vadd.f32 0.0, %v936
        %v938 = vpop.f32.mrf.mxu0
        %939 = vdwg.mxu0
        %v941 = vsel %vm358, %v227, 0
        %v944 = vsel %vm358, %v228, 0
        %v947 = vsel %vm358, %v229, 0
        %v950 = vsel %vm358, %v230, 0
        %v953 = vsel %vm358, %v231, 0
        %v956 = vsel %vm358, %v232, 0
        %v959 = vsel %vm358, %v233, 0
        %v962 = vsel %vm358, %v234, 0
        %v965 = vsel %vm358, %v235, 0
        %v968 = vsel %vm358, %v236, 0
        %v971 = vsel %vm358, %v237, 0
        %v974 = vsel %vm358, %v238, 0
        %v977 = vsel %vm358, %v239, 0
        %v980 = vsel %vm358, %v240, 0
        %v983 = vsel %vm358, %v241, 0
        %v986 = vsel %vm358, %v242, 0
        %v989 = vsel %vm358, %v243, 0
        %v992 = vsel %vm358, %v244, 0
        %v995 = vsel %vm358, %v245, 0
        %v998 = vsel %vm358, %v246, 0
        %v1001 = vsel %vm358, %v247, 0
        %v1004 = vsel %vm358, %v248, 0
        %v1007 = vsel %vm358, %v249, 0
        %v1010 = vsel %vm358, %v250, 0
        %v1013 = vsel %vm358, %v251, 0
        %v1016 = vsel %vm358, %v252, 0
        %v1019 = vsel %vm358, %v253, 0
        %v1022 = vsel %vm358, %v254, 0
        %v1025 = vsel %vm358, %v255, 0
        %v1028 = vsel %vm358, %v256, 0
        %v1031 = vsel %vm358, %v257, 0
        %v1034 = vsel %vm358, %v258, 0
        %v1037 = vsel %vm358, %v259, 0
        %v1040 = vsel %vm358, %v260, 0
        %v1043 = vsel %vm358, %v261, 0
        %v1046 = vsel %vm358, %v262, 0
        %v1049 = vsel %vm358, %v263, 0
        %v1052 = vsel %vm358, %v264, 0
        %v1055 = vsel %vm358, %v265, 0
        %v1058 = vsel %vm358, %v266, 0
        %v1061 = vsel %vm358, %v267, 0
        %v1064 = vsel %vm358, %v268, 0
        %v1067 = vsel %vm358, %v269, 0
        %v1070 = vsel %vm358, %v270, 0
        %v1073 = vsel %vm358, %v271, 0
        %v1076 = vsel %vm358, %v272, 0
        %v1079 = vsel %vm358, %v273, 0
        %v1082 = vsel %vm358, %v274, 0
        %v1085 = vsel %vm358, %v275, 0
        %v1088 = vsel %vm358, %v276, 0
        %v1091 = vsel %vm358, %v277, 0
        %v1094 = vsel %vm358, %v278, 0
        %v1097 = vsel %vm358, %v279, 0
        %v1100 = vsel %vm358, %v280, 0
        %v1103 = vsel %vm358, %v281, 0
        %v1106 = vsel %vm358, %v282, 0
        %v1109 = vsel %vm358, %v283, 0
        %v1112 = vsel %vm358, %v284, 0
        %v1115 = vsel %vm358, %v285, 0
        %v1118 = vsel %vm358, %v286, 0
        %v1121 = vsel %vm358, %v287, 0
        %v1124 = vsel %vm358, %v288, 0
        %v1127 = vsel %vm358, %v289, 0
        %v1130 = vsel %vm358, %v290, 0
        %v1133 = vsel %vm551, %v291, 0
        %1135 = vmatprep.subr.mxu0 0.0
        %1136 = vmatpush1.msra.mxu0 0.0
        %1137 = vmatprep.subr.mxu0 0.0
        %1138 = vmatpush1.msra.mxu0 0.0
        %1139 = vmatprep.subr.mxu0 0.0
        %1140 = vmatpush1.msra.mxu0 0.0
        %1141 = vmatprep.subr.mxu0 0.0
        %1142 = vmatpush1.msra.mxu0 0.0
        %1143 = vmatprep.subr.mxu0 0.0
        %1144 = vmatpush1.msra.mxu0 0.0
        %1145 = vmatprep.subr.mxu0 0.0
        %1146 = vmatpush1.msra.mxu0 0.0
        %1147 = vmatprep.subr.mxu0 0.0
        %1148 = vmatpush1.msra.mxu0 0.0
        %1149 = vmatprep.subr.mxu0 0.0
        %1150 = vmatpush1.msra.mxu0 0.0
        %1151 = vmatprep.subr.mxu0 0.0
        %1152 = vmatpush1.msra.mxu0 0.0
        %1153 = vmatprep.subr.mxu0 0.0
        %1154 = vmatpush1.msra.mxu0 0.0
        %1155 = vmatprep.subr.mxu0 0.0
        %1156 = vmatpush1.msra.mxu0 0.0
        %1157 = vmatprep.subr.mxu0 0.0
        %1158 = vmatpush1.msra.mxu0 0.0
        %1159 = vmatprep.subr.mxu0 0.0
        %1160 = vmatpush1.msra.mxu0 0.0
        %1161 = vmatprep.subr.mxu0 0.0
        %1162 = vmatpush1.msra.mxu0 0.0
        %1163 = vmatprep.subr.mxu0 0.0
        %1164 = vmatpush1.msra.mxu0 0.0
        %1165 = vmatprep.subr.mxu0 0.0
        %1166 = vmatpush1.msra.mxu0 %v1133
        %1167 = vmatprep.subr.mxu0 0.0
        %1168 = vmatpush2.msra.mxu0 0.0
        %1169 = vmatprep.subr.mxu0 0.0
        %1170 = vmatpush2.msra.mxu0 0.0
        %1171 = vmatprep.subr.mxu0 0.0
        %1172 = vmatpush2.msra.mxu0 0.0
        %1173 = vmatprep.subr.mxu0 0.0
        %1174 = vmatpush2.msra.mxu0 0.0
        %1175 = vmatprep.subr.mxu0 0.0
        %1176 = vmatpush2.msra.mxu0 0.0
        %1177 = vmatprep.subr.mxu0 0.0
        %1178 = vmatpush2.msra.mxu0 0.0
        %1179 = vmatprep.subr.mxu0 0.0
        %1180 = vmatpush2.msra.mxu0 0.0
        %1181 = vmatprep.subr.mxu0 0.0
        %1182 = vmatpush2.msra.mxu0 0.0
        %1183 = vmatprep.subr.mxu0 0.0
        %1184 = vmatpush2.msra.mxu0 0.0
        %1185 = vmatprep.subr.mxu0 0.0
        %1186 = vmatpush2.msra.mxu0 0.0
        %1187 = vmatprep.subr.mxu0 0.0
        %1188 = vmatpush2.msra.mxu0 0.0
        %1189 = vmatprep.subr.mxu0 0.0
        %1190 = vmatpush2.msra.mxu0 0.0
        %1191 = vmatprep.subr.mxu0 0.0
        %1192 = vmatpush2.msra.mxu0 0.0
        %1193 = vmatprep.subr.mxu0 0.0
        %1194 = vmatpush2.msra.mxu0 0.0
        %1195 = vmatprep.subr.mxu0 0.0
        %1196 = vmatpush2.msra.mxu0 0.0
        %1197 = vmatprep.subr.mxu0 0.0
        %1198 = vmatpush2.msra.mxu0 0.0
        %1199 = vmatprep.mubr.f32.mxu0 0.0
        %1200 = vmatmul.mubr.f32.gmra.mxu0 %v941
        %v1201 = vpop.f32.mrf.mxu0
        %v1202 = vadd.f32 %v622, %v1201
        %v1203 = vpop.f32.mrf.mxu0
        %1204 = vmatprep.mubr.f32.mxu0 0.0
        %1205 = vmatmul.mubr.f32.gmra.mxu0 %v944
        %v1206 = vpop.f32.mrf.mxu0
        %v1207 = vadd.f32 %v627, %v1206
        %v1208 = vpop.f32.mrf.mxu0
        %1209 = vmatprep.mubr.f32.mxu0 0.0
        %1210 = vmatmul.mubr.f32.gmra.mxu0 %v947
        %v1211 = vpop.f32.mrf.mxu0
        %v1212 = vadd.f32 %v632, %v1211
        %v1213 = vpop.f32.mrf.mxu0
        %1214 = vmatprep.mubr.f32.mxu0 0.0
        %1215 = vmatmul.mubr.f32.gmra.mxu0 %v950
        %v1216 = vpop.f32.mrf.mxu0
        %v1217 = vadd.f32 %v637, %v1216
        %v1218 = vpop.f32.mrf.mxu0
        %1219 = vmatprep.mubr.f32.mxu0 0.0
        %1220 = vmatmul.mubr.f32.gmra.mxu0 %v953
        %v1221 = vpop.f32.mrf.mxu0
        %v1222 = vadd.f32 %v642, %v1221
        %v1223 = vpop.f32.mrf.mxu0
        %1224 = vmatprep.mubr.f32.mxu0 0.0
        %1225 = vmatmul.mubr.f32.gmra.mxu0 %v956
        %v1226 = vpop.f32.mrf.mxu0
        %v1227 = vadd.f32 %v647, %v1226
        %v1228 = vpop.f32.mrf.mxu0
        %1229 = vmatprep.mubr.f32.mxu0 0.0
        %1230 = vmatmul.mubr.f32.gmra.mxu0 %v959
        %v1231 = vpop.f32.mrf.mxu0
        %v1232 = vadd.f32 %v652, %v1231
        %v1233 = vpop.f32.mrf.mxu0
        %1234 = vmatprep.mubr.f32.mxu0 0.0
        %1235 = vmatmul.mubr.f32.gmra.mxu0 %v962
        %v1236 = vpop.f32.mrf.mxu0
        %v1237 = vadd.f32 %v657, %v1236
        %v1238 = vpop.f32.mrf.mxu0
        %1239 = vmatprep.mubr.f32.mxu0 0.0
        %1240 = vmatmul.mubr.f32.gmra.mxu0 %v965
        %v1241 = vpop.f32.mrf.mxu0
        %v1242 = vadd.f32 %v662, %v1241
        %v1243 = vpop.f32.mrf.mxu0
        %1244 = vmatprep.mubr.f32.mxu0 0.0
        %1245 = vmatmul.mubr.f32.gmra.mxu0 %v968
        %v1246 = vpop.f32.mrf.mxu0
        %v1247 = vadd.f32 %v667, %v1246
        %v1248 = vpop.f32.mrf.mxu0
        %1249 = vmatprep.mubr.f32.mxu0 0.0
        %1250 = vmatmul.mubr.f32.gmra.mxu0 %v971
        %v1251 = vpop.f32.mrf.mxu0
        %v1252 = vadd.f32 %v672, %v1251
        %v1253 = vpop.f32.mrf.mxu0
        %1254 = vmatprep.mubr.f32.mxu0 0.0
        %1255 = vmatmul.mubr.f32.gmra.mxu0 %v974
        %v1256 = vpop.f32.mrf.mxu0
        %v1257 = vadd.f32 %v677, %v1256
        %v1258 = vpop.f32.mrf.mxu0
        %1259 = vmatprep.mubr.f32.mxu0 0.0
        %1260 = vmatmul.mubr.f32.gmra.mxu0 %v977
        %v1261 = vpop.f32.mrf.mxu0
        %v1262 = vadd.f32 %v682, %v1261
        %v1263 = vpop.f32.mrf.mxu0
        %1264 = vmatprep.mubr.f32.mxu0 0.0
        %1265 = vmatmul.mubr.f32.gmra.mxu0 %v980
        %v1266 = vpop.f32.mrf.mxu0
        %v1267 = vadd.f32 %v687, %v1266
        %v1268 = vpop.f32.mrf.mxu0
        %1269 = vmatprep.mubr.f32.mxu0 0.0
        %1270 = vmatmul.mubr.f32.gmra.mxu0 %v983
        %v1271 = vpop.f32.mrf.mxu0
        %v1272 = vadd.f32 %v692, %v1271
        %v1273 = vpop.f32.mrf.mxu0
        %1274 = vmatprep.mubr.f32.mxu0 0.0
        %1275 = vmatmul.mubr.f32.gmra.mxu0 %v986
        %v1276 = vpop.f32.mrf.mxu0
        %v1277 = vadd.f32 %v697, %v1276
        %v1278 = vpop.f32.mrf.mxu0
        %1279 = vmatprep.mubr.f32.mxu0 0.0
        %1280 = vmatmul.mubr.f32.gmra.mxu0 %v989
        %v1281 = vpop.f32.mrf.mxu0
        %v1282 = vadd.f32 %v702, %v1281
        %v1283 = vpop.f32.mrf.mxu0
        %1284 = vmatprep.mubr.f32.mxu0 0.0
        %1285 = vmatmul.mubr.f32.gmra.mxu0 %v992
        %v1286 = vpop.f32.mrf.mxu0
        %v1287 = vadd.f32 %v707, %v1286
        %v1288 = vpop.f32.mrf.mxu0
        %1289 = vmatprep.mubr.f32.mxu0 0.0
        %1290 = vmatmul.mubr.f32.gmra.mxu0 %v995
        %v1291 = vpop.f32.mrf.mxu0
        %v1292 = vadd.f32 %v712, %v1291
        %v1293 = vpop.f32.mrf.mxu0
        %1294 = vmatprep.mubr.f32.mxu0 0.0
        %1295 = vmatmul.mubr.f32.gmra.mxu0 %v998
        %v1296 = vpop.f32.mrf.mxu0
        %v1297 = vadd.f32 %v717, %v1296
        %v1298 = vpop.f32.mrf.mxu0
        %1299 = vmatprep.mubr.f32.mxu0 0.0
        %1300 = vmatmul.mubr.f32.gmra.mxu0 %v1001
        %v1301 = vpop.f32.mrf.mxu0
        %v1302 = vadd.f32 %v722, %v1301
        %v1303 = vpop.f32.mrf.mxu0
        %1304 = vmatprep.mubr.f32.mxu0 0.0
        %1305 = vmatmul.mubr.f32.gmra.mxu0 %v1004
        %v1306 = vpop.f32.mrf.mxu0
        %v1307 = vadd.f32 %v727, %v1306
        %v1308 = vpop.f32.mrf.mxu0
        %1309 = vmatprep.mubr.f32.mxu0 0.0
        %1310 = vmatmul.mubr.f32.gmra.mxu0 %v1007
        %v1311 = vpop.f32.mrf.mxu0
        %v1312 = vadd.f32 %v732, %v1311
        %v1313 = vpop.f32.mrf.mxu0
        %1314 = vmatprep.mubr.f32.mxu0 0.0
        %1315 = vmatmul.mubr.f32.gmra.mxu0 %v1010
        %v1316 = vpop.f32.mrf.mxu0
        %v1317 = vadd.f32 %v737, %v1316
        %v1318 = vpop.f32.mrf.mxu0
        %1319 = vmatprep.mubr.f32.mxu0 0.0
        %1320 = vmatmul.mubr.f32.gmra.mxu0 %v1013
        %v1321 = vpop.f32.mrf.mxu0
        %v1322 = vadd.f32 %v742, %v1321
        %v1323 = vpop.f32.mrf.mxu0
        %1324 = vmatprep.mubr.f32.mxu0 0.0
        %1325 = vmatmul.mubr.f32.gmra.mxu0 %v1016
        %v1326 = vpop.f32.mrf.mxu0
        %v1327 = vadd.f32 %v747, %v1326
        %v1328 = vpop.f32.mrf.mxu0
        %1329 = vmatprep.mubr.f32.mxu0 0.0
        %1330 = vmatmul.mubr.f32.gmra.mxu0 %v1019
        %v1331 = vpop.f32.mrf.mxu0
        %v1332 = vadd.f32 %v752, %v1331
        %v1333 = vpop.f32.mrf.mxu0
        %1334 = vmatprep.mubr.f32.mxu0 0.0
        %1335 = vmatmul.mubr.f32.gmra.mxu0 %v1022
        %v1336 = vpop.f32.mrf.mxu0
        %v1337 = vadd.f32 %v757, %v1336
        %v1338 = vpop.f32.mrf.mxu0
        %1339 = vmatprep.mubr.f32.mxu0 0.0
        %1340 = vmatmul.mubr.f32.gmra.mxu0 %v1025
        %v1341 = vpop.f32.mrf.mxu0
        %v1342 = vadd.f32 %v762, %v1341
        %v1343 = vpop.f32.mrf.mxu0
        %1344 = vmatprep.mubr.f32.mxu0 0.0
        %1345 = vmatmul.mubr.f32.gmra.mxu0 %v1028
        %v1346 = vpop.f32.mrf.mxu0
        %v1347 = vadd.f32 %v767, %v1346
        %v1348 = vpop.f32.mrf.mxu0
        %1349 = vmatprep.mubr.f32.mxu0 0.0
        %1350 = vmatmul.mubr.f32.gmra.mxu0 %v1031
        %v1351 = vpop.f32.mrf.mxu0
        %v1352 = vadd.f32 %v772, %v1351
        %v1353 = vpop.f32.mrf.mxu0
        %1354 = vmatprep.mubr.f32.mxu0 0.0
        %1355 = vmatmul.mubr.f32.gmra.mxu0 %v1034
        %v1356 = vpop.f32.mrf.mxu0
        %v1357 = vadd.f32 %v777, %v1356
        %v1358 = vpop.f32.mrf.mxu0
        %1359 = vmatprep.mubr.f32.mxu0 0.0
        %1360 = vmatmul.mubr.f32.gmra.mxu0 %v1037
        %v1361 = vpop.f32.mrf.mxu0
        %v1362 = vadd.f32 %v782, %v1361
        %v1363 = vpop.f32.mrf.mxu0
        %1364 = vmatprep.mubr.f32.mxu0 0.0
        %1365 = vmatmul.mubr.f32.gmra.mxu0 %v1040
        %v1366 = vpop.f32.mrf.mxu0
        %v1367 = vadd.f32 %v787, %v1366
        %v1368 = vpop.f32.mrf.mxu0
        %1369 = vmatprep.mubr.f32.mxu0 0.0
        %1370 = vmatmul.mubr.f32.gmra.mxu0 %v1043
        %v1371 = vpop.f32.mrf.mxu0
        %v1372 = vadd.f32 %v792, %v1371
        %v1373 = vpop.f32.mrf.mxu0
        %1374 = vmatprep.mubr.f32.mxu0 0.0
        %1375 = vmatmul.mubr.f32.gmra.mxu0 %v1046
        %v1376 = vpop.f32.mrf.mxu0
        %v1377 = vadd.f32 %v797, %v1376
        %v1378 = vpop.f32.mrf.mxu0
        %1379 = vmatprep.mubr.f32.mxu0 0.0
        %1380 = vmatmul.mubr.f32.gmra.mxu0 %v1049
        %v1381 = vpop.f32.mrf.mxu0
        %v1382 = vadd.f32 %v802, %v1381
        %v1383 = vpop.f32.mrf.mxu0
        %1384 = vmatprep.mubr.f32.mxu0 0.0
        %1385 = vmatmul.mubr.f32.gmra.mxu0 %v1052
        %v1386 = vpop.f32.mrf.mxu0
        %v1387 = vadd.f32 %v807, %v1386
        %v1388 = vpop.f32.mrf.mxu0
        %1389 = vmatprep.mubr.f32.mxu0 0.0
        %1390 = vmatmul.mubr.f32.gmra.mxu0 %v1055
        %v1391 = vpop.f32.mrf.mxu0
        %v1392 = vadd.f32 %v812, %v1391
        %v1393 = vpop.f32.mrf.mxu0
        %1394 = vmatprep.mubr.f32.mxu0 0.0
        %1395 = vmatmul.mubr.f32.gmra.mxu0 %v1058
        %v1396 = vpop.f32.mrf.mxu0
        %v1397 = vadd.f32 %v817, %v1396
        %v1398 = vpop.f32.mrf.mxu0
        %1399 = vmatprep.mubr.f32.mxu0 0.0
        %1400 = vmatmul.mubr.f32.gmra.mxu0 %v1061
        %v1401 = vpop.f32.mrf.mxu0
        %v1402 = vadd.f32 %v822, %v1401
        %v1403 = vpop.f32.mrf.mxu0
        %1404 = vmatprep.mubr.f32.mxu0 0.0
        %1405 = vmatmul.mubr.f32.gmra.mxu0 %v1064
        %v1406 = vpop.f32.mrf.mxu0
        %v1407 = vadd.f32 %v827, %v1406
        %v1408 = vpop.f32.mrf.mxu0
        %1409 = vmatprep.mubr.f32.mxu0 0.0
        %1410 = vmatmul.mubr.f32.gmra.mxu0 %v1067
        %v1411 = vpop.f32.mrf.mxu0
        %v1412 = vadd.f32 %v832, %v1411
        %v1413 = vpop.f32.mrf.mxu0
        %1414 = vmatprep.mubr.f32.mxu0 0.0
        %1415 = vmatmul.mubr.f32.gmra.mxu0 %v1070
        %v1416 = vpop.f32.mrf.mxu0
        %v1417 = vadd.f32 %v837, %v1416
        %v1418 = vpop.f32.mrf.mxu0
        %1419 = vmatprep.mubr.f32.mxu0 0.0
        %1420 = vmatmul.mubr.f32.gmra.mxu0 %v1073
        %v1421 = vpop.f32.mrf.mxu0
        %v1422 = vadd.f32 %v842, %v1421
        %v1423 = vpop.f32.mrf.mxu0
        %1424 = vmatprep.mubr.f32.mxu0 0.0
        %1425 = vmatmul.mubr.f32.gmra.mxu0 %v1076
        %v1426 = vpop.f32.mrf.mxu0
        %v1427 = vadd.f32 %v847, %v1426
        %v1428 = vpop.f32.mrf.mxu0
        %1429 = vmatprep.mubr.f32.mxu0 0.0
        %1430 = vmatmul.mubr.f32.gmra.mxu0 %v1079
        %v1431 = vpop.f32.mrf.mxu0
        %v1432 = vadd.f32 %v852, %v1431
        %v1433 = vpop.f32.mrf.mxu0
        %1434 = vmatprep.mubr.f32.mxu0 0.0
        %1435 = vmatmul.mubr.f32.gmra.mxu0 %v1082
        %v1436 = vpop.f32.mrf.mxu0
        %v1437 = vadd.f32 %v857, %v1436
        %v1438 = vpop.f32.mrf.mxu0
        %1439 = vmatprep.mubr.f32.mxu0 0.0
        %1440 = vmatmul.mubr.f32.gmra.mxu0 %v1085
        %v1441 = vpop.f32.mrf.mxu0
        %v1442 = vadd.f32 %v862, %v1441
        %v1443 = vpop.f32.mrf.mxu0
        %1444 = vmatprep.mubr.f32.mxu0 0.0
        %1445 = vmatmul.mubr.f32.gmra.mxu0 %v1088
        %v1446 = vpop.f32.mrf.mxu0
        %v1447 = vadd.f32 %v867, %v1446
        %v1448 = vpop.f32.mrf.mxu0
        %1449 = vmatprep.mubr.f32.mxu0 0.0
        %1450 = vmatmul.mubr.f32.gmra.mxu0 %v1091
        %v1451 = vpop.f32.mrf.mxu0
        %v1452 = vadd.f32 %v872, %v1451
        %v1453 = vpop.f32.mrf.mxu0
        %1454 = vmatprep.mubr.f32.mxu0 0.0
        %1455 = vmatmul.mubr.f32.gmra.mxu0 %v1094
        %v1456 = vpop.f32.mrf.mxu0
        %v1457 = vadd.f32 %v877, %v1456
        %v1458 = vpop.f32.mrf.mxu0
        %1459 = vmatprep.mubr.f32.mxu0 0.0
        %1460 = vmatmul.mubr.f32.gmra.mxu0 %v1097
        %v1461 = vpop.f32.mrf.mxu0
        %v1462 = vadd.f32 %v882, %v1461
        %v1463 = vpop.f32.mrf.mxu0
        %1464 = vmatprep.mubr.f32.mxu0 0.0
        %1465 = vmatmul.mubr.f32.gmra.mxu0 %v1100
        %v1466 = vpop.f32.mrf.mxu0
        %v1467 = vadd.f32 %v887, %v1466
        %v1468 = vpop.f32.mrf.mxu0
        %1469 = vmatprep.mubr.f32.mxu0 0.0
        %1470 = vmatmul.mubr.f32.gmra.mxu0 %v1103
        %v1471 = vpop.f32.mrf.mxu0
        %v1472 = vadd.f32 %v892, %v1471
        %v1473 = vpop.f32.mrf.mxu0
        %1474 = vmatprep.mubr.f32.mxu0 0.0
        %1475 = vmatmul.mubr.f32.gmra.mxu0 %v1106
        %v1476 = vpop.f32.mrf.mxu0
        %v1477 = vadd.f32 %v897, %v1476
        %v1478 = vpop.f32.mrf.mxu0
        %1479 = vmatprep.mubr.f32.mxu0 0.0
        %1480 = vmatmul.mubr.f32.gmra.mxu0 %v1109
        %v1481 = vpop.f32.mrf.mxu0
        %v1482 = vadd.f32 %v902, %v1481
        %v1483 = vpop.f32.mrf.mxu0
        %1484 = vmatprep.mubr.f32.mxu0 0.0
        %1485 = vmatmul.mubr.f32.gmra.mxu0 %v1112
        %v1486 = vpop.f32.mrf.mxu0
        %v1487 = vadd.f32 %v907, %v1486
        %v1488 = vpop.f32.mrf.mxu0
        %1489 = vmatprep.mubr.f32.mxu0 0.0
        %1490 = vmatmul.mubr.f32.gmra.mxu0 %v1115
        %v1491 = vpop.f32.mrf.mxu0
        %v1492 = vadd.f32 %v912, %v1491
        %v1493 = vpop.f32.mrf.mxu0
        %1494 = vmatprep.mubr.f32.mxu0 0.0
        %1495 = vmatmul.mubr.f32.gmra.mxu0 %v1118
        %v1496 = vpop.f32.mrf.mxu0
        %v1497 = vadd.f32 %v917, %v1496
        %v1498 = vpop.f32.mrf.mxu0
        %1499 = vmatprep.mubr.f32.mxu0 0.0
        %1500 = vmatmul.mubr.f32.gmra.mxu0 %v1121
        %v1501 = vpop.f32.mrf.mxu0
        %v1502 = vadd.f32 %v922, %v1501
        %v1503 = vpop.f32.mrf.mxu0
        %1504 = vmatprep.mubr.f32.mxu0 0.0
        %1505 = vmatmul.mubr.f32.gmra.mxu0 %v1124
        %v1506 = vpop.f32.mrf.mxu0
        %v1507 = vadd.f32 %v927, %v1506
        %v1508 = vpop.f32.mrf.mxu0
        %1509 = vmatprep.mubr.f32.mxu0 0.0
        %1510 = vmatmul.mubr.f32.gmra.mxu0 %v1127
        %v1511 = vpop.f32.mrf.mxu0
        %v1512 = vadd.f32 %v932, %v1511
        %v1513 = vpop.f32.mrf.mxu0
        %1514 = vmatprep.mubr.f32.mxu0 0.0
        %1515 = vmatmul.mubr.f32.gmra.mxu0 %v1130
        %v1516 = vpop.f32.mrf.mxu0
        %v1517 = vadd.f32 %v937, %v1516
        %v1518 = vpop.f32.mrf.mxu0
        %1519 = vdwg.mxu0
        %v1520 = vld [vmem:[%s226 + $0x2] sm:$0xff]
        %v1521 = vld [vmem:[%s226 + $0xa] sm:$0xff]
        %v1522 = vld [vmem:[%s226 + $0x12] sm:$0xff]
        %v1523 = vld [vmem:[%s226 + $0x1a] sm:$0xff]
        %v1524 = vld [vmem:[%s226 + $0x2a] sm:$0xff]
        %v1525 = vld [vmem:[%s226 + $0x32] sm:$0xff]
        %v1526 = vld [vmem:[%s226 + $0x3a] sm:$0xff]
        %v1527 = vld [vmem:[%s226 + $0x42] sm:$0xff]
        %v1528 = vld [vmem:[%s226 + $0x52] sm:$0xff]
        %v1529 = vld [vmem:[%s226 + $0x5a] sm:$0xff]
        %v1530 = vld [vmem:[%s226 + $0x62] sm:$0xff]
        %v1531 = vld [vmem:[%s226 + $0x6a] sm:$0xff]
        %v1532 = vld [vmem:[%s226 + $0x7a] sm:$0xff]
        %v1533 = vld [vmem:[%s226 + $0x82] sm:$0xff]
        %v1534 = vld [vmem:[%s226 + $0x8a] sm:$0xff]
        %v1535 = vld [vmem:[%s226 + $0x92] sm:$0xff]
        %v1536 = vld [vmem:[%s226 + $0xa2] sm:$0xff]
        %v1537 = vld [vmem:[%s226 + $0xaa] sm:$0xff]
        %v1538 = vld [vmem:[%s226 + $0xb2] sm:$0xff]
        %v1539 = vld [vmem:[%s226 + $0xba] sm:$0xff]
        %v1540 = vld [vmem:[%s226 + $0xca] sm:$0xff]
        %v1541 = vld [vmem:[%s226 + $0xd2] sm:$0xff]
        %v1542 = vld [vmem:[%s226 + $0xda] sm:$0xff]
        %v1543 = vld [vmem:[%s226 + $0xe2] sm:$0xff]
        %v1544 = vld [vmem:[%s226 + $0xf2] sm:$0xff]
        %v1545 = vld [vmem:[%s226 + $0xfa] sm:$0xff]
        %v1546 = vld [vmem:[%s226 + $0x102] sm:$0xff]
        %v1547 = vld [vmem:[%s226 + $0x10a] sm:$0xff]
        %v1548 = vld [vmem:[%s226 + $0x11a] sm:$0xff]
        %v1549 = vld [vmem:[%s226 + $0x122] sm:$0xff]
        %v1550 = vld [vmem:[%s226 + $0x12a] sm:$0xff]
        %v1551 = vld [vmem:[%s226 + $0x132] sm:$0xff]
        %v1552 = vld [vmem:[%s226 + $0x142] sm:$0xff]
        %v1553 = vld [vmem:[%s226 + $0x14a] sm:$0xff]
        %v1554 = vld [vmem:[%s226 + $0x152] sm:$0xff]
        %v1555 = vld [vmem:[%s226 + $0x15a] sm:$0xff]
        %v1556 = vld [vmem:[%s226 + $0x16a] sm:$0xff]
        %v1557 = vld [vmem:[%s226 + $0x172] sm:$0xff]
        %v1558 = vld [vmem:[%s226 + $0x17a] sm:$0xff]
        %v1559 = vld [vmem:[%s226 + $0x182] sm:$0xff]
        %v1560 = vld [vmem:[%s226 + $0x192] sm:$0xff]
        %v1561 = vld [vmem:[%s226 + $0x19a] sm:$0xff]
        %v1562 = vld [vmem:[%s226 + $0x1a2] sm:$0xff]
        %v1563 = vld [vmem:[%s226 + $0x1aa] sm:$0xff]
        %v1564 = vld [vmem:[%s226 + $0x1ba] sm:$0xff]
        %v1565 = vld [vmem:[%s226 + $0x1c2] sm:$0xff]
        %v1566 = vld [vmem:[%s226 + $0x1ca] sm:$0xff]
        %v1567 = vld [vmem:[%s226 + $0x1d2] sm:$0xff]
        %v1568 = vld [vmem:[%s226 + $0x1e2] sm:$0xff]
        %v1569 = vld [vmem:[%s226 + $0x1ea] sm:$0xff]
        %v1570 = vld [vmem:[%s226 + $0x1f2] sm:$0xff]
        %v1571 = vld [vmem:[%s226 + $0x1fa] sm:$0xff]
        %v1572 = vld [vmem:[%s226 + $0x20a] sm:$0xff]
        %v1573 = vld [vmem:[%s226 + $0x212] sm:$0xff]
        %v1574 = vld [vmem:[%s226 + $0x21a] sm:$0xff]
        %v1575 = vld [vmem:[%s226 + $0x222] sm:$0xff]
        %v1576 = vld [vmem:[%s226 + $0x232] sm:$0xff]
        %v1577 = vld [vmem:[%s226 + $0x23a] sm:$0xff]
        %v1578 = vld [vmem:[%s226 + $0x242] sm:$0xff]
        %v1579 = vld [vmem:[%s226 + $0x24a] sm:$0xff]
        %v1580 = vld [vmem:[%s226 + $0x25a] sm:$0xff]
        %v1581 = vld [vmem:[%s226 + $0x262] sm:$0xff]
        %v1582 = vld [vmem:[%s226 + $0x26a] sm:$0xff]
        %v1583 = vld [vmem:[%s226 + $0x272] sm:$0xff]
        %s1584 = scalar_lea.vmem %s219, 8
        %v1585 = vld [vmem:[%s1584] sm:$0x7]
        %v1587 = vsel %vm358, %v1520, 0
        %v1590 = vsel %vm358, %v1521, 0
        %v1593 = vsel %vm358, %v1522, 0
        %v1596 = vsel %vm358, %v1523, 0
        %v1599 = vsel %vm358, %v1524, 0
        %v1602 = vsel %vm358, %v1525, 0
        %v1605 = vsel %vm358, %v1526, 0
        %v1608 = vsel %vm358, %v1527, 0
        %v1611 = vsel %vm358, %v1528, 0
        %v1614 = vsel %vm358, %v1529, 0
        %v1617 = vsel %vm358, %v1530, 0
        %v1620 = vsel %vm358, %v1531, 0
        %v1623 = vsel %vm358, %v1532, 0
        %v1626 = vsel %vm358, %v1533, 0
        %v1629 = vsel %vm358, %v1534, 0
        %v1632 = vsel %vm358, %v1535, 0
        %v1635 = vsel %vm358, %v1536, 0
        %v1638 = vsel %vm358, %v1537, 0
        %v1641 = vsel %vm358, %v1538, 0
        %v1644 = vsel %vm358, %v1539, 0
        %v1647 = vsel %vm358, %v1540, 0
        %v1650 = vsel %vm358, %v1541, 0
        %v1653 = vsel %vm358, %v1542, 0
        %v1656 = vsel %vm358, %v1543, 0
        %v1659 = vsel %vm358, %v1544, 0
        %v1662 = vsel %vm358, %v1545, 0
        %v1665 = vsel %vm358, %v1546, 0
        %v1668 = vsel %vm358, %v1547, 0
        %v1671 = vsel %vm358, %v1548, 0
        %v1674 = vsel %vm358, %v1549, 0
        %v1677 = vsel %vm358, %v1550, 0
        %v1680 = vsel %vm358, %v1551, 0
        %v1683 = vsel %vm358, %v1552, 0
        %v1686 = vsel %vm358, %v1553, 0
        %v1689 = vsel %vm358, %v1554, 0
        %v1692 = vsel %vm358, %v1555, 0
        %v1695 = vsel %vm358, %v1556, 0
        %v1698 = vsel %vm358, %v1557, 0
        %v1701 = vsel %vm358, %v1558, 0
        %v1704 = vsel %vm358, %v1559, 0
        %v1707 = vsel %vm358, %v1560, 0
        %v1710 = vsel %vm358, %v1561, 0
        %v1713 = vsel %vm358, %v1562, 0
        %v1716 = vsel %vm358, %v1563, 0
        %v1719 = vsel %vm358, %v1564, 0
        %v1722 = vsel %vm358, %v1565, 0
        %v1725 = vsel %vm358, %v1566, 0
        %v1728 = vsel %vm358, %v1567, 0
        %v1731 = vsel %vm358, %v1568, 0
        %v1734 = vsel %vm358, %v1569, 0
        %v1737 = vsel %vm358, %v1570, 0
        %v1740 = vsel %vm358, %v1571, 0
        %v1743 = vsel %vm358, %v1572, 0
        %v1746 = vsel %vm358, %v1573, 0
        %v1749 = vsel %vm358, %v1574, 0
        %v1752 = vsel %vm358, %v1575, 0
        %v1755 = vsel %vm358, %v1576, 0
        %v1758 = vsel %vm358, %v1577, 0
        %v1761 = vsel %vm358, %v1578, 0
        %v1764 = vsel %vm358, %v1579, 0
        %v1767 = vsel %vm358, %v1580, 0
        %v1770 = vsel %vm358, %v1581, 0
        %v1773 = vsel %vm358, %v1582, 0
        %v1776 = vsel %vm358, %v1583, 0
        %v1779 = vsel %vm551, %v1585, 0
        %1781 = vmatprep.subr.mxu0 0.0
        %1782 = vmatpush1.msra.mxu0 0.0
        %1783 = vmatprep.subr.mxu0 0.0
        %1784 = vmatpush1.msra.mxu0 0.0
        %1785 = vmatprep.subr.mxu0 0.0
        %1786 = vmatpush1.msra.mxu0 0.0
        %1787 = vmatprep.subr.mxu0 0.0
        %1788 = vmatpush1.msra.mxu0 0.0
        %1789 = vmatprep.subr.mxu0 0.0
        %1790 = vmatpush1.msra.mxu0 0.0
        %1791 = vmatprep.subr.mxu0 0.0
        %1792 = vmatpush1.msra.mxu0 0.0
        %1793 = vmatprep.subr.mxu0 0.0
        %1794 = vmatpush1.msra.mxu0 0.0
        %1795 = vmatprep.subr.mxu0 0.0
        %1796 = vmatpush1.msra.mxu0 0.0
        %1797 = vmatprep.subr.mxu0 0.0
        %1798 = vmatpush1.msra.mxu0 0.0
        %1799 = vmatprep.subr.mxu0 0.0
        %1800 = vmatpush1.msra.mxu0 0.0
        %1801 = vmatprep.subr.mxu0 0.0
        %1802 = vmatpush1.msra.mxu0 0.0
        %1803 = vmatprep.subr.mxu0 0.0
        %1804 = vmatpush1.msra.mxu0 0.0
        %1805 = vmatprep.subr.mxu0 0.0
        %1806 = vmatpush1.msra.mxu0 0.0
        %1807 = vmatprep.subr.mxu0 0.0
        %1808 = vmatpush1.msra.mxu0 0.0
        %1809 = vmatprep.subr.mxu0 0.0
        %1810 = vmatpush1.msra.mxu0 0.0
        %1811 = vmatprep.subr.mxu0 0.0
        %1812 = vmatpush1.msra.mxu0 %v1779
        %1813 = vmatprep.subr.mxu0 0.0
        %1814 = vmatpush2.msra.mxu0 0.0
        %1815 = vmatprep.subr.mxu0 0.0
        %1816 = vmatpush2.msra.mxu0 0.0
        %1817 = vmatprep.subr.mxu0 0.0
        %1818 = vmatpush2.msra.mxu0 0.0
        %1819 = vmatprep.subr.mxu0 0.0
        %1820 = vmatpush2.msra.mxu0 0.0
        %1821 = vmatprep.subr.mxu0 0.0
        %1822 = vmatpush2.msra.mxu0 0.0
        %1823 = vmatprep.subr.mxu0 0.0
        %1824 = vmatpush2.msra.mxu0 0.0
        %1825 = vmatprep.subr.mxu0 0.0
        %1826 = vmatpush2.msra.mxu0 0.0
        %1827 = vmatprep.subr.mxu0 0.0
        %1828 = vmatpush2.msra.mxu0 0.0
        %1829 = vmatprep.subr.mxu0 0.0
        %1830 = vmatpush2.msra.mxu0 0.0
        %1831 = vmatprep.subr.mxu0 0.0
        %1832 = vmatpush2.msra.mxu0 0.0
        %1833 = vmatprep.subr.mxu0 0.0
        %1834 = vmatpush2.msra.mxu0 0.0
        %1835 = vmatprep.subr.mxu0 0.0
        %1836 = vmatpush2.msra.mxu0 0.0
        %1837 = vmatprep.subr.mxu0 0.0
        %1838 = vmatpush2.msra.mxu0 0.0
        %1839 = vmatprep.subr.mxu0 0.0
        %1840 = vmatpush2.msra.mxu0 0.0
        %1841 = vmatprep.subr.mxu0 0.0
        %1842 = vmatpush2.msra.mxu0 0.0
        %1843 = vmatprep.subr.mxu0 0.0
        %1844 = vmatpush2.msra.mxu0 0.0
        %1845 = vmatprep.mubr.f32.mxu0 0.0
        %1846 = vmatmul.mubr.f32.gmra.mxu0 %v1587
        %v1847 = vpop.f32.mrf.mxu0
        %v1848 = vadd.f32 0.0, %v1847
        %v1849 = vpop.f32.mrf.mxu0
        %1850 = vmatprep.mubr.f32.mxu0 0.0
        %1851 = vmatmul.mubr.f32.gmra.mxu0 %v1590
        %v1852 = vpop.f32.mrf.mxu0
        %v1853 = vadd.f32 0.0, %v1852
        %v1854 = vpop.f32.mrf.mxu0
        %1855 = vmatprep.mubr.f32.mxu0 0.0
        %1856 = vmatmul.mubr.f32.gmra.mxu0 %v1593
        %v1857 = vpop.f32.mrf.mxu0
        %v1858 = vadd.f32 0.0, %v1857
        %v1859 = vpop.f32.mrf.mxu0
        %1860 = vmatprep.mubr.f32.mxu0 0.0
        %1861 = vmatmul.mubr.f32.gmra.mxu0 %v1596
        %v1862 = vpop.f32.mrf.mxu0
        %v1863 = vadd.f32 0.0, %v1862
        %v1864 = vpop.f32.mrf.mxu0
        %1865 = vmatprep.mubr.f32.mxu0 0.0
        %1866 = vmatmul.mubr.f32.gmra.mxu0 %v1599
        %v1867 = vpop.f32.mrf.mxu0
        %v1868 = vadd.f32 0.0, %v1867
        %v1869 = vpop.f32.mrf.mxu0
        %1870 = vmatprep.mubr.f32.mxu0 0.0
        %1871 = vmatmul.mubr.f32.gmra.mxu0 %v1602
        %v1872 = vpop.f32.mrf.mxu0
        %v1873 = vadd.f32 0.0, %v1872
        %v1874 = vpop.f32.mrf.mxu0
        %1875 = vmatprep.mubr.f32.mxu0 0.0
        %1876 = vmatmul.mubr.f32.gmra.mxu0 %v1605
        %v1877 = vpop.f32.mrf.mxu0
        %v1878 = vadd.f32 0.0, %v1877
        %v1879 = vpop.f32.mrf.mxu0
        %1880 = vmatprep.mubr.f32.mxu0 0.0
        %1881 = vmatmul.mubr.f32.gmra.mxu0 %v1608
        %v1882 = vpop.f32.mrf.mxu0
        %v1883 = vadd.f32 0.0, %v1882
        %v1884 = vpop.f32.mrf.mxu0
        %1885 = vmatprep.mubr.f32.mxu0 0.0
        %1886 = vmatmul.mubr.f32.gmra.mxu0 %v1611
        %v1887 = vpop.f32.mrf.mxu0
        %v1888 = vadd.f32 0.0, %v1887
        %v1889 = vpop.f32.mrf.mxu0
        %1890 = vmatprep.mubr.f32.mxu0 0.0
        %1891 = vmatmul.mubr.f32.gmra.mxu0 %v1614
        %v1892 = vpop.f32.mrf.mxu0
        %v1893 = vadd.f32 0.0, %v1892
        %v1894 = vpop.f32.mrf.mxu0
        %1895 = vmatprep.mubr.f32.mxu0 0.0
        %1896 = vmatmul.mubr.f32.gmra.mxu0 %v1617
        %v1897 = vpop.f32.mrf.mxu0
        %v1898 = vadd.f32 0.0, %v1897
        %v1899 = vpop.f32.mrf.mxu0
        %1900 = vmatprep.mubr.f32.mxu0 0.0
        %1901 = vmatmul.mubr.f32.gmra.mxu0 %v1620
        %v1902 = vpop.f32.mrf.mxu0
        %v1903 = vadd.f32 0.0, %v1902
        %v1904 = vpop.f32.mrf.mxu0
        %1905 = vmatprep.mubr.f32.mxu0 0.0
        %1906 = vmatmul.mubr.f32.gmra.mxu0 %v1623
        %v1907 = vpop.f32.mrf.mxu0
        %v1908 = vadd.f32 0.0, %v1907
        %v1909 = vpop.f32.mrf.mxu0
        %1910 = vmatprep.mubr.f32.mxu0 0.0
        %1911 = vmatmul.mubr.f32.gmra.mxu0 %v1626
        %v1912 = vpop.f32.mrf.mxu0
        %v1913 = vadd.f32 0.0, %v1912
        %v1914 = vpop.f32.mrf.mxu0
        %1915 = vmatprep.mubr.f32.mxu0 0.0
        %1916 = vmatmul.mubr.f32.gmra.mxu0 %v1629
        %v1917 = vpop.f32.mrf.mxu0
        %v1918 = vadd.f32 0.0, %v1917
        %v1919 = vpop.f32.mrf.mxu0
        %1920 = vmatprep.mubr.f32.mxu0 0.0
        %1921 = vmatmul.mubr.f32.gmra.mxu0 %v1632
        %v1922 = vpop.f32.mrf.mxu0
        %v1923 = vadd.f32 0.0, %v1922
        %v1924 = vpop.f32.mrf.mxu0
        %1925 = vmatprep.mubr.f32.mxu0 0.0
        %1926 = vmatmul.mubr.f32.gmra.mxu0 %v1635
        %v1927 = vpop.f32.mrf.mxu0
        %v1928 = vadd.f32 0.0, %v1927
        %v1929 = vpop.f32.mrf.mxu0
        %1930 = vmatprep.mubr.f32.mxu0 0.0
        %1931 = vmatmul.mubr.f32.gmra.mxu0 %v1638
        %v1932 = vpop.f32.mrf.mxu0
        %v1933 = vadd.f32 0.0, %v1932
        %v1934 = vpop.f32.mrf.mxu0
        %1935 = vmatprep.mubr.f32.mxu0 0.0
        %1936 = vmatmul.mubr.f32.gmra.mxu0 %v1641
        %v1937 = vpop.f32.mrf.mxu0
        %v1938 = vadd.f32 0.0, %v1937
        %v1939 = vpop.f32.mrf.mxu0
        %1940 = vmatprep.mubr.f32.mxu0 0.0
        %1941 = vmatmul.mubr.f32.gmra.mxu0 %v1644
        %v1942 = vpop.f32.mrf.mxu0
        %v1943 = vadd.f32 0.0, %v1942
        %v1944 = vpop.f32.mrf.mxu0
        %1945 = vmatprep.mubr.f32.mxu0 0.0
        %1946 = vmatmul.mubr.f32.gmra.mxu0 %v1647
        %v1947 = vpop.f32.mrf.mxu0
        %v1948 = vadd.f32 0.0, %v1947
        %v1949 = vpop.f32.mrf.mxu0
        %1950 = vmatprep.mubr.f32.mxu0 0.0
        %1951 = vmatmul.mubr.f32.gmra.mxu0 %v1650
        %v1952 = vpop.f32.mrf.mxu0
        %v1953 = vadd.f32 0.0, %v1952
        %v1954 = vpop.f32.mrf.mxu0
        %1955 = vmatprep.mubr.f32.mxu0 0.0
        %1956 = vmatmul.mubr.f32.gmra.mxu0 %v1653
        %v1957 = vpop.f32.mrf.mxu0
        %v1958 = vadd.f32 0.0, %v1957
        %v1959 = vpop.f32.mrf.mxu0
        %1960 = vmatprep.mubr.f32.mxu0 0.0
        %1961 = vmatmul.mubr.f32.gmra.mxu0 %v1656
        %v1962 = vpop.f32.mrf.mxu0
        %v1963 = vadd.f32 0.0, %v1962
        %v1964 = vpop.f32.mrf.mxu0
        %1965 = vmatprep.mubr.f32.mxu0 0.0
        %1966 = vmatmul.mubr.f32.gmra.mxu0 %v1659
        %v1967 = vpop.f32.mrf.mxu0
        %v1968 = vadd.f32 0.0, %v1967
        %v1969 = vpop.f32.mrf.mxu0
        %1970 = vmatprep.mubr.f32.mxu0 0.0
        %1971 = vmatmul.mubr.f32.gmra.mxu0 %v1662
        %v1972 = vpop.f32.mrf.mxu0
        %v1973 = vadd.f32 0.0, %v1972
        %v1974 = vpop.f32.mrf.mxu0
        %1975 = vmatprep.mubr.f32.mxu0 0.0
        %1976 = vmatmul.mubr.f32.gmra.mxu0 %v1665
        %v1977 = vpop.f32.mrf.mxu0
        %v1978 = vadd.f32 0.0, %v1977
        %v1979 = vpop.f32.mrf.mxu0
        %1980 = vmatprep.mubr.f32.mxu0 0.0
        %1981 = vmatmul.mubr.f32.gmra.mxu0 %v1668
        %v1982 = vpop.f32.mrf.mxu0
        %v1983 = vadd.f32 0.0, %v1982
        %v1984 = vpop.f32.mrf.mxu0
        %1985 = vmatprep.mubr.f32.mxu0 0.0
        %1986 = vmatmul.mubr.f32.gmra.mxu0 %v1671
        %v1987 = vpop.f32.mrf.mxu0
        %v1988 = vadd.f32 0.0, %v1987
        %v1989 = vpop.f32.mrf.mxu0
        %1990 = vmatprep.mubr.f32.mxu0 0.0
        %1991 = vmatmul.mubr.f32.gmra.mxu0 %v1674
        %v1992 = vpop.f32.mrf.mxu0
        %v1993 = vadd.f32 0.0, %v1992
        %v1994 = vpop.f32.mrf.mxu0
        %1995 = vmatprep.mubr.f32.mxu0 0.0
        %1996 = vmatmul.mubr.f32.gmra.mxu0 %v1677
        %v1997 = vpop.f32.mrf.mxu0
        %v1998 = vadd.f32 0.0, %v1997
        %v1999 = vpop.f32.mrf.mxu0
        %2000 = vmatprep.mubr.f32.mxu0 0.0
        %2001 = vmatmul.mubr.f32.gmra.mxu0 %v1680
        %v2002 = vpop.f32.mrf.mxu0
        %v2003 = vadd.f32 0.0, %v2002
        %v2004 = vpop.f32.mrf.mxu0
        %2005 = vmatprep.mubr.f32.mxu0 0.0
        %2006 = vmatmul.mubr.f32.gmra.mxu0 %v1683
        %v2007 = vpop.f32.mrf.mxu0
        %v2008 = vadd.f32 0.0, %v2007
        %v2009 = vpop.f32.mrf.mxu0
        %2010 = vmatprep.mubr.f32.mxu0 0.0
        %2011 = vmatmul.mubr.f32.gmra.mxu0 %v1686
        %v2012 = vpop.f32.mrf.mxu0
        %v2013 = vadd.f32 0.0, %v2012
        %v2014 = vpop.f32.mrf.mxu0
        %2015 = vmatprep.mubr.f32.mxu0 0.0
        %2016 = vmatmul.mubr.f32.gmra.mxu0 %v1689
        %v2017 = vpop.f32.mrf.mxu0
        %v2018 = vadd.f32 0.0, %v2017
        %v2019 = vpop.f32.mrf.mxu0
        %2020 = vmatprep.mubr.f32.mxu0 0.0
        %2021 = vmatmul.mubr.f32.gmra.mxu0 %v1692
        %v2022 = vpop.f32.mrf.mxu0
        %v2023 = vadd.f32 0.0, %v2022
        %v2024 = vpop.f32.mrf.mxu0
        %2025 = vmatprep.mubr.f32.mxu0 0.0
        %2026 = vmatmul.mubr.f32.gmra.mxu0 %v1695
        %v2027 = vpop.f32.mrf.mxu0
        %v2028 = vadd.f32 0.0, %v2027
        %v2029 = vpop.f32.mrf.mxu0
        %2030 = vmatprep.mubr.f32.mxu0 0.0
        %2031 = vmatmul.mubr.f32.gmra.mxu0 %v1698
        %v2032 = vpop.f32.mrf.mxu0
        %v2033 = vadd.f32 0.0, %v2032
        %v2034 = vpop.f32.mrf.mxu0
        %2035 = vmatprep.mubr.f32.mxu0 0.0
        %2036 = vmatmul.mubr.f32.gmra.mxu0 %v1701
        %v2037 = vpop.f32.mrf.mxu0
        %v2038 = vadd.f32 0.0, %v2037
        %v2039 = vpop.f32.mrf.mxu0
        %2040 = vmatprep.mubr.f32.mxu0 0.0
        %2041 = vmatmul.mubr.f32.gmra.mxu0 %v1704
        %v2042 = vpop.f32.mrf.mxu0
        %v2043 = vadd.f32 0.0, %v2042
        %v2044 = vpop.f32.mrf.mxu0
        %2045 = vmatprep.mubr.f32.mxu0 0.0
        %2046 = vmatmul.mubr.f32.gmra.mxu0 %v1707
        %v2047 = vpop.f32.mrf.mxu0
        %v2048 = vadd.f32 0.0, %v2047
        %v2049 = vpop.f32.mrf.mxu0
        %2050 = vmatprep.mubr.f32.mxu0 0.0
        %2051 = vmatmul.mubr.f32.gmra.mxu0 %v1710
        %v2052 = vpop.f32.mrf.mxu0
        %v2053 = vadd.f32 0.0, %v2052
        %v2054 = vpop.f32.mrf.mxu0
        %2055 = vmatprep.mubr.f32.mxu0 0.0
        %2056 = vmatmul.mubr.f32.gmra.mxu0 %v1713
        %v2057 = vpop.f32.mrf.mxu0
        %v2058 = vadd.f32 0.0, %v2057
        %v2059 = vpop.f32.mrf.mxu0
        %2060 = vmatprep.mubr.f32.mxu0 0.0
        %2061 = vmatmul.mubr.f32.gmra.mxu0 %v1716
        %v2062 = vpop.f32.mrf.mxu0
        %v2063 = vadd.f32 0.0, %v2062
        %v2064 = vpop.f32.mrf.mxu0
        %2065 = vmatprep.mubr.f32.mxu0 0.0
        %2066 = vmatmul.mubr.f32.gmra.mxu0 %v1719
        %v2067 = vpop.f32.mrf.mxu0
        %v2068 = vadd.f32 0.0, %v2067
        %v2069 = vpop.f32.mrf.mxu0
        %2070 = vmatprep.mubr.f32.mxu0 0.0
        %2071 = vmatmul.mubr.f32.gmra.mxu0 %v1722
        %v2072 = vpop.f32.mrf.mxu0
        %v2073 = vadd.f32 0.0, %v2072
        %v2074 = vpop.f32.mrf.mxu0
        %2075 = vmatprep.mubr.f32.mxu0 0.0
        %2076 = vmatmul.mubr.f32.gmra.mxu0 %v1725
        %v2077 = vpop.f32.mrf.mxu0
        %v2078 = vadd.f32 0.0, %v2077
        %v2079 = vpop.f32.mrf.mxu0
        %2080 = vmatprep.mubr.f32.mxu0 0.0
        %2081 = vmatmul.mubr.f32.gmra.mxu0 %v1728
        %v2082 = vpop.f32.mrf.mxu0
        %v2083 = vadd.f32 0.0, %v2082
        %v2084 = vpop.f32.mrf.mxu0
        %2085 = vmatprep.mubr.f32.mxu0 0.0
        %2086 = vmatmul.mubr.f32.gmra.mxu0 %v1731
        %v2087 = vpop.f32.mrf.mxu0
        %v2088 = vadd.f32 0.0, %v2087
        %v2089 = vpop.f32.mrf.mxu0
        %2090 = vmatprep.mubr.f32.mxu0 0.0
        %2091 = vmatmul.mubr.f32.gmra.mxu0 %v1734
        %v2092 = vpop.f32.mrf.mxu0
        %v2093 = vadd.f32 0.0, %v2092
        %v2094 = vpop.f32.mrf.mxu0
        %2095 = vmatprep.mubr.f32.mxu0 0.0
        %2096 = vmatmul.mubr.f32.gmra.mxu0 %v1737
        %v2097 = vpop.f32.mrf.mxu0
        %v2098 = vadd.f32 0.0, %v2097
        %v2099 = vpop.f32.mrf.mxu0
        %2100 = vmatprep.mubr.f32.mxu0 0.0
        %2101 = vmatmul.mubr.f32.gmra.mxu0 %v1740
        %v2102 = vpop.f32.mrf.mxu0
        %v2103 = vadd.f32 0.0, %v2102
        %v2104 = vpop.f32.mrf.mxu0
        %2105 = vmatprep.mubr.f32.mxu0 0.0
        %2106 = vmatmul.mubr.f32.gmra.mxu0 %v1743
        %v2107 = vpop.f32.mrf.mxu0
        %v2108 = vadd.f32 0.0, %v2107
        %v2109 = vpop.f32.mrf.mxu0
        %2110 = vmatprep.mubr.f32.mxu0 0.0
        %2111 = vmatmul.mubr.f32.gmra.mxu0 %v1746
        %v2112 = vpop.f32.mrf.mxu0
        %v2113 = vadd.f32 0.0, %v2112
        %v2114 = vpop.f32.mrf.mxu0
        %2115 = vmatprep.mubr.f32.mxu0 0.0
        %2116 = vmatmul.mubr.f32.gmra.mxu0 %v1749
        %v2117 = vpop.f32.mrf.mxu0
        %v2118 = vadd.f32 0.0, %v2117
        %v2119 = vpop.f32.mrf.mxu0
        %2120 = vmatprep.mubr.f32.mxu0 0.0
        %2121 = vmatmul.mubr.f32.gmra.mxu0 %v1752
        %v2122 = vpop.f32.mrf.mxu0
        %v2123 = vadd.f32 0.0, %v2122
        %v2124 = vpop.f32.mrf.mxu0
        %2125 = vmatprep.mubr.f32.mxu0 0.0
        %2126 = vmatmul.mubr.f32.gmra.mxu0 %v1755
        %v2127 = vpop.f32.mrf.mxu0
        %v2128 = vadd.f32 0.0, %v2127
        %v2129 = vpop.f32.mrf.mxu0
        %2130 = vmatprep.mubr.f32.mxu0 0.0
        %2131 = vmatmul.mubr.f32.gmra.mxu0 %v1758
        %v2132 = vpop.f32.mrf.mxu0
        %v2133 = vadd.f32 0.0, %v2132
        %v2134 = vpop.f32.mrf.mxu0
        %2135 = vmatprep.mubr.f32.mxu0 0.0
        %2136 = vmatmul.mubr.f32.gmra.mxu0 %v1761
        %v2137 = vpop.f32.mrf.mxu0
        %v2138 = vadd.f32 0.0, %v2137
        %v2139 = vpop.f32.mrf.mxu0
        %2140 = vmatprep.mubr.f32.mxu0 0.0
        %2141 = vmatmul.mubr.f32.gmra.mxu0 %v1764
        %v2142 = vpop.f32.mrf.mxu0
        %v2143 = vadd.f32 0.0, %v2142
        %v2144 = vpop.f32.mrf.mxu0
        %2145 = vmatprep.mubr.f32.mxu0 0.0
        %2146 = vmatmul.mubr.f32.gmra.mxu0 %v1767
        %v2147 = vpop.f32.mrf.mxu0
        %v2148 = vadd.f32 0.0, %v2147
        %v2149 = vpop.f32.mrf.mxu0
        %2150 = vmatprep.mubr.f32.mxu0 0.0
        %2151 = vmatmul.mubr.f32.gmra.mxu0 %v1770
        %v2152 = vpop.f32.mrf.mxu0
        %v2153 = vadd.f32 0.0, %v2152
        %v2154 = vpop.f32.mrf.mxu0
        %2155 = vmatprep.mubr.f32.mxu0 0.0
        %2156 = vmatmul.mubr.f32.gmra.mxu0 %v1773
        %v2157 = vpop.f32.mrf.mxu0
        %v2158 = vadd.f32 0.0, %v2157
        %v2159 = vpop.f32.mrf.mxu0
        %2160 = vmatprep.mubr.f32.mxu0 0.0
        %2161 = vmatmul.mubr.f32.gmra.mxu0 %v1776
        %v2162 = vpop.f32.mrf.mxu0
        %v2163 = vadd.f32 0.0, %v2162
        %v2164 = vpop.f32.mrf.mxu0
        %2165 = vdwg.mxu0
        %v2166 = vadd.f32 %v1202, %v1848
        %v2167 = vadd.f32 %v1207, %v1853
        %v2168 = vadd.f32 %v1212, %v1858
        %v2169 = vadd.f32 %v1217, %v1863
        %v2170 = vadd.f32 %v1222, %v1868
        %v2171 = vadd.f32 %v1227, %v1873
        %v2172 = vadd.f32 %v1232, %v1878
        %v2173 = vadd.f32 %v1237, %v1883
        %v2174 = vadd.f32 %v1242, %v1888
        %v2175 = vadd.f32 %v1247, %v1893
        %v2176 = vadd.f32 %v1252, %v1898
        %v2177 = vadd.f32 %v1257, %v1903
        %v2178 = vadd.f32 %v1262, %v1908
        %v2179 = vadd.f32 %v1267, %v1913
        %v2180 = vadd.f32 %v1272, %v1918
        %v2181 = vadd.f32 %v1277, %v1923
        %v2182 = vadd.f32 %v1282, %v1928
        %v2183 = vadd.f32 %v1287, %v1933
        %v2184 = vadd.f32 %v1292, %v1938
        %v2185 = vadd.f32 %v1297, %v1943
        %v2186 = vadd.f32 %v1302, %v1948
        %v2187 = vadd.f32 %v1307, %v1953
        %v2188 = vadd.f32 %v1312, %v1958
        %v2189 = vadd.f32 %v1317, %v1963
        %v2190 = vadd.f32 %v1322, %v1968
        %v2191 = vadd.f32 %v1327, %v1973
        %v2192 = vadd.f32 %v1332, %v1978
        %v2193 = vadd.f32 %v1337, %v1983
        %v2194 = vadd.f32 %v1342, %v1988
        %v2195 = vadd.f32 %v1347, %v1993
        %v2196 = vadd.f32 %v1352, %v1998
        %v2197 = vadd.f32 %v1357, %v2003
        %v2198 = vadd.f32 %v1362, %v2008
        %v2199 = vadd.f32 %v1367, %v2013
        %v2200 = vadd.f32 %v1372, %v2018
        %v2201 = vadd.f32 %v1377, %v2023
        %v2202 = vadd.f32 %v1382, %v2028
        %v2203 = vadd.f32 %v1387, %v2033
        %v2204 = vadd.f32 %v1392, %v2038
        %v2205 = vadd.f32 %v1397, %v2043
        %v2206 = vadd.f32 %v1402, %v2048
        %v2207 = vadd.f32 %v1407, %v2053
        %v2208 = vadd.f32 %v1412, %v2058
        %v2209 = vadd.f32 %v1417, %v2063
        %v2210 = vadd.f32 %v1422, %v2068
        %v2211 = vadd.f32 %v1427, %v2073
        %v2212 = vadd.f32 %v1432, %v2078
        %v2213 = vadd.f32 %v1437, %v2083
        %v2214 = vadd.f32 %v1442, %v2088
        %v2215 = vadd.f32 %v1447, %v2093
        %v2216 = vadd.f32 %v1452, %v2098
        %v2217 = vadd.f32 %v1457, %v2103
        %v2218 = vadd.f32 %v1462, %v2108
        %v2219 = vadd.f32 %v1467, %v2113
        %v2220 = vadd.f32 %v1472, %v2118
        %v2221 = vadd.f32 %v1477, %v2123
        %v2222 = vadd.f32 %v1482, %v2128
        %v2223 = vadd.f32 %v1487, %v2133
        %v2224 = vadd.f32 %v1492, %v2138
        %v2225 = vadd.f32 %v1497, %v2143
        %v2226 = vadd.f32 %v1502, %v2148
        %v2227 = vadd.f32 %v1507, %v2153
        %v2228 = vadd.f32 %v1512, %v2158
        %v2229 = vadd.f32 %v1517, %v2163
        %s2230 = sadd.s32 %s224, 1
        %s2231 = smul.u32 %s2230, 40
        %s2232 = scalar_lea.vmem %s215, %s2231
        %v2233 = vld [vmem:[%s2232] sm:$0xff]
        %v2234 = vld [vmem:[%s2232 + $0x8] sm:$0xff]
        %v2235 = vld [vmem:[%s2232 + $0x10] sm:$0xff]
        %v2236 = vld [vmem:[%s2232 + $0x18] sm:$0xff]
        %v2237 = vld [vmem:[%s2232 + $0x28] sm:$0xff]
        %v2238 = vld [vmem:[%s2232 + $0x30] sm:$0xff]
        %v2239 = vld [vmem:[%s2232 + $0x38] sm:$0xff]
        %v2240 = vld [vmem:[%s2232 + $0x40] sm:$0xff]
        %v2241 = vld [vmem:[%s2232 + $0x50] sm:$0xff]
        %v2242 = vld [vmem:[%s2232 + $0x58] sm:$0xff]
        %v2243 = vld [vmem:[%s2232 + $0x60] sm:$0xff]
        %v2244 = vld [vmem:[%s2232 + $0x68] sm:$0xff]
        %v2245 = vld [vmem:[%s2232 + $0x78] sm:$0xff]
        %v2246 = vld [vmem:[%s2232 + $0x80] sm:$0xff]
        %v2247 = vld [vmem:[%s2232 + $0x88] sm:$0xff]
        %v2248 = vld [vmem:[%s2232 + $0x90] sm:$0xff]
        %v2249 = vld [vmem:[%s2232 + $0xa0] sm:$0xff]
        %v2250 = vld [vmem:[%s2232 + $0xa8] sm:$0xff]
        %v2251 = vld [vmem:[%s2232 + $0xb0] sm:$0xff]
        %v2252 = vld [vmem:[%s2232 + $0xb8] sm:$0xff]
        %v2253 = vld [vmem:[%s2232 + $0xc8] sm:$0xff]
        %v2254 = vld [vmem:[%s2232 + $0xd0] sm:$0xff]
        %v2255 = vld [vmem:[%s2232 + $0xd8] sm:$0xff]
        %v2256 = vld [vmem:[%s2232 + $0xe0] sm:$0xff]
        %v2257 = vld [vmem:[%s2232 + $0xf0] sm:$0xff]
        %v2258 = vld [vmem:[%s2232 + $0xf8] sm:$0xff]
        %v2259 = vld [vmem:[%s2232 + $0x100] sm:$0xff]
        %v2260 = vld [vmem:[%s2232 + $0x108] sm:$0xff]
        %v2261 = vld [vmem:[%s2232 + $0x118] sm:$0xff]
        %v2262 = vld [vmem:[%s2232 + $0x120] sm:$0xff]
        %v2263 = vld [vmem:[%s2232 + $0x128] sm:$0xff]
        %v2264 = vld [vmem:[%s2232 + $0x130] sm:$0xff]
        %v2265 = vld [vmem:[%s2232 + $0x140] sm:$0xff]
        %v2266 = vld [vmem:[%s2232 + $0x148] sm:$0xff]
        %v2267 = vld [vmem:[%s2232 + $0x150] sm:$0xff]
        %v2268 = vld [vmem:[%s2232 + $0x158] sm:$0xff]
        %v2269 = vld [vmem:[%s2232 + $0x168] sm:$0xff]
        %v2270 = vld [vmem:[%s2232 + $0x170] sm:$0xff]
        %v2271 = vld [vmem:[%s2232 + $0x178] sm:$0xff]
        %v2272 = vld [vmem:[%s2232 + $0x180] sm:$0xff]
        %v2273 = vld [vmem:[%s2232 + $0x190] sm:$0xff]
        %v2274 = vld [vmem:[%s2232 + $0x198] sm:$0xff]
        %v2275 = vld [vmem:[%s2232 + $0x1a0] sm:$0xff]
        %v2276 = vld [vmem:[%s2232 + $0x1a8] sm:$0xff]
        %v2277 = vld [vmem:[%s2232 + $0x1b8] sm:$0xff]
        %v2278 = vld [vmem:[%s2232 + $0x1c0] sm:$0xff]
        %v2279 = vld [vmem:[%s2232 + $0x1c8] sm:$0xff]
        %v2280 = vld [vmem:[%s2232 + $0x1d0] sm:$0xff]
        %v2281 = vld [vmem:[%s2232 + $0x1e0] sm:$0xff]
        %v2282 = vld [vmem:[%s2232 + $0x1e8] sm:$0xff]
        %v2283 = vld [vmem:[%s2232 + $0x1f0] sm:$0xff]
        %v2284 = vld [vmem:[%s2232 + $0x1f8] sm:$0xff]
        %v2285 = vld [vmem:[%s2232 + $0x208] sm:$0xff]
        %v2286 = vld [vmem:[%s2232 + $0x210] sm:$0xff]
        %v2287 = vld [vmem:[%s2232 + $0x218] sm:$0xff]
        %v2288 = vld [vmem:[%s2232 + $0x220] sm:$0xff]
        %v2289 = vld [vmem:[%s2232 + $0x230] sm:$0xff]
        %v2290 = vld [vmem:[%s2232 + $0x238] sm:$0xff]
        %v2291 = vld [vmem:[%s2232 + $0x240] sm:$0xff]
        %v2292 = vld [vmem:[%s2232 + $0x248] sm:$0xff]
        %v2293 = vld [vmem:[%s2232 + $0x258] sm:$0xff]
        %v2294 = vld [vmem:[%s2232 + $0x260] sm:$0xff]
        %v2295 = vld [vmem:[%s2232 + $0x268] sm:$0xff]
        %v2296 = vld [vmem:[%s2232 + $0x270] sm:$0xff]
        %s2297 = scalar_lea.vmem %s219, 12
        %v2298 = vld [vmem:[%s2297] sm:$0x7]
        %v2300 = vsel %vm358, %v2233, 0
        %v2303 = vsel %vm358, %v2234, 0
        %v2306 = vsel %vm358, %v2235, 0
        %v2309 = vsel %vm358, %v2236, 0
        %v2312 = vsel %vm358, %v2237, 0
        %v2315 = vsel %vm358, %v2238, 0
        %v2318 = vsel %vm358, %v2239, 0
        %v2321 = vsel %vm358, %v2240, 0
        %v2324 = vsel %vm358, %v2241, 0
        %v2327 = vsel %vm358, %v2242, 0
        %v2330 = vsel %vm358, %v2243, 0
        %v2333 = vsel %vm358, %v2244, 0
        %v2336 = vsel %vm358, %v2245, 0
        %v2339 = vsel %vm358, %v2246, 0
        %v2342 = vsel %vm358, %v2247, 0
        %v2345 = vsel %vm358, %v2248, 0
        %v2348 = vsel %vm358, %v2249, 0
        %v2351 = vsel %vm358, %v2250, 0
        %v2354 = vsel %vm358, %v2251, 0
        %v2357 = vsel %vm358, %v2252, 0
        %v2360 = vsel %vm358, %v2253, 0
        %v2363 = vsel %vm358, %v2254, 0
        %v2366 = vsel %vm358, %v2255, 0
        %v2369 = vsel %vm358, %v2256, 0
        %v2372 = vsel %vm358, %v2257, 0
        %v2375 = vsel %vm358, %v2258, 0
        %v2378 = vsel %vm358, %v2259, 0
        %v2381 = vsel %vm358, %v2260, 0
        %v2384 = vsel %vm358, %v2261, 0
        %v2387 = vsel %vm358, %v2262, 0
        %v2390 = vsel %vm358, %v2263, 0
        %v2393 = vsel %vm358, %v2264, 0
        %v2396 = vsel %vm358, %v2265, 0
        %v2399 = vsel %vm358, %v2266, 0
        %v2402 = vsel %vm358, %v2267, 0
        %v2405 = vsel %vm358, %v2268, 0
        %v2408 = vsel %vm358, %v2269, 0
        %v2411 = vsel %vm358, %v2270, 0
        %v2414 = vsel %vm358, %v2271, 0
        %v2417 = vsel %vm358, %v2272, 0
        %v2420 = vsel %vm358, %v2273, 0
        %v2423 = vsel %vm358, %v2274, 0
        %v2426 = vsel %vm358, %v2275, 0
        %v2429 = vsel %vm358, %v2276, 0
        %v2432 = vsel %vm358, %v2277, 0
        %v2435 = vsel %vm358, %v2278, 0
        %v2438 = vsel %vm358, %v2279, 0
        %v2441 = vsel %vm358, %v2280, 0
        %v2444 = vsel %vm358, %v2281, 0
        %v2447 = vsel %vm358, %v2282, 0
        %v2450 = vsel %vm358, %v2283, 0
        %v2453 = vsel %vm358, %v2284, 0
        %v2456 = vsel %vm358, %v2285, 0
        %v2459 = vsel %vm358, %v2286, 0
        %v2462 = vsel %vm358, %v2287, 0
        %v2465 = vsel %vm358, %v2288, 0
        %v2468 = vsel %vm358, %v2289, 0
        %v2471 = vsel %vm358, %v2290, 0
        %v2474 = vsel %vm358, %v2291, 0
        %v2477 = vsel %vm358, %v2292, 0
        %v2480 = vsel %vm358, %v2293, 0
        %v2483 = vsel %vm358, %v2294, 0
        %v2486 = vsel %vm358, %v2295, 0
        %v2489 = vsel %vm358, %v2296, 0
        %v2492 = vsel %vm551, %v2298, 0
        %2494 = vmatprep.subr.mxu0 0.0
        %2495 = vmatpush1.msra.mxu0 0.0
        %2496 = vmatprep.subr.mxu0 0.0
        %2497 = vmatpush1.msra.mxu0 0.0
        %2498 = vmatprep.subr.mxu0 0.0
        %2499 = vmatpush1.msra.mxu0 0.0
        %2500 = vmatprep.subr.mxu0 0.0
        %2501 = vmatpush1.msra.mxu0 0.0
        %2502 = vmatprep.subr.mxu0 0.0
        %2503 = vmatpush1.msra.mxu0 0.0
        %2504 = vmatprep.subr.mxu0 0.0
        %2505 = vmatpush1.msra.mxu0 0.0
        %2506 = vmatprep.subr.mxu0 0.0
        %2507 = vmatpush1.msra.mxu0 0.0
        %2508 = vmatprep.subr.mxu0 0.0
        %2509 = vmatpush1.msra.mxu0 0.0
        %2510 = vmatprep.subr.mxu0 0.0
        %2511 = vmatpush1.msra.mxu0 0.0
        %2512 = vmatprep.subr.mxu0 0.0
        %2513 = vmatpush1.msra.mxu0 0.0
        %2514 = vmatprep.subr.mxu0 0.0
        %2515 = vmatpush1.msra.mxu0 0.0
        %2516 = vmatprep.subr.mxu0 0.0
        %2517 = vmatpush1.msra.mxu0 0.0
        %2518 = vmatprep.subr.mxu0 0.0
        %2519 = vmatpush1.msra.mxu0 0.0
        %2520 = vmatprep.subr.mxu0 0.0
        %2521 = vmatpush1.msra.mxu0 0.0
        %2522 = vmatprep.subr.mxu0 0.0
        %2523 = vmatpush1.msra.mxu0 0.0
        %2524 = vmatprep.subr.mxu0 0.0
        %2525 = vmatpush1.msra.mxu0 %v2492
        %2526 = vmatprep.subr.mxu0 0.0
        %2527 = vmatpush2.msra.mxu0 0.0
        %2528 = vmatprep.subr.mxu0 0.0
        %2529 = vmatpush2.msra.mxu0 0.0
        %2530 = vmatprep.subr.mxu0 0.0
        %2531 = vmatpush2.msra.mxu0 0.0
        %2532 = vmatprep.subr.mxu0 0.0
        %2533 = vmatpush2.msra.mxu0 0.0
        %2534 = vmatprep.subr.mxu0 0.0
        %2535 = vmatpush2.msra.mxu0 0.0
        %2536 = vmatprep.subr.mxu0 0.0
        %2537 = vmatpush2.msra.mxu0 0.0
        %2538 = vmatprep.subr.mxu0 0.0
        %2539 = vmatpush2.msra.mxu0 0.0
        %2540 = vmatprep.subr.mxu0 0.0
        %2541 = vmatpush2.msra.mxu0 0.0
        %2542 = vmatprep.subr.mxu0 0.0
        %2543 = vmatpush2.msra.mxu0 0.0
        %2544 = vmatprep.subr.mxu0 0.0
        %2545 = vmatpush2.msra.mxu0 0.0
        %2546 = vmatprep.subr.mxu0 0.0
        %2547 = vmatpush2.msra.mxu0 0.0
        %2548 = vmatprep.subr.mxu0 0.0
        %2549 = vmatpush2.msra.mxu0 0.0
        %2550 = vmatprep.subr.mxu0 0.0
        %2551 = vmatpush2.msra.mxu0 0.0
        %2552 = vmatprep.subr.mxu0 0.0
        %2553 = vmatpush2.msra.mxu0 0.0
        %2554 = vmatprep.subr.mxu0 0.0
        %2555 = vmatpush2.msra.mxu0 0.0
        %2556 = vmatprep.subr.mxu0 0.0
        %2557 = vmatpush2.msra.mxu0 0.0
        %2558 = vmatprep.mubr.f32.mxu0 0.0
        %2559 = vmatmul.mubr.f32.gmra.mxu0 %v2300
        %v2560 = vpop.f32.mrf.mxu0
        %v2561 = vadd.f32 0.0, %v2560
        %v2562 = vpop.f32.mrf.mxu0
        %2563 = vmatprep.mubr.f32.mxu0 0.0
        %2564 = vmatmul.mubr.f32.gmra.mxu0 %v2303
        %v2565 = vpop.f32.mrf.mxu0
        %v2566 = vadd.f32 0.0, %v2565
        %v2567 = vpop.f32.mrf.mxu0
        %2568 = vmatprep.mubr.f32.mxu0 0.0
        %2569 = vmatmul.mubr.f32.gmra.mxu0 %v2306
        %v2570 = vpop.f32.mrf.mxu0
        %v2571 = vadd.f32 0.0, %v2570
        %v2572 = vpop.f32.mrf.mxu0
        %2573 = vmatprep.mubr.f32.mxu0 0.0
        %2574 = vmatmul.mubr.f32.gmra.mxu0 %v2309
        %v2575 = vpop.f32.mrf.mxu0
        %v2576 = vadd.f32 0.0, %v2575
        %v2577 = vpop.f32.mrf.mxu0
        %2578 = vmatprep.mubr.f32.mxu0 0.0
        %2579 = vmatmul.mubr.f32.gmra.mxu0 %v2312
        %v2580 = vpop.f32.mrf.mxu0
        %v2581 = vadd.f32 0.0, %v2580
        %v2582 = vpop.f32.mrf.mxu0
        %2583 = vmatprep.mubr.f32.mxu0 0.0
        %2584 = vmatmul.mubr.f32.gmra.mxu0 %v2315
        %v2585 = vpop.f32.mrf.mxu0
        %v2586 = vadd.f32 0.0, %v2585
        %v2587 = vpop.f32.mrf.mxu0
        %2588 = vmatprep.mubr.f32.mxu0 0.0
        %2589 = vmatmul.mubr.f32.gmra.mxu0 %v2318
        %v2590 = vpop.f32.mrf.mxu0
        %v2591 = vadd.f32 0.0, %v2590
        %v2592 = vpop.f32.mrf.mxu0
        %2593 = vmatprep.mubr.f32.mxu0 0.0
        %2594 = vmatmul.mubr.f32.gmra.mxu0 %v2321
        %v2595 = vpop.f32.mrf.mxu0
        %v2596 = vadd.f32 0.0, %v2595
        %v2597 = vpop.f32.mrf.mxu0
        %2598 = vmatprep.mubr.f32.mxu0 0.0
        %2599 = vmatmul.mubr.f32.gmra.mxu0 %v2324
        %v2600 = vpop.f32.mrf.mxu0
        %v2601 = vadd.f32 0.0, %v2600
        %v2602 = vpop.f32.mrf.mxu0
        %2603 = vmatprep.mubr.f32.mxu0 0.0
        %2604 = vmatmul.mubr.f32.gmra.mxu0 %v2327
        %v2605 = vpop.f32.mrf.mxu0
        %v2606 = vadd.f32 0.0, %v2605
        %v2607 = vpop.f32.mrf.mxu0
        %2608 = vmatprep.mubr.f32.mxu0 0.0
        %2609 = vmatmul.mubr.f32.gmra.mxu0 %v2330
        %v2610 = vpop.f32.mrf.mxu0
        %v2611 = vadd.f32 0.0, %v2610
        %v2612 = vpop.f32.mrf.mxu0
        %2613 = vmatprep.mubr.f32.mxu0 0.0
        %2614 = vmatmul.mubr.f32.gmra.mxu0 %v2333
        %v2615 = vpop.f32.mrf.mxu0
        %v2616 = vadd.f32 0.0, %v2615
        %v2617 = vpop.f32.mrf.mxu0
        %2618 = vmatprep.mubr.f32.mxu0 0.0
        %2619 = vmatmul.mubr.f32.gmra.mxu0 %v2336
        %v2620 = vpop.f32.mrf.mxu0
        %v2621 = vadd.f32 0.0, %v2620
        %v2622 = vpop.f32.mrf.mxu0
        %2623 = vmatprep.mubr.f32.mxu0 0.0
        %2624 = vmatmul.mubr.f32.gmra.mxu0 %v2339
        %v2625 = vpop.f32.mrf.mxu0
        %v2626 = vadd.f32 0.0, %v2625
        %v2627 = vpop.f32.mrf.mxu0
        %2628 = vmatprep.mubr.f32.mxu0 0.0
        %2629 = vmatmul.mubr.f32.gmra.mxu0 %v2342
        %v2630 = vpop.f32.mrf.mxu0
        %v2631 = vadd.f32 0.0, %v2630
        %v2632 = vpop.f32.mrf.mxu0
        %2633 = vmatprep.mubr.f32.mxu0 0.0
        %2634 = vmatmul.mubr.f32.gmra.mxu0 %v2345
        %v2635 = vpop.f32.mrf.mxu0
        %v2636 = vadd.f32 0.0, %v2635
        %v2637 = vpop.f32.mrf.mxu0
        %2638 = vmatprep.mubr.f32.mxu0 0.0
        %2639 = vmatmul.mubr.f32.gmra.mxu0 %v2348
        %v2640 = vpop.f32.mrf.mxu0
        %v2641 = vadd.f32 0.0, %v2640
        %v2642 = vpop.f32.mrf.mxu0
        %2643 = vmatprep.mubr.f32.mxu0 0.0
        %2644 = vmatmul.mubr.f32.gmra.mxu0 %v2351
        %v2645 = vpop.f32.mrf.mxu0
        %v2646 = vadd.f32 0.0, %v2645
        %v2647 = vpop.f32.mrf.mxu0
        %2648 = vmatprep.mubr.f32.mxu0 0.0
        %2649 = vmatmul.mubr.f32.gmra.mxu0 %v2354
        %v2650 = vpop.f32.mrf.mxu0
        %v2651 = vadd.f32 0.0, %v2650
        %v2652 = vpop.f32.mrf.mxu0
        %2653 = vmatprep.mubr.f32.mxu0 0.0
        %2654 = vmatmul.mubr.f32.gmra.mxu0 %v2357
        %v2655 = vpop.f32.mrf.mxu0
        %v2656 = vadd.f32 0.0, %v2655
        %v2657 = vpop.f32.mrf.mxu0
        %2658 = vmatprep.mubr.f32.mxu0 0.0
        %2659 = vmatmul.mubr.f32.gmra.mxu0 %v2360
        %v2660 = vpop.f32.mrf.mxu0
        %v2661 = vadd.f32 0.0, %v2660
        %v2662 = vpop.f32.mrf.mxu0
        %2663 = vmatprep.mubr.f32.mxu0 0.0
        %2664 = vmatmul.mubr.f32.gmra.mxu0 %v2363
        %v2665 = vpop.f32.mrf.mxu0
        %v2666 = vadd.f32 0.0, %v2665
        %v2667 = vpop.f32.mrf.mxu0
        %2668 = vmatprep.mubr.f32.mxu0 0.0
        %2669 = vmatmul.mubr.f32.gmra.mxu0 %v2366
        %v2670 = vpop.f32.mrf.mxu0
        %v2671 = vadd.f32 0.0, %v2670
        %v2672 = vpop.f32.mrf.mxu0
        %2673 = vmatprep.mubr.f32.mxu0 0.0
        %2674 = vmatmul.mubr.f32.gmra.mxu0 %v2369
        %v2675 = vpop.f32.mrf.mxu0
        %v2676 = vadd.f32 0.0, %v2675
        %v2677 = vpop.f32.mrf.mxu0
        %2678 = vmatprep.mubr.f32.mxu0 0.0
        %2679 = vmatmul.mubr.f32.gmra.mxu0 %v2372
        %v2680 = vpop.f32.mrf.mxu0
        %v2681 = vadd.f32 0.0, %v2680
        %v2682 = vpop.f32.mrf.mxu0
        %2683 = vmatprep.mubr.f32.mxu0 0.0
        %2684 = vmatmul.mubr.f32.gmra.mxu0 %v2375
        %v2685 = vpop.f32.mrf.mxu0
        %v2686 = vadd.f32 0.0, %v2685
        %v2687 = vpop.f32.mrf.mxu0
        %2688 = vmatprep.mubr.f32.mxu0 0.0
        %2689 = vmatmul.mubr.f32.gmra.mxu0 %v2378
        %v2690 = vpop.f32.mrf.mxu0
        %v2691 = vadd.f32 0.0, %v2690
        %v2692 = vpop.f32.mrf.mxu0
        %2693 = vmatprep.mubr.f32.mxu0 0.0
        %2694 = vmatmul.mubr.f32.gmra.mxu0 %v2381
        %v2695 = vpop.f32.mrf.mxu0
        %v2696 = vadd.f32 0.0, %v2695
        %v2697 = vpop.f32.mrf.mxu0
        %2698 = vmatprep.mubr.f32.mxu0 0.0
        %2699 = vmatmul.mubr.f32.gmra.mxu0 %v2384
        %v2700 = vpop.f32.mrf.mxu0
        %v2701 = vadd.f32 0.0, %v2700
        %v2702 = vpop.f32.mrf.mxu0
        %2703 = vmatprep.mubr.f32.mxu0 0.0
        %2704 = vmatmul.mubr.f32.gmra.mxu0 %v2387
        %v2705 = vpop.f32.mrf.mxu0
        %v2706 = vadd.f32 0.0, %v2705
        %v2707 = vpop.f32.mrf.mxu0
        %2708 = vmatprep.mubr.f32.mxu0 0.0
        %2709 = vmatmul.mubr.f32.gmra.mxu0 %v2390
        %v2710 = vpop.f32.mrf.mxu0
        %v2711 = vadd.f32 0.0, %v2710
        %v2712 = vpop.f32.mrf.mxu0
        %2713 = vmatprep.mubr.f32.mxu0 0.0
        %2714 = vmatmul.mubr.f32.gmra.mxu0 %v2393
        %v2715 = vpop.f32.mrf.mxu0
        %v2716 = vadd.f32 0.0, %v2715
        %v2717 = vpop.f32.mrf.mxu0
        %2718 = vmatprep.mubr.f32.mxu0 0.0
        %2719 = vmatmul.mubr.f32.gmra.mxu0 %v2396
        %v2720 = vpop.f32.mrf.mxu0
        %v2721 = vadd.f32 0.0, %v2720
        %v2722 = vpop.f32.mrf.mxu0
        %2723 = vmatprep.mubr.f32.mxu0 0.0
        %2724 = vmatmul.mubr.f32.gmra.mxu0 %v2399
        %v2725 = vpop.f32.mrf.mxu0
        %v2726 = vadd.f32 0.0, %v2725
        %v2727 = vpop.f32.mrf.mxu0
        %2728 = vmatprep.mubr.f32.mxu0 0.0
        %2729 = vmatmul.mubr.f32.gmra.mxu0 %v2402
        %v2730 = vpop.f32.mrf.mxu0
        %v2731 = vadd.f32 0.0, %v2730
        %v2732 = vpop.f32.mrf.mxu0
        %2733 = vmatprep.mubr.f32.mxu0 0.0
        %2734 = vmatmul.mubr.f32.gmra.mxu0 %v2405
        %v2735 = vpop.f32.mrf.mxu0
        %v2736 = vadd.f32 0.0, %v2735
        %v2737 = vpop.f32.mrf.mxu0
        %2738 = vmatprep.mubr.f32.mxu0 0.0
        %2739 = vmatmul.mubr.f32.gmra.mxu0 %v2408
        %v2740 = vpop.f32.mrf.mxu0
        %v2741 = vadd.f32 0.0, %v2740
        %v2742 = vpop.f32.mrf.mxu0
        %2743 = vmatprep.mubr.f32.mxu0 0.0
        %2744 = vmatmul.mubr.f32.gmra.mxu0 %v2411
        %v2745 = vpop.f32.mrf.mxu0
        %v2746 = vadd.f32 0.0, %v2745
        %v2747 = vpop.f32.mrf.mxu0
        %2748 = vmatprep.mubr.f32.mxu0 0.0
        %2749 = vmatmul.mubr.f32.gmra.mxu0 %v2414
        %v2750 = vpop.f32.mrf.mxu0
        %v2751 = vadd.f32 0.0, %v2750
        %v2752 = vpop.f32.mrf.mxu0
        %2753 = vmatprep.mubr.f32.mxu0 0.0
        %2754 = vmatmul.mubr.f32.gmra.mxu0 %v2417
        %v2755 = vpop.f32.mrf.mxu0
        %v2756 = vadd.f32 0.0, %v2755
        %v2757 = vpop.f32.mrf.mxu0
        %2758 = vmatprep.mubr.f32.mxu0 0.0
        %2759 = vmatmul.mubr.f32.gmra.mxu0 %v2420
        %v2760 = vpop.f32.mrf.mxu0
        %v2761 = vadd.f32 0.0, %v2760
        %v2762 = vpop.f32.mrf.mxu0
        %2763 = vmatprep.mubr.f32.mxu0 0.0
        %2764 = vmatmul.mubr.f32.gmra.mxu0 %v2423
        %v2765 = vpop.f32.mrf.mxu0
        %v2766 = vadd.f32 0.0, %v2765
        %v2767 = vpop.f32.mrf.mxu0
        %2768 = vmatprep.mubr.f32.mxu0 0.0
        %2769 = vmatmul.mubr.f32.gmra.mxu0 %v2426
        %v2770 = vpop.f32.mrf.mxu0
        %v2771 = vadd.f32 0.0, %v2770
        %v2772 = vpop.f32.mrf.mxu0
        %2773 = vmatprep.mubr.f32.mxu0 0.0
        %2774 = vmatmul.mubr.f32.gmra.mxu0 %v2429
        %v2775 = vpop.f32.mrf.mxu0
        %v2776 = vadd.f32 0.0, %v2775
        %v2777 = vpop.f32.mrf.mxu0
        %2778 = vmatprep.mubr.f32.mxu0 0.0
        %2779 = vmatmul.mubr.f32.gmra.mxu0 %v2432
        %v2780 = vpop.f32.mrf.mxu0
        %v2781 = vadd.f32 0.0, %v2780
        %v2782 = vpop.f32.mrf.mxu0
        %2783 = vmatprep.mubr.f32.mxu0 0.0
        %2784 = vmatmul.mubr.f32.gmra.mxu0 %v2435
        %v2785 = vpop.f32.mrf.mxu0
        %v2786 = vadd.f32 0.0, %v2785
        %v2787 = vpop.f32.mrf.mxu0
        %2788 = vmatprep.mubr.f32.mxu0 0.0
        %2789 = vmatmul.mubr.f32.gmra.mxu0 %v2438
        %v2790 = vpop.f32.mrf.mxu0
        %v2791 = vadd.f32 0.0, %v2790
        %v2792 = vpop.f32.mrf.mxu0
        %2793 = vmatprep.mubr.f32.mxu0 0.0
        %2794 = vmatmul.mubr.f32.gmra.mxu0 %v2441
        %v2795 = vpop.f32.mrf.mxu0
        %v2796 = vadd.f32 0.0, %v2795
        %v2797 = vpop.f32.mrf.mxu0
        %2798 = vmatprep.mubr.f32.mxu0 0.0
        %2799 = vmatmul.mubr.f32.gmra.mxu0 %v2444
        %v2800 = vpop.f32.mrf.mxu0
        %v2801 = vadd.f32 0.0, %v2800
        %v2802 = vpop.f32.mrf.mxu0
        %2803 = vmatprep.mubr.f32.mxu0 0.0
        %2804 = vmatmul.mubr.f32.gmra.mxu0 %v2447
        %v2805 = vpop.f32.mrf.mxu0
        %v2806 = vadd.f32 0.0, %v2805
        %v2807 = vpop.f32.mrf.mxu0
        %2808 = vmatprep.mubr.f32.mxu0 0.0
        %2809 = vmatmul.mubr.f32.gmra.mxu0 %v2450
        %v2810 = vpop.f32.mrf.mxu0
        %v2811 = vadd.f32 0.0, %v2810
        %v2812 = vpop.f32.mrf.mxu0
        %2813 = vmatprep.mubr.f32.mxu0 0.0
        %2814 = vmatmul.mubr.f32.gmra.mxu0 %v2453
        %v2815 = vpop.f32.mrf.mxu0
        %v2816 = vadd.f32 0.0, %v2815
        %v2817 = vpop.f32.mrf.mxu0
        %2818 = vmatprep.mubr.f32.mxu0 0.0
        %2819 = vmatmul.mubr.f32.gmra.mxu0 %v2456
        %v2820 = vpop.f32.mrf.mxu0
        %v2821 = vadd.f32 0.0, %v2820
        %v2822 = vpop.f32.mrf.mxu0
        %2823 = vmatprep.mubr.f32.mxu0 0.0
        %2824 = vmatmul.mubr.f32.gmra.mxu0 %v2459
        %v2825 = vpop.f32.mrf.mxu0
        %v2826 = vadd.f32 0.0, %v2825
        %v2827 = vpop.f32.mrf.mxu0
        %2828 = vmatprep.mubr.f32.mxu0 0.0
        %2829 = vmatmul.mubr.f32.gmra.mxu0 %v2462
        %v2830 = vpop.f32.mrf.mxu0
        %v2831 = vadd.f32 0.0, %v2830
        %v2832 = vpop.f32.mrf.mxu0
        %2833 = vmatprep.mubr.f32.mxu0 0.0
        %2834 = vmatmul.mubr.f32.gmra.mxu0 %v2465
        %v2835 = vpop.f32.mrf.mxu0
        %v2836 = vadd.f32 0.0, %v2835
        %v2837 = vpop.f32.mrf.mxu0
        %2838 = vmatprep.mubr.f32.mxu0 0.0
        %2839 = vmatmul.mubr.f32.gmra.mxu0 %v2468
        %v2840 = vpop.f32.mrf.mxu0
        %v2841 = vadd.f32 0.0, %v2840
        %v2842 = vpop.f32.mrf.mxu0
        %2843 = vmatprep.mubr.f32.mxu0 0.0
        %2844 = vmatmul.mubr.f32.gmra.mxu0 %v2471
        %v2845 = vpop.f32.mrf.mxu0
        %v2846 = vadd.f32 0.0, %v2845
        %v2847 = vpop.f32.mrf.mxu0
        %2848 = vmatprep.mubr.f32.mxu0 0.0
        %2849 = vmatmul.mubr.f32.gmra.mxu0 %v2474
        %v2850 = vpop.f32.mrf.mxu0
        %v2851 = vadd.f32 0.0, %v2850
        %v2852 = vpop.f32.mrf.mxu0
        %2853 = vmatprep.mubr.f32.mxu0 0.0
        %2854 = vmatmul.mubr.f32.gmra.mxu0 %v2477
        %v2855 = vpop.f32.mrf.mxu0
        %v2856 = vadd.f32 0.0, %v2855
        %v2857 = vpop.f32.mrf.mxu0
        %2858 = vmatprep.mubr.f32.mxu0 0.0
        %2859 = vmatmul.mubr.f32.gmra.mxu0 %v2480
        %v2860 = vpop.f32.mrf.mxu0
        %v2861 = vadd.f32 0.0, %v2860
        %v2862 = vpop.f32.mrf.mxu0
        %2863 = vmatprep.mubr.f32.mxu0 0.0
        %2864 = vmatmul.mubr.f32.gmra.mxu0 %v2483
        %v2865 = vpop.f32.mrf.mxu0
        %v2866 = vadd.f32 0.0, %v2865
        %v2867 = vpop.f32.mrf.mxu0
        %2868 = vmatprep.mubr.f32.mxu0 0.0
        %2869 = vmatmul.mubr.f32.gmra.mxu0 %v2486
        %v2870 = vpop.f32.mrf.mxu0
        %v2871 = vadd.f32 0.0, %v2870
        %v2872 = vpop.f32.mrf.mxu0
        %2873 = vmatprep.mubr.f32.mxu0 0.0
        %2874 = vmatmul.mubr.f32.gmra.mxu0 %v2489
        %v2875 = vpop.f32.mrf.mxu0
        %v2876 = vadd.f32 0.0, %v2875
        %v2877 = vpop.f32.mrf.mxu0
        %2878 = vdwg.mxu0
        %v2879 = vadd.f32 %v2166, %v2561
        %v2880 = vadd.f32 %v2167, %v2566
        %v2881 = vadd.f32 %v2168, %v2571
        %v2882 = vadd.f32 %v2169, %v2576
        %v2883 = vadd.f32 %v2170, %v2581
        %v2884 = vadd.f32 %v2171, %v2586
        %v2885 = vadd.f32 %v2172, %v2591
        %v2886 = vadd.f32 %v2173, %v2596
        %v2887 = vadd.f32 %v2174, %v2601
        %v2888 = vadd.f32 %v2175, %v2606
        %v2889 = vadd.f32 %v2176, %v2611
        %v2890 = vadd.f32 %v2177, %v2616
        %v2891 = vadd.f32 %v2178, %v2621
        %v2892 = vadd.f32 %v2179, %v2626
        %v2893 = vadd.f32 %v2180, %v2631
        %v2894 = vadd.f32 %v2181, %v2636
        %v2895 = vadd.f32 %v2182, %v2641
        %v2896 = vadd.f32 %v2183, %v2646
        %v2897 = vadd.f32 %v2184, %v2651
        %v2898 = vadd.f32 %v2185, %v2656
        %v2899 = vadd.f32 %v2186, %v2661
        %v2900 = vadd.f32 %v2187, %v2666
        %v2901 = vadd.f32 %v2188, %v2671
        %v2902 = vadd.f32 %v2189, %v2676
        %v2903 = vadd.f32 %v2190, %v2681
        %v2904 = vadd.f32 %v2191, %v2686
        %v2905 = vadd.f32 %v2192, %v2691
        %v2906 = vadd.f32 %v2193, %v2696
        %v2907 = vadd.f32 %v2194, %v2701
        %v2908 = vadd.f32 %v2195, %v2706
        %v2909 = vadd.f32 %v2196, %v2711
        %v2910 = vadd.f32 %v2197, %v2716
        %v2911 = vadd.f32 %v2198, %v2721
        %v2912 = vadd.f32 %v2199, %v2726
        %v2913 = vadd.f32 %v2200, %v2731
        %v2914 = vadd.f32 %v2201, %v2736
        %v2915 = vadd.f32 %v2202, %v2741
        %v2916 = vadd.f32 %v2203, %v2746
        %v2917 = vadd.f32 %v2204, %v2751
        %v2918 = vadd.f32 %v2205, %v2756
        %v2919 = vadd.f32 %v2206, %v2761
        %v2920 = vadd.f32 %v2207, %v2766
        %v2921 = vadd.f32 %v2208, %v2771
        %v2922 = vadd.f32 %v2209, %v2776
        %v2923 = vadd.f32 %v2210, %v2781
        %v2924 = vadd.f32 %v2211, %v2786
        %v2925 = vadd.f32 %v2212, %v2791
        %v2926 = vadd.f32 %v2213, %v2796
        %v2927 = vadd.f32 %v2214, %v2801
        %v2928 = vadd.f32 %v2215, %v2806
        %v2929 = vadd.f32 %v2216, %v2811
        %v2930 = vadd.f32 %v2217, %v2816
        %v2931 = vadd.f32 %v2218, %v2821
        %v2932 = vadd.f32 %v2219, %v2826
        %v2933 = vadd.f32 %v2220, %v2831
        %v2934 = vadd.f32 %v2221, %v2836
        %v2935 = vadd.f32 %v2222, %v2841
        %v2936 = vadd.f32 %v2223, %v2846
        %v2937 = vadd.f32 %v2224, %v2851
        %v2938 = vadd.f32 %v2225, %v2856
        %v2939 = vadd.f32 %v2226, %v2861
        %v2940 = vadd.f32 %v2227, %v2866
        %v2941 = vadd.f32 %v2228, %v2871
        %v2942 = vadd.f32 %v2229, %v2876
        %v2943 = vld [vmem:[%s2232 + $0x1] sm:$0xff]
        %v2944 = vld [vmem:[%s2232 + $0x9] sm:$0xff]
        %v2945 = vld [vmem:[%s2232 + $0x11] sm:$0xff]
        %v2946 = vld [vmem:[%s2232 + $0x19] sm:$0xff]
        %v2947 = vld [vmem:[%s2232 + $0x29] sm:$0xff]
        %v2948 = vld [vmem:[%s2232 + $0x31] sm:$0xff]
        %v2949 = vld [vmem:[%s2232 + $0x39] sm:$0xff]
        %v2950 = vld [vmem:[%s2232 + $0x41] sm:$0xff]
        %v2951 = vld [vmem:[%s2232 + $0x51] sm:$0xff]
        %v2952 = vld [vmem:[%s2232 + $0x59] sm:$0xff]
        %v2953 = vld [vmem:[%s2232 + $0x61] sm:$0xff]
        %v2954 = vld [vmem:[%s2232 + $0x69] sm:$0xff]
        %v2955 = vld [vmem:[%s2232 + $0x79] sm:$0xff]
        %v2956 = vld [vmem:[%s2232 + $0x81] sm:$0xff]
        %v2957 = vld [vmem:[%s2232 + $0x89] sm:$0xff]
        %v2958 = vld [vmem:[%s2232 + $0x91] sm:$0xff]
        %v2959 = vld [vmem:[%s2232 + $0xa1] sm:$0xff]
        %v2960 = vld [vmem:[%s2232 + $0xa9] sm:$0xff]
        %v2961 = vld [vmem:[%s2232 + $0xb1] sm:$0xff]
        %v2962 = vld [vmem:[%s2232 + $0xb9] sm:$0xff]
        %v2963 = vld [vmem:[%s2232 + $0xc9] sm:$0xff]
        %v2964 = vld [vmem:[%s2232 + $0xd1] sm:$0xff]
        %v2965 = vld [vmem:[%s2232 + $0xd9] sm:$0xff]
        %v2966 = vld [vmem:[%s2232 + $0xe1] sm:$0xff]
        %v2967 = vld [vmem:[%s2232 + $0xf1] sm:$0xff]
        %v2968 = vld [vmem:[%s2232 + $0xf9] sm:$0xff]
        %v2969 = vld [vmem:[%s2232 + $0x101] sm:$0xff]
        %v2970 = vld [vmem:[%s2232 + $0x109] sm:$0xff]
        %v2971 = vld [vmem:[%s2232 + $0x119] sm:$0xff]
        %v2972 = vld [vmem:[%s2232 + $0x121] sm:$0xff]
        %v2973 = vld [vmem:[%s2232 + $0x129] sm:$0xff]
        %v2974 = vld [vmem:[%s2232 + $0x131] sm:$0xff]
        %v2975 = vld [vmem:[%s2232 + $0x141] sm:$0xff]
        %v2976 = vld [vmem:[%s2232 + $0x149] sm:$0xff]
        %v2977 = vld [vmem:[%s2232 + $0x151] sm:$0xff]
        %v2978 = vld [vmem:[%s2232 + $0x159] sm:$0xff]
        %v2979 = vld [vmem:[%s2232 + $0x169] sm:$0xff]
        %v2980 = vld [vmem:[%s2232 + $0x171] sm:$0xff]
        %v2981 = vld [vmem:[%s2232 + $0x179] sm:$0xff]
        %v2982 = vld [vmem:[%s2232 + $0x181] sm:$0xff]
        %v2983 = vld [vmem:[%s2232 + $0x191] sm:$0xff]
        %v2984 = vld [vmem:[%s2232 + $0x199] sm:$0xff]
        %v2985 = vld [vmem:[%s2232 + $0x1a1] sm:$0xff]
        %v2986 = vld [vmem:[%s2232 + $0x1a9] sm:$0xff]
        %v2987 = vld [vmem:[%s2232 + $0x1b9] sm:$0xff]
        %v2988 = vld [vmem:[%s2232 + $0x1c1] sm:$0xff]
        %v2989 = vld [vmem:[%s2232 + $0x1c9] sm:$0xff]
        %v2990 = vld [vmem:[%s2232 + $0x1d1] sm:$0xff]
        %v2991 = vld [vmem:[%s2232 + $0x1e1] sm:$0xff]
        %v2992 = vld [vmem:[%s2232 + $0x1e9] sm:$0xff]
        %v2993 = vld [vmem:[%s2232 + $0x1f1] sm:$0xff]
        %v2994 = vld [vmem:[%s2232 + $0x1f9] sm:$0xff]
        %v2995 = vld [vmem:[%s2232 + $0x209] sm:$0xff]
        %v2996 = vld [vmem:[%s2232 + $0x211] sm:$0xff]
        %v2997 = vld [vmem:[%s2232 + $0x219] sm:$0xff]
        %v2998 = vld [vmem:[%s2232 + $0x221] sm:$0xff]
        %v2999 = vld [vmem:[%s2232 + $0x231] sm:$0xff]
        %v3000 = vld [vmem:[%s2232 + $0x239] sm:$0xff]
        %v3001 = vld [vmem:[%s2232 + $0x241] sm:$0xff]
        %v3002 = vld [vmem:[%s2232 + $0x249] sm:$0xff]
        %v3003 = vld [vmem:[%s2232 + $0x259] sm:$0xff]
        %v3004 = vld [vmem:[%s2232 + $0x261] sm:$0xff]
        %v3005 = vld [vmem:[%s2232 + $0x269] sm:$0xff]
        %v3006 = vld [vmem:[%s2232 + $0x271] sm:$0xff]
        %s3007 = scalar_lea.vmem %s219, 16
        %v3008 = vld [vmem:[%s3007] sm:$0x7]
        %v3010 = vsel %vm358, %v2943, 0
        %v3013 = vsel %vm358, %v2944, 0
        %v3016 = vsel %vm358, %v2945, 0
        %v3019 = vsel %vm358, %v2946, 0
        %v3022 = vsel %vm358, %v2947, 0
        %v3025 = vsel %vm358, %v2948, 0
        %v3028 = vsel %vm358, %v2949, 0
        %v3031 = vsel %vm358, %v2950, 0
        %v3034 = vsel %vm358, %v2951, 0
        %v3037 = vsel %vm358, %v2952, 0
        %v3040 = vsel %vm358, %v2953, 0
        %v3043 = vsel %vm358, %v2954, 0
        %v3046 = vsel %vm358, %v2955, 0
        %v3049 = vsel %vm358, %v2956, 0
        %v3052 = vsel %vm358, %v2957, 0
        %v3055 = vsel %vm358, %v2958, 0
        %v3058 = vsel %vm358, %v2959, 0
        %v3061 = vsel %vm358, %v2960, 0
        %v3064 = vsel %vm358, %v2961, 0
        %v3067 = vsel %vm358, %v2962, 0
        %v3070 = vsel %vm358, %v2963, 0
        %v3073 = vsel %vm358, %v2964, 0
        %v3076 = vsel %vm358, %v2965, 0
        %v3079 = vsel %vm358, %v2966, 0
        %v3082 = vsel %vm358, %v2967, 0
        %v3085 = vsel %vm358, %v2968, 0
        %v3088 = vsel %vm358, %v2969, 0
        %v3091 = vsel %vm358, %v2970, 0
        %v3094 = vsel %vm358, %v2971, 0
        %v3097 = vsel %vm358, %v2972, 0
        %v3100 = vsel %vm358, %v2973, 0
        %v3103 = vsel %vm358, %v2974, 0
        %v3106 = vsel %vm358, %v2975, 0
        %v3109 = vsel %vm358, %v2976, 0
        %v3112 = vsel %vm358, %v2977, 0
        %v3115 = vsel %vm358, %v2978, 0
        %v3118 = vsel %vm358, %v2979, 0
        %v3121 = vsel %vm358, %v2980, 0
        %v3124 = vsel %vm358, %v2981, 0
        %v3127 = vsel %vm358, %v2982, 0
        %v3130 = vsel %vm358, %v2983, 0
        %v3133 = vsel %vm358, %v2984, 0
        %v3136 = vsel %vm358, %v2985, 0
        %v3139 = vsel %vm358, %v2986, 0
        %v3142 = vsel %vm358, %v2987, 0
        %v3145 = vsel %vm358, %v2988, 0
        %v3148 = vsel %vm358, %v2989, 0
        %v3151 = vsel %vm358, %v2990, 0
        %v3154 = vsel %vm358, %v2991, 0
        %v3157 = vsel %vm358, %v2992, 0
        %v3160 = vsel %vm358, %v2993, 0
        %v3163 = vsel %vm358, %v2994, 0
        %v3166 = vsel %vm358, %v2995, 0
        %v3169 = vsel %vm358, %v2996, 0
        %v3172 = vsel %vm358, %v2997, 0
        %v3175 = vsel %vm358, %v2998, 0
        %v3178 = vsel %vm358, %v2999, 0
        %v3181 = vsel %vm358, %v3000, 0
        %v3184 = vsel %vm358, %v3001, 0
        %v3187 = vsel %vm358, %v3002, 0
        %v3190 = vsel %vm358, %v3003, 0
        %v3193 = vsel %vm358, %v3004, 0
        %v3196 = vsel %vm358, %v3005, 0
        %v3199 = vsel %vm358, %v3006, 0
        %v3202 = vsel %vm551, %v3008, 0
        %3204 = vmatprep.subr.mxu0 0.0
        %3205 = vmatpush1.msra.mxu0 0.0
        %3206 = vmatprep.subr.mxu0 0.0
        %3207 = vmatpush1.msra.mxu0 0.0
        %3208 = vmatprep.subr.mxu0 0.0
        %3209 = vmatpush1.msra.mxu0 0.0
        %3210 = vmatprep.subr.mxu0 0.0
        %3211 = vmatpush1.msra.mxu0 0.0
        %3212 = vmatprep.subr.mxu0 0.0
        %3213 = vmatpush1.msra.mxu0 0.0
        %3214 = vmatprep.subr.mxu0 0.0
        %3215 = vmatpush1.msra.mxu0 0.0
        %3216 = vmatprep.subr.mxu0 0.0
        %3217 = vmatpush1.msra.mxu0 0.0
        %3218 = vmatprep.subr.mxu0 0.0
        %3219 = vmatpush1.msra.mxu0 0.0
        %3220 = vmatprep.subr.mxu0 0.0
        %3221 = vmatpush1.msra.mxu0 0.0
        %3222 = vmatprep.subr.mxu0 0.0
        %3223 = vmatpush1.msra.mxu0 0.0
        %3224 = vmatprep.subr.mxu0 0.0
        %3225 = vmatpush1.msra.mxu0 0.0
        %3226 = vmatprep.subr.mxu0 0.0
        %3227 = vmatpush1.msra.mxu0 0.0
        %3228 = vmatprep.subr.mxu0 0.0
        %3229 = vmatpush1.msra.mxu0 0.0
        %3230 = vmatprep.subr.mxu0 0.0
        %3231 = vmatpush1.msra.mxu0 0.0
        %3232 = vmatprep.subr.mxu0 0.0
        %3233 = vmatpush1.msra.mxu0 0.0
        %3234 = vmatprep.subr.mxu0 0.0
        %3235 = vmatpush1.msra.mxu0 %v3202
        %3236 = vmatprep.subr.mxu0 0.0
        %3237 = vmatpush2.msra.mxu0 0.0
        %3238 = vmatprep.subr.mxu0 0.0
        %3239 = vmatpush2.msra.mxu0 0.0
        %3240 = vmatprep.subr.mxu0 0.0
        %3241 = vmatpush2.msra.mxu0 0.0
        %3242 = vmatprep.subr.mxu0 0.0
        %3243 = vmatpush2.msra.mxu0 0.0
        %3244 = vmatprep.subr.mxu0 0.0
        %3245 = vmatpush2.msra.mxu0 0.0
        %3246 = vmatprep.subr.mxu0 0.0
        %3247 = vmatpush2.msra.mxu0 0.0
        %3248 = vmatprep.subr.mxu0 0.0
        %3249 = vmatpush2.msra.mxu0 0.0
        %3250 = vmatprep.subr.mxu0 0.0
        %3251 = vmatpush2.msra.mxu0 0.0
        %3252 = vmatprep.subr.mxu0 0.0
        %3253 = vmatpush2.msra.mxu0 0.0
        %3254 = vmatprep.subr.mxu0 0.0
        %3255 = vmatpush2.msra.mxu0 0.0
        %3256 = vmatprep.subr.mxu0 0.0
        %3257 = vmatpush2.msra.mxu0 0.0
        %3258 = vmatprep.subr.mxu0 0.0
        %3259 = vmatpush2.msra.mxu0 0.0
        %3260 = vmatprep.subr.mxu0 0.0
        %3261 = vmatpush2.msra.mxu0 0.0
        %3262 = vmatprep.subr.mxu0 0.0
        %3263 = vmatpush2.msra.mxu0 0.0
        %3264 = vmatprep.subr.mxu0 0.0
        %3265 = vmatpush2.msra.mxu0 0.0
        %3266 = vmatprep.subr.mxu0 0.0
        %3267 = vmatpush2.msra.mxu0 0.0
        %3268 = vmatprep.mubr.f32.mxu0 0.0
        %3269 = vmatmul.mubr.f32.gmra.mxu0 %v3010
        %v3270 = vpop.f32.mrf.mxu0
        %v3271 = vadd.f32 0.0, %v3270
        %v3272 = vpop.f32.mrf.mxu0
        %3273 = vmatprep.mubr.f32.mxu0 0.0
        %3274 = vmatmul.mubr.f32.gmra.mxu0 %v3013
        %v3275 = vpop.f32.mrf.mxu0
        %v3276 = vadd.f32 0.0, %v3275
        %v3277 = vpop.f32.mrf.mxu0
        %3278 = vmatprep.mubr.f32.mxu0 0.0
        %3279 = vmatmul.mubr.f32.gmra.mxu0 %v3016
        %v3280 = vpop.f32.mrf.mxu0
        %v3281 = vadd.f32 0.0, %v3280
        %v3282 = vpop.f32.mrf.mxu0
        %3283 = vmatprep.mubr.f32.mxu0 0.0
        %3284 = vmatmul.mubr.f32.gmra.mxu0 %v3019
        %v3285 = vpop.f32.mrf.mxu0
        %v3286 = vadd.f32 0.0, %v3285
        %v3287 = vpop.f32.mrf.mxu0
        %3288 = vmatprep.mubr.f32.mxu0 0.0
        %3289 = vmatmul.mubr.f32.gmra.mxu0 %v3022
        %v3290 = vpop.f32.mrf.mxu0
        %v3291 = vadd.f32 0.0, %v3290
        %v3292 = vpop.f32.mrf.mxu0
        %3293 = vmatprep.mubr.f32.mxu0 0.0
        %3294 = vmatmul.mubr.f32.gmra.mxu0 %v3025
        %v3295 = vpop.f32.mrf.mxu0
        %v3296 = vadd.f32 0.0, %v3295
        %v3297 = vpop.f32.mrf.mxu0
        %3298 = vmatprep.mubr.f32.mxu0 0.0
        %3299 = vmatmul.mubr.f32.gmra.mxu0 %v3028
        %v3300 = vpop.f32.mrf.mxu0
        %v3301 = vadd.f32 0.0, %v3300
        %v3302 = vpop.f32.mrf.mxu0
        %3303 = vmatprep.mubr.f32.mxu0 0.0
        %3304 = vmatmul.mubr.f32.gmra.mxu0 %v3031
        %v3305 = vpop.f32.mrf.mxu0
        %v3306 = vadd.f32 0.0, %v3305
        %v3307 = vpop.f32.mrf.mxu0
        %3308 = vmatprep.mubr.f32.mxu0 0.0
        %3309 = vmatmul.mubr.f32.gmra.mxu0 %v3034
        %v3310 = vpop.f32.mrf.mxu0
        %v3311 = vadd.f32 0.0, %v3310
        %v3312 = vpop.f32.mrf.mxu0
        %3313 = vmatprep.mubr.f32.mxu0 0.0
        %3314 = vmatmul.mubr.f32.gmra.mxu0 %v3037
        %v3315 = vpop.f32.mrf.mxu0
        %v3316 = vadd.f32 0.0, %v3315
        %v3317 = vpop.f32.mrf.mxu0
        %3318 = vmatprep.mubr.f32.mxu0 0.0
        %3319 = vmatmul.mubr.f32.gmra.mxu0 %v3040
        %v3320 = vpop.f32.mrf.mxu0
        %v3321 = vadd.f32 0.0, %v3320
        %v3322 = vpop.f32.mrf.mxu0
        %3323 = vmatprep.mubr.f32.mxu0 0.0
        %3324 = vmatmul.mubr.f32.gmra.mxu0 %v3043
        %v3325 = vpop.f32.mrf.mxu0
        %v3326 = vadd.f32 0.0, %v3325
        %v3327 = vpop.f32.mrf.mxu0
        %3328 = vmatprep.mubr.f32.mxu0 0.0
        %3329 = vmatmul.mubr.f32.gmra.mxu0 %v3046
        %v3330 = vpop.f32.mrf.mxu0
        %v3331 = vadd.f32 0.0, %v3330
        %v3332 = vpop.f32.mrf.mxu0
        %3333 = vmatprep.mubr.f32.mxu0 0.0
        %3334 = vmatmul.mubr.f32.gmra.mxu0 %v3049
        %v3335 = vpop.f32.mrf.mxu0
        %v3336 = vadd.f32 0.0, %v3335
        %v3337 = vpop.f32.mrf.mxu0
        %3338 = vmatprep.mubr.f32.mxu0 0.0
        %3339 = vmatmul.mubr.f32.gmra.mxu0 %v3052
        %v3340 = vpop.f32.mrf.mxu0
        %v3341 = vadd.f32 0.0, %v3340
        %v3342 = vpop.f32.mrf.mxu0
        %3343 = vmatprep.mubr.f32.mxu0 0.0
        %3344 = vmatmul.mubr.f32.gmra.mxu0 %v3055
        %v3345 = vpop.f32.mrf.mxu0
        %v3346 = vadd.f32 0.0, %v3345
        %v3347 = vpop.f32.mrf.mxu0
        %3348 = vmatprep.mubr.f32.mxu0 0.0
        %3349 = vmatmul.mubr.f32.gmra.mxu0 %v3058
        %v3350 = vpop.f32.mrf.mxu0
        %v3351 = vadd.f32 0.0, %v3350
        %v3352 = vpop.f32.mrf.mxu0
        %3353 = vmatprep.mubr.f32.mxu0 0.0
        %3354 = vmatmul.mubr.f32.gmra.mxu0 %v3061
        %v3355 = vpop.f32.mrf.mxu0
        %v3356 = vadd.f32 0.0, %v3355
        %v3357 = vpop.f32.mrf.mxu0
        %3358 = vmatprep.mubr.f32.mxu0 0.0
        %3359 = vmatmul.mubr.f32.gmra.mxu0 %v3064
        %v3360 = vpop.f32.mrf.mxu0
        %v3361 = vadd.f32 0.0, %v3360
        %v3362 = vpop.f32.mrf.mxu0
        %3363 = vmatprep.mubr.f32.mxu0 0.0
        %3364 = vmatmul.mubr.f32.gmra.mxu0 %v3067
        %v3365 = vpop.f32.mrf.mxu0
        %v3366 = vadd.f32 0.0, %v3365
        %v3367 = vpop.f32.mrf.mxu0
        %3368 = vmatprep.mubr.f32.mxu0 0.0
        %3369 = vmatmul.mubr.f32.gmra.mxu0 %v3070
        %v3370 = vpop.f32.mrf.mxu0
        %v3371 = vadd.f32 0.0, %v3370
        %v3372 = vpop.f32.mrf.mxu0
        %3373 = vmatprep.mubr.f32.mxu0 0.0
        %3374 = vmatmul.mubr.f32.gmra.mxu0 %v3073
        %v3375 = vpop.f32.mrf.mxu0
        %v3376 = vadd.f32 0.0, %v3375
        %v3377 = vpop.f32.mrf.mxu0
        %3378 = vmatprep.mubr.f32.mxu0 0.0
        %3379 = vmatmul.mubr.f32.gmra.mxu0 %v3076
        %v3380 = vpop.f32.mrf.mxu0
        %v3381 = vadd.f32 0.0, %v3380
        %v3382 = vpop.f32.mrf.mxu0
        %3383 = vmatprep.mubr.f32.mxu0 0.0
        %3384 = vmatmul.mubr.f32.gmra.mxu0 %v3079
        %v3385 = vpop.f32.mrf.mxu0
        %v3386 = vadd.f32 0.0, %v3385
        %v3387 = vpop.f32.mrf.mxu0
        %3388 = vmatprep.mubr.f32.mxu0 0.0
        %3389 = vmatmul.mubr.f32.gmra.mxu0 %v3082
        %v3390 = vpop.f32.mrf.mxu0
        %v3391 = vadd.f32 0.0, %v3390
        %v3392 = vpop.f32.mrf.mxu0
        %3393 = vmatprep.mubr.f32.mxu0 0.0
        %3394 = vmatmul.mubr.f32.gmra.mxu0 %v3085
        %v3395 = vpop.f32.mrf.mxu0
        %v3396 = vadd.f32 0.0, %v3395
        %v3397 = vpop.f32.mrf.mxu0
        %3398 = vmatprep.mubr.f32.mxu0 0.0
        %3399 = vmatmul.mubr.f32.gmra.mxu0 %v3088
        %v3400 = vpop.f32.mrf.mxu0
        %v3401 = vadd.f32 0.0, %v3400
        %v3402 = vpop.f32.mrf.mxu0
        %3403 = vmatprep.mubr.f32.mxu0 0.0
        %3404 = vmatmul.mubr.f32.gmra.mxu0 %v3091
        %v3405 = vpop.f32.mrf.mxu0
        %v3406 = vadd.f32 0.0, %v3405
        %v3407 = vpop.f32.mrf.mxu0
        %3408 = vmatprep.mubr.f32.mxu0 0.0
        %3409 = vmatmul.mubr.f32.gmra.mxu0 %v3094
        %v3410 = vpop.f32.mrf.mxu0
        %v3411 = vadd.f32 0.0, %v3410
        %v3412 = vpop.f32.mrf.mxu0
        %3413 = vmatprep.mubr.f32.mxu0 0.0
        %3414 = vmatmul.mubr.f32.gmra.mxu0 %v3097
        %v3415 = vpop.f32.mrf.mxu0
        %v3416 = vadd.f32 0.0, %v3415
        %v3417 = vpop.f32.mrf.mxu0
        %3418 = vmatprep.mubr.f32.mxu0 0.0
        %3419 = vmatmul.mubr.f32.gmra.mxu0 %v3100
        %v3420 = vpop.f32.mrf.mxu0
        %v3421 = vadd.f32 0.0, %v3420
        %v3422 = vpop.f32.mrf.mxu0
        %3423 = vmatprep.mubr.f32.mxu0 0.0
        %3424 = vmatmul.mubr.f32.gmra.mxu0 %v3103
        %v3425 = vpop.f32.mrf.mxu0
        %v3426 = vadd.f32 0.0, %v3425
        %v3427 = vpop.f32.mrf.mxu0
        %3428 = vmatprep.mubr.f32.mxu0 0.0
        %3429 = vmatmul.mubr.f32.gmra.mxu0 %v3106
        %v3430 = vpop.f32.mrf.mxu0
        %v3431 = vadd.f32 0.0, %v3430
        %v3432 = vpop.f32.mrf.mxu0
        %3433 = vmatprep.mubr.f32.mxu0 0.0
        %3434 = vmatmul.mubr.f32.gmra.mxu0 %v3109
        %v3435 = vpop.f32.mrf.mxu0
        %v3436 = vadd.f32 0.0, %v3435
        %v3437 = vpop.f32.mrf.mxu0
        %3438 = vmatprep.mubr.f32.mxu0 0.0
        %3439 = vmatmul.mubr.f32.gmra.mxu0 %v3112
        %v3440 = vpop.f32.mrf.mxu0
        %v3441 = vadd.f32 0.0, %v3440
        %v3442 = vpop.f32.mrf.mxu0
        %3443 = vmatprep.mubr.f32.mxu0 0.0
        %3444 = vmatmul.mubr.f32.gmra.mxu0 %v3115
        %v3445 = vpop.f32.mrf.mxu0
        %v3446 = vadd.f32 0.0, %v3445
        %v3447 = vpop.f32.mrf.mxu0
        %3448 = vmatprep.mubr.f32.mxu0 0.0
        %3449 = vmatmul.mubr.f32.gmra.mxu0 %v3118
        %v3450 = vpop.f32.mrf.mxu0
        %v3451 = vadd.f32 0.0, %v3450
        %v3452 = vpop.f32.mrf.mxu0
        %3453 = vmatprep.mubr.f32.mxu0 0.0
        %3454 = vmatmul.mubr.f32.gmra.mxu0 %v3121
        %v3455 = vpop.f32.mrf.mxu0
        %v3456 = vadd.f32 0.0, %v3455
        %v3457 = vpop.f32.mrf.mxu0
        %3458 = vmatprep.mubr.f32.mxu0 0.0
        %3459 = vmatmul.mubr.f32.gmra.mxu0 %v3124
        %v3460 = vpop.f32.mrf.mxu0
        %v3461 = vadd.f32 0.0, %v3460
        %v3462 = vpop.f32.mrf.mxu0
        %3463 = vmatprep.mubr.f32.mxu0 0.0
        %3464 = vmatmul.mubr.f32.gmra.mxu0 %v3127
        %v3465 = vpop.f32.mrf.mxu0
        %v3466 = vadd.f32 0.0, %v3465
        %v3467 = vpop.f32.mrf.mxu0
        %3468 = vmatprep.mubr.f32.mxu0 0.0
        %3469 = vmatmul.mubr.f32.gmra.mxu0 %v3130
        %v3470 = vpop.f32.mrf.mxu0
        %v3471 = vadd.f32 0.0, %v3470
        %v3472 = vpop.f32.mrf.mxu0
        %3473 = vmatprep.mubr.f32.mxu0 0.0
        %3474 = vmatmul.mubr.f32.gmra.mxu0 %v3133
        %v3475 = vpop.f32.mrf.mxu0
        %v3476 = vadd.f32 0.0, %v3475
        %v3477 = vpop.f32.mrf.mxu0
        %3478 = vmatprep.mubr.f32.mxu0 0.0
        %3479 = vmatmul.mubr.f32.gmra.mxu0 %v3136
        %v3480 = vpop.f32.mrf.mxu0
        %v3481 = vadd.f32 0.0, %v3480
        %v3482 = vpop.f32.mrf.mxu0
        %3483 = vmatprep.mubr.f32.mxu0 0.0
        %3484 = vmatmul.mubr.f32.gmra.mxu0 %v3139
        %v3485 = vpop.f32.mrf.mxu0
        %v3486 = vadd.f32 0.0, %v3485
        %v3487 = vpop.f32.mrf.mxu0
        %3488 = vmatprep.mubr.f32.mxu0 0.0
        %3489 = vmatmul.mubr.f32.gmra.mxu0 %v3142
        %v3490 = vpop.f32.mrf.mxu0
        %v3491 = vadd.f32 0.0, %v3490
        %v3492 = vpop.f32.mrf.mxu0
        %3493 = vmatprep.mubr.f32.mxu0 0.0
        %3494 = vmatmul.mubr.f32.gmra.mxu0 %v3145
        %v3495 = vpop.f32.mrf.mxu0
        %v3496 = vadd.f32 0.0, %v3495
        %v3497 = vpop.f32.mrf.mxu0
        %3498 = vmatprep.mubr.f32.mxu0 0.0
        %3499 = vmatmul.mubr.f32.gmra.mxu0 %v3148
        %v3500 = vpop.f32.mrf.mxu0
        %v3501 = vadd.f32 0.0, %v3500
        %v3502 = vpop.f32.mrf.mxu0
        %3503 = vmatprep.mubr.f32.mxu0 0.0
        %3504 = vmatmul.mubr.f32.gmra.mxu0 %v3151
        %v3505 = vpop.f32.mrf.mxu0
        %v3506 = vadd.f32 0.0, %v3505
        %v3507 = vpop.f32.mrf.mxu0
        %3508 = vmatprep.mubr.f32.mxu0 0.0
        %3509 = vmatmul.mubr.f32.gmra.mxu0 %v3154
        %v3510 = vpop.f32.mrf.mxu0
        %v3511 = vadd.f32 0.0, %v3510
        %v3512 = vpop.f32.mrf.mxu0
        %3513 = vmatprep.mubr.f32.mxu0 0.0
        %3514 = vmatmul.mubr.f32.gmra.mxu0 %v3157
        %v3515 = vpop.f32.mrf.mxu0
        %v3516 = vadd.f32 0.0, %v3515
        %v3517 = vpop.f32.mrf.mxu0
        %3518 = vmatprep.mubr.f32.mxu0 0.0
        %3519 = vmatmul.mubr.f32.gmra.mxu0 %v3160
        %v3520 = vpop.f32.mrf.mxu0
        %v3521 = vadd.f32 0.0, %v3520
        %v3522 = vpop.f32.mrf.mxu0
        %3523 = vmatprep.mubr.f32.mxu0 0.0
        %3524 = vmatmul.mubr.f32.gmra.mxu0 %v3163
        %v3525 = vpop.f32.mrf.mxu0
        %v3526 = vadd.f32 0.0, %v3525
        %v3527 = vpop.f32.mrf.mxu0
        %3528 = vmatprep.mubr.f32.mxu0 0.0
        %3529 = vmatmul.mubr.f32.gmra.mxu0 %v3166
        %v3530 = vpop.f32.mrf.mxu0
        %v3531 = vadd.f32 0.0, %v3530
        %v3532 = vpop.f32.mrf.mxu0
        %3533 = vmatprep.mubr.f32.mxu0 0.0
        %3534 = vmatmul.mubr.f32.gmra.mxu0 %v3169
        %v3535 = vpop.f32.mrf.mxu0
        %v3536 = vadd.f32 0.0, %v3535
        %v3537 = vpop.f32.mrf.mxu0
        %3538 = vmatprep.mubr.f32.mxu0 0.0
        %3539 = vmatmul.mubr.f32.gmra.mxu0 %v3172
        %v3540 = vpop.f32.mrf.mxu0
        %v3541 = vadd.f32 0.0, %v3540
        %v3542 = vpop.f32.mrf.mxu0
        %3543 = vmatprep.mubr.f32.mxu0 0.0
        %3544 = vmatmul.mubr.f32.gmra.mxu0 %v3175
        %v3545 = vpop.f32.mrf.mxu0
        %v3546 = vadd.f32 0.0, %v3545
        %v3547 = vpop.f32.mrf.mxu0
        %3548 = vmatprep.mubr.f32.mxu0 0.0
        %3549 = vmatmul.mubr.f32.gmra.mxu0 %v3178
        %v3550 = vpop.f32.mrf.mxu0
        %v3551 = vadd.f32 0.0, %v3550
        %v3552 = vpop.f32.mrf.mxu0
        %3553 = vmatprep.mubr.f32.mxu0 0.0
        %3554 = vmatmul.mubr.f32.gmra.mxu0 %v3181
        %v3555 = vpop.f32.mrf.mxu0
        %v3556 = vadd.f32 0.0, %v3555
        %v3557 = vpop.f32.mrf.mxu0
        %3558 = vmatprep.mubr.f32.mxu0 0.0
        %3559 = vmatmul.mubr.f32.gmra.mxu0 %v3184
        %v3560 = vpop.f32.mrf.mxu0
        %v3561 = vadd.f32 0.0, %v3560
        %v3562 = vpop.f32.mrf.mxu0
        %3563 = vmatprep.mubr.f32.mxu0 0.0
        %3564 = vmatmul.mubr.f32.gmra.mxu0 %v3187
        %v3565 = vpop.f32.mrf.mxu0
        %v3566 = vadd.f32 0.0, %v3565
        %v3567 = vpop.f32.mrf.mxu0
        %3568 = vmatprep.mubr.f32.mxu0 0.0
        %3569 = vmatmul.mubr.f32.gmra.mxu0 %v3190
        %v3570 = vpop.f32.mrf.mxu0
        %v3571 = vadd.f32 0.0, %v3570
        %v3572 = vpop.f32.mrf.mxu0
        %3573 = vmatprep.mubr.f32.mxu0 0.0
        %3574 = vmatmul.mubr.f32.gmra.mxu0 %v3193
        %v3575 = vpop.f32.mrf.mxu0
        %v3576 = vadd.f32 0.0, %v3575
        %v3577 = vpop.f32.mrf.mxu0
        %3578 = vmatprep.mubr.f32.mxu0 0.0
        %3579 = vmatmul.mubr.f32.gmra.mxu0 %v3196
        %v3580 = vpop.f32.mrf.mxu0
        %v3581 = vadd.f32 0.0, %v3580
        %v3582 = vpop.f32.mrf.mxu0
        %3583 = vmatprep.mubr.f32.mxu0 0.0
        %3584 = vmatmul.mubr.f32.gmra.mxu0 %v3199
        %v3585 = vpop.f32.mrf.mxu0
        %v3586 = vadd.f32 0.0, %v3585
        %v3587 = vpop.f32.mrf.mxu0
        %3588 = vdwg.mxu0
        %v3589 = vadd.f32 %v2879, %v3271
        %v3590 = vadd.f32 %v2880, %v3276
        %v3591 = vadd.f32 %v2881, %v3281
        %v3592 = vadd.f32 %v2882, %v3286
        %v3593 = vadd.f32 %v2883, %v3291
        %v3594 = vadd.f32 %v2884, %v3296
        %v3595 = vadd.f32 %v2885, %v3301
        %v3596 = vadd.f32 %v2886, %v3306
        %v3597 = vadd.f32 %v2887, %v3311
        %v3598 = vadd.f32 %v2888, %v3316
        %v3599 = vadd.f32 %v2889, %v3321
        %v3600 = vadd.f32 %v2890, %v3326
        %v3601 = vadd.f32 %v2891, %v3331
        %v3602 = vadd.f32 %v2892, %v3336
        %v3603 = vadd.f32 %v2893, %v3341
        %v3604 = vadd.f32 %v2894, %v3346
        %v3605 = vadd.f32 %v2895, %v3351
        %v3606 = vadd.f32 %v2896, %v3356
        %v3607 = vadd.f32 %v2897, %v3361
        %v3608 = vadd.f32 %v2898, %v3366
        %v3609 = vadd.f32 %v2899, %v3371
        %v3610 = vadd.f32 %v2900, %v3376
        %v3611 = vadd.f32 %v2901, %v3381
        %v3612 = vadd.f32 %v2902, %v3386
        %v3613 = vadd.f32 %v2903, %v3391
        %v3614 = vadd.f32 %v2904, %v3396
        %v3615 = vadd.f32 %v2905, %v3401
        %v3616 = vadd.f32 %v2906, %v3406
        %v3617 = vadd.f32 %v2907, %v3411
        %v3618 = vadd.f32 %v2908, %v3416
        %v3619 = vadd.f32 %v2909, %v3421
        %v3620 = vadd.f32 %v2910, %v3426
        %v3621 = vadd.f32 %v2911, %v3431
        %v3622 = vadd.f32 %v2912, %v3436
        %v3623 = vadd.f32 %v2913, %v3441
        %v3624 = vadd.f32 %v2914, %v3446
        %v3625 = vadd.f32 %v2915, %v3451
        %v3626 = vadd.f32 %v2916, %v3456
        %v3627 = vadd.f32 %v2917, %v3461
        %v3628 = vadd.f32 %v2918, %v3466
        %v3629 = vadd.f32 %v2919, %v3471
        %v3630 = vadd.f32 %v2920, %v3476
        %v3631 = vadd.f32 %v2921, %v3481
        %v3632 = vadd.f32 %v2922, %v3486
        %v3633 = vadd.f32 %v2923, %v3491
        %v3634 = vadd.f32 %v2924, %v3496
        %v3635 = vadd.f32 %v2925, %v3501
        %v3636 = vadd.f32 %v2926, %v3506
        %v3637 = vadd.f32 %v2927, %v3511
        %v3638 = vadd.f32 %v2928, %v3516
        %v3639 = vadd.f32 %v2929, %v3521
        %v3640 = vadd.f32 %v2930, %v3526
        %v3641 = vadd.f32 %v2931, %v3531
        %v3642 = vadd.f32 %v2932, %v3536
        %v3643 = vadd.f32 %v2933, %v3541
        %v3644 = vadd.f32 %v2934, %v3546
        %v3645 = vadd.f32 %v2935, %v3551
        %v3646 = vadd.f32 %v2936, %v3556
        %v3647 = vadd.f32 %v2937, %v3561
        %v3648 = vadd.f32 %v2938, %v3566
        %v3649 = vadd.f32 %v2939, %v3571
        %v3650 = vadd.f32 %v2940, %v3576
        %v3651 = vadd.f32 %v2941, %v3581
        %v3652 = vadd.f32 %v2942, %v3586
        %v3653 = vld [vmem:[%s2232 + $0x2] sm:$0xff]
        %v3654 = vld [vmem:[%s2232 + $0xa] sm:$0xff]
        %v3655 = vld [vmem:[%s2232 + $0x12] sm:$0xff]
        %v3656 = vld [vmem:[%s2232 + $0x1a] sm:$0xff]
        %v3657 = vld [vmem:[%s2232 + $0x2a] sm:$0xff]
        %v3658 = vld [vmem:[%s2232 + $0x32] sm:$0xff]
        %v3659 = vld [vmem:[%s2232 + $0x3a] sm:$0xff]
        %v3660 = vld [vmem:[%s2232 + $0x42] sm:$0xff]
        %v3661 = vld [vmem:[%s2232 + $0x52] sm:$0xff]
        %v3662 = vld [vmem:[%s2232 + $0x5a] sm:$0xff]
        %v3663 = vld [vmem:[%s2232 + $0x62] sm:$0xff]
        %v3664 = vld [vmem:[%s2232 + $0x6a] sm:$0xff]
        %v3665 = vld [vmem:[%s2232 + $0x7a] sm:$0xff]
        %v3666 = vld [vmem:[%s2232 + $0x82] sm:$0xff]
        %v3667 = vld [vmem:[%s2232 + $0x8a] sm:$0xff]
        %v3668 = vld [vmem:[%s2232 + $0x92] sm:$0xff]
        %v3669 = vld [vmem:[%s2232 + $0xa2] sm:$0xff]
        %v3670 = vld [vmem:[%s2232 + $0xaa] sm:$0xff]
        %v3671 = vld [vmem:[%s2232 + $0xb2] sm:$0xff]
        %v3672 = vld [vmem:[%s2232 + $0xba] sm:$0xff]
        %v3673 = vld [vmem:[%s2232 + $0xca] sm:$0xff]
        %v3674 = vld [vmem:[%s2232 + $0xd2] sm:$0xff]
        %v3675 = vld [vmem:[%s2232 + $0xda] sm:$0xff]
        %v3676 = vld [vmem:[%s2232 + $0xe2] sm:$0xff]
        %v3677 = vld [vmem:[%s2232 + $0xf2] sm:$0xff]
        %v3678 = vld [vmem:[%s2232 + $0xfa] sm:$0xff]
        %v3679 = vld [vmem:[%s2232 + $0x102] sm:$0xff]
        %v3680 = vld [vmem:[%s2232 + $0x10a] sm:$0xff]
        %v3681 = vld [vmem:[%s2232 + $0x11a] sm:$0xff]
        %v3682 = vld [vmem:[%s2232 + $0x122] sm:$0xff]
        %v3683 = vld [vmem:[%s2232 + $0x12a] sm:$0xff]
        %v3684 = vld [vmem:[%s2232 + $0x132] sm:$0xff]
        %v3685 = vld [vmem:[%s2232 + $0x142] sm:$0xff]
        %v3686 = vld [vmem:[%s2232 + $0x14a] sm:$0xff]
        %v3687 = vld [vmem:[%s2232 + $0x152] sm:$0xff]
        %v3688 = vld [vmem:[%s2232 + $0x15a] sm:$0xff]
        %v3689 = vld [vmem:[%s2232 + $0x16a] sm:$0xff]
        %v3690 = vld [vmem:[%s2232 + $0x172] sm:$0xff]
        %v3691 = vld [vmem:[%s2232 + $0x17a] sm:$0xff]
        %v3692 = vld [vmem:[%s2232 + $0x182] sm:$0xff]
        %v3693 = vld [vmem:[%s2232 + $0x192] sm:$0xff]
        %v3694 = vld [vmem:[%s2232 + $0x19a] sm:$0xff]
        %v3695 = vld [vmem:[%s2232 + $0x1a2] sm:$0xff]
        %v3696 = vld [vmem:[%s2232 + $0x1aa] sm:$0xff]
        %v3697 = vld [vmem:[%s2232 + $0x1ba] sm:$0xff]
        %v3698 = vld [vmem:[%s2232 + $0x1c2] sm:$0xff]
        %v3699 = vld [vmem:[%s2232 + $0x1ca] sm:$0xff]
        %v3700 = vld [vmem:[%s2232 + $0x1d2] sm:$0xff]
        %v3701 = vld [vmem:[%s2232 + $0x1e2] sm:$0xff]
        %v3702 = vld [vmem:[%s2232 + $0x1ea] sm:$0xff]
        %v3703 = vld [vmem:[%s2232 + $0x1f2] sm:$0xff]
        %v3704 = vld [vmem:[%s2232 + $0x1fa] sm:$0xff]
        %v3705 = vld [vmem:[%s2232 + $0x20a] sm:$0xff]
        %v3706 = vld [vmem:[%s2232 + $0x212] sm:$0xff]
        %v3707 = vld [vmem:[%s2232 + $0x21a] sm:$0xff]
        %v3708 = vld [vmem:[%s2232 + $0x222] sm:$0xff]
        %v3709 = vld [vmem:[%s2232 + $0x232] sm:$0xff]
        %v3710 = vld [vmem:[%s2232 + $0x23a] sm:$0xff]
        %v3711 = vld [vmem:[%s2232 + $0x242] sm:$0xff]
        %v3712 = vld [vmem:[%s2232 + $0x24a] sm:$0xff]
        %v3713 = vld [vmem:[%s2232 + $0x25a] sm:$0xff]
        %v3714 = vld [vmem:[%s2232 + $0x262] sm:$0xff]
        %v3715 = vld [vmem:[%s2232 + $0x26a] sm:$0xff]
        %v3716 = vld [vmem:[%s2232 + $0x272] sm:$0xff]
        %s3717 = scalar_lea.vmem %s219, 20
        %v3718 = vld [vmem:[%s3717] sm:$0x7]
        %v3720 = vsel %vm358, %v3653, 0
        %v3723 = vsel %vm358, %v3654, 0
        %v3726 = vsel %vm358, %v3655, 0
        %v3729 = vsel %vm358, %v3656, 0
        %v3732 = vsel %vm358, %v3657, 0
        %v3735 = vsel %vm358, %v3658, 0
        %v3738 = vsel %vm358, %v3659, 0
        %v3741 = vsel %vm358, %v3660, 0
        %v3744 = vsel %vm358, %v3661, 0
        %v3747 = vsel %vm358, %v3662, 0
        %v3750 = vsel %vm358, %v3663, 0
        %v3753 = vsel %vm358, %v3664, 0
        %v3756 = vsel %vm358, %v3665, 0
        %v3759 = vsel %vm358, %v3666, 0
        %v3762 = vsel %vm358, %v3667, 0
        %v3765 = vsel %vm358, %v3668, 0
        %v3768 = vsel %vm358, %v3669, 0
        %v3771 = vsel %vm358, %v3670, 0
        %v3774 = vsel %vm358, %v3671, 0
        %v3777 = vsel %vm358, %v3672, 0
        %v3780 = vsel %vm358, %v3673, 0
        %v3783 = vsel %vm358, %v3674, 0
        %v3786 = vsel %vm358, %v3675, 0
        %v3789 = vsel %vm358, %v3676, 0
        %v3792 = vsel %vm358, %v3677, 0
        %v3795 = vsel %vm358, %v3678, 0
        %v3798 = vsel %vm358, %v3679, 0
        %v3801 = vsel %vm358, %v3680, 0
        %v3804 = vsel %vm358, %v3681, 0
        %v3807 = vsel %vm358, %v3682, 0
        %v3810 = vsel %vm358, %v3683, 0
        %v3813 = vsel %vm358, %v3684, 0
        %v3816 = vsel %vm358, %v3685, 0
        %v3819 = vsel %vm358, %v3686, 0
        %v3822 = vsel %vm358, %v3687, 0
        %v3825 = vsel %vm358, %v3688, 0
        %v3828 = vsel %vm358, %v3689, 0
        %v3831 = vsel %vm358, %v3690, 0
        %v3834 = vsel %vm358, %v3691, 0
        %v3837 = vsel %vm358, %v3692, 0
        %v3840 = vsel %vm358, %v3693, 0
        %v3843 = vsel %vm358, %v3694, 0
        %v3846 = vsel %vm358, %v3695, 0
        %v3849 = vsel %vm358, %v3696, 0
        %v3852 = vsel %vm358, %v3697, 0
        %v3855 = vsel %vm358, %v3698, 0
        %v3858 = vsel %vm358, %v3699, 0
        %v3861 = vsel %vm358, %v3700, 0
        %v3864 = vsel %vm358, %v3701, 0
        %v3867 = vsel %vm358, %v3702, 0
        %v3870 = vsel %vm358, %v3703, 0
        %v3873 = vsel %vm358, %v3704, 0
        %v3876 = vsel %vm358, %v3705, 0
        %v3879 = vsel %vm358, %v3706, 0
        %v3882 = vsel %vm358, %v3707, 0
        %v3885 = vsel %vm358, %v3708, 0
        %v3888 = vsel %vm358, %v3709, 0
        %v3891 = vsel %vm358, %v3710, 0
        %v3894 = vsel %vm358, %v3711, 0
        %v3897 = vsel %vm358, %v3712, 0
        %v3900 = vsel %vm358, %v3713, 0
        %v3903 = vsel %vm358, %v3714, 0
        %v3906 = vsel %vm358, %v3715, 0
        %v3909 = vsel %vm358, %v3716, 0
        %v3912 = vsel %vm551, %v3718, 0
        %3914 = vmatprep.subr.mxu0 0.0
        %3915 = vmatpush1.msra.mxu0 0.0
        %3916 = vmatprep.subr.mxu0 0.0
        %3917 = vmatpush1.msra.mxu0 0.0
        %3918 = vmatprep.subr.mxu0 0.0
        %3919 = vmatpush1.msra.mxu0 0.0
        %3920 = vmatprep.subr.mxu0 0.0
        %3921 = vmatpush1.msra.mxu0 0.0
        %3922 = vmatprep.subr.mxu0 0.0
        %3923 = vmatpush1.msra.mxu0 0.0
        %3924 = vmatprep.subr.mxu0 0.0
        %3925 = vmatpush1.msra.mxu0 0.0
        %3926 = vmatprep.subr.mxu0 0.0
        %3927 = vmatpush1.msra.mxu0 0.0
        %3928 = vmatprep.subr.mxu0 0.0
        %3929 = vmatpush1.msra.mxu0 0.0
        %3930 = vmatprep.subr.mxu0 0.0
        %3931 = vmatpush1.msra.mxu0 0.0
        %3932 = vmatprep.subr.mxu0 0.0
        %3933 = vmatpush1.msra.mxu0 0.0
        %3934 = vmatprep.subr.mxu0 0.0
        %3935 = vmatpush1.msra.mxu0 0.0
        %3936 = vmatprep.subr.mxu0 0.0
        %3937 = vmatpush1.msra.mxu0 0.0
        %3938 = vmatprep.subr.mxu0 0.0
        %3939 = vmatpush1.msra.mxu0 0.0
        %3940 = vmatprep.subr.mxu0 0.0
        %3941 = vmatpush1.msra.mxu0 0.0
        %3942 = vmatprep.subr.mxu0 0.0
        %3943 = vmatpush1.msra.mxu0 0.0
        %3944 = vmatprep.subr.mxu0 0.0
        %3945 = vmatpush1.msra.mxu0 %v3912
        %3946 = vmatprep.subr.mxu0 0.0
        %3947 = vmatpush2.msra.mxu0 0.0
        %3948 = vmatprep.subr.mxu0 0.0
        %3949 = vmatpush2.msra.mxu0 0.0
        %3950 = vmatprep.subr.mxu0 0.0
        %3951 = vmatpush2.msra.mxu0 0.0
        %3952 = vmatprep.subr.mxu0 0.0
        %3953 = vmatpush2.msra.mxu0 0.0
        %3954 = vmatprep.subr.mxu0 0.0
        %3955 = vmatpush2.msra.mxu0 0.0
        %3956 = vmatprep.subr.mxu0 0.0
        %3957 = vmatpush2.msra.mxu0 0.0
        %3958 = vmatprep.subr.mxu0 0.0
        %3959 = vmatpush2.msra.mxu0 0.0
        %3960 = vmatprep.subr.mxu0 0.0
        %3961 = vmatpush2.msra.mxu0 0.0
        %3962 = vmatprep.subr.mxu0 0.0
        %3963 = vmatpush2.msra.mxu0 0.0
        %3964 = vmatprep.subr.mxu0 0.0
        %3965 = vmatpush2.msra.mxu0 0.0
        %3966 = vmatprep.subr.mxu0 0.0
        %3967 = vmatpush2.msra.mxu0 0.0
        %3968 = vmatprep.subr.mxu0 0.0
        %3969 = vmatpush2.msra.mxu0 0.0
        %3970 = vmatprep.subr.mxu0 0.0
        %3971 = vmatpush2.msra.mxu0 0.0
        %3972 = vmatprep.subr.mxu0 0.0
        %3973 = vmatpush2.msra.mxu0 0.0
        %3974 = vmatprep.subr.mxu0 0.0
        %3975 = vmatpush2.msra.mxu0 0.0
        %3976 = vmatprep.subr.mxu0 0.0
        %3977 = vmatpush2.msra.mxu0 0.0
        %3978 = vmatprep.mubr.f32.mxu0 0.0
        %3979 = vmatmul.mubr.f32.gmra.mxu0 %v3720
        %v3980 = vpop.f32.mrf.mxu0
        %v3981 = vadd.f32 0.0, %v3980
        %v3982 = vpop.f32.mrf.mxu0
        %3983 = vmatprep.mubr.f32.mxu0 0.0
        %3984 = vmatmul.mubr.f32.gmra.mxu0 %v3723
        %v3985 = vpop.f32.mrf.mxu0
        %v3986 = vadd.f32 0.0, %v3985
        %v3987 = vpop.f32.mrf.mxu0
        %3988 = vmatprep.mubr.f32.mxu0 0.0
        %3989 = vmatmul.mubr.f32.gmra.mxu0 %v3726
        %v3990 = vpop.f32.mrf.mxu0
        %v3991 = vadd.f32 0.0, %v3990
        %v3992 = vpop.f32.mrf.mxu0
        %3993 = vmatprep.mubr.f32.mxu0 0.0
        %3994 = vmatmul.mubr.f32.gmra.mxu0 %v3729
        %v3995 = vpop.f32.mrf.mxu0
        %v3996 = vadd.f32 0.0, %v3995
        %v3997 = vpop.f32.mrf.mxu0
        %3998 = vmatprep.mubr.f32.mxu0 0.0
        %3999 = vmatmul.mubr.f32.gmra.mxu0 %v3732
        %v4000 = vpop.f32.mrf.mxu0
        %v4001 = vadd.f32 0.0, %v4000
        %v4002 = vpop.f32.mrf.mxu0
        %4003 = vmatprep.mubr.f32.mxu0 0.0
        %4004 = vmatmul.mubr.f32.gmra.mxu0 %v3735
        %v4005 = vpop.f32.mrf.mxu0
        %v4006 = vadd.f32 0.0, %v4005
        %v4007 = vpop.f32.mrf.mxu0
        %4008 = vmatprep.mubr.f32.mxu0 0.0
        %4009 = vmatmul.mubr.f32.gmra.mxu0 %v3738
        %v4010 = vpop.f32.mrf.mxu0
        %v4011 = vadd.f32 0.0, %v4010
        %v4012 = vpop.f32.mrf.mxu0
        %4013 = vmatprep.mubr.f32.mxu0 0.0
        %4014 = vmatmul.mubr.f32.gmra.mxu0 %v3741
        %v4015 = vpop.f32.mrf.mxu0
        %v4016 = vadd.f32 0.0, %v4015
        %v4017 = vpop.f32.mrf.mxu0
        %4018 = vmatprep.mubr.f32.mxu0 0.0
        %4019 = vmatmul.mubr.f32.gmra.mxu0 %v3744
        %v4020 = vpop.f32.mrf.mxu0
        %v4021 = vadd.f32 0.0, %v4020
        %v4022 = vpop.f32.mrf.mxu0
        %4023 = vmatprep.mubr.f32.mxu0 0.0
        %4024 = vmatmul.mubr.f32.gmra.mxu0 %v3747
        %v4025 = vpop.f32.mrf.mxu0
        %v4026 = vadd.f32 0.0, %v4025
        %v4027 = vpop.f32.mrf.mxu0
        %4028 = vmatprep.mubr.f32.mxu0 0.0
        %4029 = vmatmul.mubr.f32.gmra.mxu0 %v3750
        %v4030 = vpop.f32.mrf.mxu0
        %v4031 = vadd.f32 0.0, %v4030
        %v4032 = vpop.f32.mrf.mxu0
        %4033 = vmatprep.mubr.f32.mxu0 0.0
        %4034 = vmatmul.mubr.f32.gmra.mxu0 %v3753
        %v4035 = vpop.f32.mrf.mxu0
        %v4036 = vadd.f32 0.0, %v4035
        %v4037 = vpop.f32.mrf.mxu0
        %4038 = vmatprep.mubr.f32.mxu0 0.0
        %4039 = vmatmul.mubr.f32.gmra.mxu0 %v3756
        %v4040 = vpop.f32.mrf.mxu0
        %v4041 = vadd.f32 0.0, %v4040
        %v4042 = vpop.f32.mrf.mxu0
        %4043 = vmatprep.mubr.f32.mxu0 0.0
        %4044 = vmatmul.mubr.f32.gmra.mxu0 %v3759
        %v4045 = vpop.f32.mrf.mxu0
        %v4046 = vadd.f32 0.0, %v4045
        %v4047 = vpop.f32.mrf.mxu0
        %4048 = vmatprep.mubr.f32.mxu0 0.0
        %4049 = vmatmul.mubr.f32.gmra.mxu0 %v3762
        %v4050 = vpop.f32.mrf.mxu0
        %v4051 = vadd.f32 0.0, %v4050
        %v4052 = vpop.f32.mrf.mxu0
        %4053 = vmatprep.mubr.f32.mxu0 0.0
        %4054 = vmatmul.mubr.f32.gmra.mxu0 %v3765
        %v4055 = vpop.f32.mrf.mxu0
        %v4056 = vadd.f32 0.0, %v4055
        %v4057 = vpop.f32.mrf.mxu0
        %4058 = vmatprep.mubr.f32.mxu0 0.0
        %4059 = vmatmul.mubr.f32.gmra.mxu0 %v3768
        %v4060 = vpop.f32.mrf.mxu0
        %v4061 = vadd.f32 0.0, %v4060
        %v4062 = vpop.f32.mrf.mxu0
        %4063 = vmatprep.mubr.f32.mxu0 0.0
        %4064 = vmatmul.mubr.f32.gmra.mxu0 %v3771
        %v4065 = vpop.f32.mrf.mxu0
        %v4066 = vadd.f32 0.0, %v4065
        %v4067 = vpop.f32.mrf.mxu0
        %4068 = vmatprep.mubr.f32.mxu0 0.0
        %4069 = vmatmul.mubr.f32.gmra.mxu0 %v3774
        %v4070 = vpop.f32.mrf.mxu0
        %v4071 = vadd.f32 0.0, %v4070
        %v4072 = vpop.f32.mrf.mxu0
        %4073 = vmatprep.mubr.f32.mxu0 0.0
        %4074 = vmatmul.mubr.f32.gmra.mxu0 %v3777
        %v4075 = vpop.f32.mrf.mxu0
        %v4076 = vadd.f32 0.0, %v4075
        %v4077 = vpop.f32.mrf.mxu0
        %4078 = vmatprep.mubr.f32.mxu0 0.0
        %4079 = vmatmul.mubr.f32.gmra.mxu0 %v3780
        %v4080 = vpop.f32.mrf.mxu0
        %v4081 = vadd.f32 0.0, %v4080
        %v4082 = vpop.f32.mrf.mxu0
        %4083 = vmatprep.mubr.f32.mxu0 0.0
        %4084 = vmatmul.mubr.f32.gmra.mxu0 %v3783
        %v4085 = vpop.f32.mrf.mxu0
        %v4086 = vadd.f32 0.0, %v4085
        %v4087 = vpop.f32.mrf.mxu0
        %4088 = vmatprep.mubr.f32.mxu0 0.0
        %4089 = vmatmul.mubr.f32.gmra.mxu0 %v3786
        %v4090 = vpop.f32.mrf.mxu0
        %v4091 = vadd.f32 0.0, %v4090
        %v4092 = vpop.f32.mrf.mxu0
        %4093 = vmatprep.mubr.f32.mxu0 0.0
        %4094 = vmatmul.mubr.f32.gmra.mxu0 %v3789
        %v4095 = vpop.f32.mrf.mxu0
        %v4096 = vadd.f32 0.0, %v4095
        %v4097 = vpop.f32.mrf.mxu0
        %4098 = vmatprep.mubr.f32.mxu0 0.0
        %4099 = vmatmul.mubr.f32.gmra.mxu0 %v3792
        %v4100 = vpop.f32.mrf.mxu0
        %v4101 = vadd.f32 0.0, %v4100
        %v4102 = vpop.f32.mrf.mxu0
        %4103 = vmatprep.mubr.f32.mxu0 0.0
        %4104 = vmatmul.mubr.f32.gmra.mxu0 %v3795
        %v4105 = vpop.f32.mrf.mxu0
        %v4106 = vadd.f32 0.0, %v4105
        %v4107 = vpop.f32.mrf.mxu0
        %4108 = vmatprep.mubr.f32.mxu0 0.0
        %4109 = vmatmul.mubr.f32.gmra.mxu0 %v3798
        %v4110 = vpop.f32.mrf.mxu0
        %v4111 = vadd.f32 0.0, %v4110
        %v4112 = vpop.f32.mrf.mxu0
        %4113 = vmatprep.mubr.f32.mxu0 0.0
        %4114 = vmatmul.mubr.f32.gmra.mxu0 %v3801
        %v4115 = vpop.f32.mrf.mxu0
        %v4116 = vadd.f32 0.0, %v4115
        %v4117 = vpop.f32.mrf.mxu0
        %4118 = vmatprep.mubr.f32.mxu0 0.0
        %4119 = vmatmul.mubr.f32.gmra.mxu0 %v3804
        %v4120 = vpop.f32.mrf.mxu0
        %v4121 = vadd.f32 0.0, %v4120
        %v4122 = vpop.f32.mrf.mxu0
        %4123 = vmatprep.mubr.f32.mxu0 0.0
        %4124 = vmatmul.mubr.f32.gmra.mxu0 %v3807
        %v4125 = vpop.f32.mrf.mxu0
        %v4126 = vadd.f32 0.0, %v4125
        %v4127 = vpop.f32.mrf.mxu0
        %4128 = vmatprep.mubr.f32.mxu0 0.0
        %4129 = vmatmul.mubr.f32.gmra.mxu0 %v3810
        %v4130 = vpop.f32.mrf.mxu0
        %v4131 = vadd.f32 0.0, %v4130
        %v4132 = vpop.f32.mrf.mxu0
        %4133 = vmatprep.mubr.f32.mxu0 0.0
        %4134 = vmatmul.mubr.f32.gmra.mxu0 %v3813
        %v4135 = vpop.f32.mrf.mxu0
        %v4136 = vadd.f32 0.0, %v4135
        %v4137 = vpop.f32.mrf.mxu0
        %4138 = vmatprep.mubr.f32.mxu0 0.0
        %4139 = vmatmul.mubr.f32.gmra.mxu0 %v3816
        %v4140 = vpop.f32.mrf.mxu0
        %v4141 = vadd.f32 0.0, %v4140
        %v4142 = vpop.f32.mrf.mxu0
        %4143 = vmatprep.mubr.f32.mxu0 0.0
        %4144 = vmatmul.mubr.f32.gmra.mxu0 %v3819
        %v4145 = vpop.f32.mrf.mxu0
        %v4146 = vadd.f32 0.0, %v4145
        %v4147 = vpop.f32.mrf.mxu0
        %4148 = vmatprep.mubr.f32.mxu0 0.0
        %4149 = vmatmul.mubr.f32.gmra.mxu0 %v3822
        %v4150 = vpop.f32.mrf.mxu0
        %v4151 = vadd.f32 0.0, %v4150
        %v4152 = vpop.f32.mrf.mxu0
        %4153 = vmatprep.mubr.f32.mxu0 0.0
        %4154 = vmatmul.mubr.f32.gmra.mxu0 %v3825
        %v4155 = vpop.f32.mrf.mxu0
        %v4156 = vadd.f32 0.0, %v4155
        %v4157 = vpop.f32.mrf.mxu0
        %4158 = vmatprep.mubr.f32.mxu0 0.0
        %4159 = vmatmul.mubr.f32.gmra.mxu0 %v3828
        %v4160 = vpop.f32.mrf.mxu0
        %v4161 = vadd.f32 0.0, %v4160
        %v4162 = vpop.f32.mrf.mxu0
        %4163 = vmatprep.mubr.f32.mxu0 0.0
        %4164 = vmatmul.mubr.f32.gmra.mxu0 %v3831
        %v4165 = vpop.f32.mrf.mxu0
        %v4166 = vadd.f32 0.0, %v4165
        %v4167 = vpop.f32.mrf.mxu0
        %4168 = vmatprep.mubr.f32.mxu0 0.0
        %4169 = vmatmul.mubr.f32.gmra.mxu0 %v3834
        %v4170 = vpop.f32.mrf.mxu0
        %v4171 = vadd.f32 0.0, %v4170
        %v4172 = vpop.f32.mrf.mxu0
        %4173 = vmatprep.mubr.f32.mxu0 0.0
        %4174 = vmatmul.mubr.f32.gmra.mxu0 %v3837
        %v4175 = vpop.f32.mrf.mxu0
        %v4176 = vadd.f32 0.0, %v4175
        %v4177 = vpop.f32.mrf.mxu0
        %4178 = vmatprep.mubr.f32.mxu0 0.0
        %4179 = vmatmul.mubr.f32.gmra.mxu0 %v3840
        %v4180 = vpop.f32.mrf.mxu0
        %v4181 = vadd.f32 0.0, %v4180
        %v4182 = vpop.f32.mrf.mxu0
        %4183 = vmatprep.mubr.f32.mxu0 0.0
        %4184 = vmatmul.mubr.f32.gmra.mxu0 %v3843
        %v4185 = vpop.f32.mrf.mxu0
        %v4186 = vadd.f32 0.0, %v4185
        %v4187 = vpop.f32.mrf.mxu0
        %4188 = vmatprep.mubr.f32.mxu0 0.0
        %4189 = vmatmul.mubr.f32.gmra.mxu0 %v3846
        %v4190 = vpop.f32.mrf.mxu0
        %v4191 = vadd.f32 0.0, %v4190
        %v4192 = vpop.f32.mrf.mxu0
        %4193 = vmatprep.mubr.f32.mxu0 0.0
        %4194 = vmatmul.mubr.f32.gmra.mxu0 %v3849
        %v4195 = vpop.f32.mrf.mxu0
        %v4196 = vadd.f32 0.0, %v4195
        %v4197 = vpop.f32.mrf.mxu0
        %4198 = vmatprep.mubr.f32.mxu0 0.0
        %4199 = vmatmul.mubr.f32.gmra.mxu0 %v3852
        %v4200 = vpop.f32.mrf.mxu0
        %v4201 = vadd.f32 0.0, %v4200
        %v4202 = vpop.f32.mrf.mxu0
        %4203 = vmatprep.mubr.f32.mxu0 0.0
        %4204 = vmatmul.mubr.f32.gmra.mxu0 %v3855
        %v4205 = vpop.f32.mrf.mxu0
        %v4206 = vadd.f32 0.0, %v4205
        %v4207 = vpop.f32.mrf.mxu0
        %4208 = vmatprep.mubr.f32.mxu0 0.0
        %4209 = vmatmul.mubr.f32.gmra.mxu0 %v3858
        %v4210 = vpop.f32.mrf.mxu0
        %v4211 = vadd.f32 0.0, %v4210
        %v4212 = vpop.f32.mrf.mxu0
        %4213 = vmatprep.mubr.f32.mxu0 0.0
        %4214 = vmatmul.mubr.f32.gmra.mxu0 %v3861
        %v4215 = vpop.f32.mrf.mxu0
        %v4216 = vadd.f32 0.0, %v4215
        %v4217 = vpop.f32.mrf.mxu0
        %4218 = vmatprep.mubr.f32.mxu0 0.0
        %4219 = vmatmul.mubr.f32.gmra.mxu0 %v3864
        %v4220 = vpop.f32.mrf.mxu0
        %v4221 = vadd.f32 0.0, %v4220
        %v4222 = vpop.f32.mrf.mxu0
        %4223 = vmatprep.mubr.f32.mxu0 0.0
        %4224 = vmatmul.mubr.f32.gmra.mxu0 %v3867
        %v4225 = vpop.f32.mrf.mxu0
        %v4226 = vadd.f32 0.0, %v4225
        %v4227 = vpop.f32.mrf.mxu0
        %4228 = vmatprep.mubr.f32.mxu0 0.0
        %4229 = vmatmul.mubr.f32.gmra.mxu0 %v3870
        %v4230 = vpop.f32.mrf.mxu0
        %v4231 = vadd.f32 0.0, %v4230
        %v4232 = vpop.f32.mrf.mxu0
        %4233 = vmatprep.mubr.f32.mxu0 0.0
        %4234 = vmatmul.mubr.f32.gmra.mxu0 %v3873
        %v4235 = vpop.f32.mrf.mxu0
        %v4236 = vadd.f32 0.0, %v4235
        %v4237 = vpop.f32.mrf.mxu0
        %4238 = vmatprep.mubr.f32.mxu0 0.0
        %4239 = vmatmul.mubr.f32.gmra.mxu0 %v3876
        %v4240 = vpop.f32.mrf.mxu0
        %v4241 = vadd.f32 0.0, %v4240
        %v4242 = vpop.f32.mrf.mxu0
        %4243 = vmatprep.mubr.f32.mxu0 0.0
        %4244 = vmatmul.mubr.f32.gmra.mxu0 %v3879
        %v4245 = vpop.f32.mrf.mxu0
        %v4246 = vadd.f32 0.0, %v4245
        %v4247 = vpop.f32.mrf.mxu0
        %4248 = vmatprep.mubr.f32.mxu0 0.0
        %4249 = vmatmul.mubr.f32.gmra.mxu0 %v3882
        %v4250 = vpop.f32.mrf.mxu0
        %v4251 = vadd.f32 0.0, %v4250
        %v4252 = vpop.f32.mrf.mxu0
        %4253 = vmatprep.mubr.f32.mxu0 0.0
        %4254 = vmatmul.mubr.f32.gmra.mxu0 %v3885
        %v4255 = vpop.f32.mrf.mxu0
        %v4256 = vadd.f32 0.0, %v4255
        %v4257 = vpop.f32.mrf.mxu0
        %4258 = vmatprep.mubr.f32.mxu0 0.0
        %4259 = vmatmul.mubr.f32.gmra.mxu0 %v3888
        %v4260 = vpop.f32.mrf.mxu0
        %v4261 = vadd.f32 0.0, %v4260
        %v4262 = vpop.f32.mrf.mxu0
        %4263 = vmatprep.mubr.f32.mxu0 0.0
        %4264 = vmatmul.mubr.f32.gmra.mxu0 %v3891
        %v4265 = vpop.f32.mrf.mxu0
        %v4266 = vadd.f32 0.0, %v4265
        %v4267 = vpop.f32.mrf.mxu0
        %4268 = vmatprep.mubr.f32.mxu0 0.0
        %4269 = vmatmul.mubr.f32.gmra.mxu0 %v3894
        %v4270 = vpop.f32.mrf.mxu0
        %v4271 = vadd.f32 0.0, %v4270
        %v4272 = vpop.f32.mrf.mxu0
        %4273 = vmatprep.mubr.f32.mxu0 0.0
        %4274 = vmatmul.mubr.f32.gmra.mxu0 %v3897
        %v4275 = vpop.f32.mrf.mxu0
        %v4276 = vadd.f32 0.0, %v4275
        %v4277 = vpop.f32.mrf.mxu0
        %4278 = vmatprep.mubr.f32.mxu0 0.0
        %4279 = vmatmul.mubr.f32.gmra.mxu0 %v3900
        %v4280 = vpop.f32.mrf.mxu0
        %v4281 = vadd.f32 0.0, %v4280
        %v4282 = vpop.f32.mrf.mxu0
        %4283 = vmatprep.mubr.f32.mxu0 0.0
        %4284 = vmatmul.mubr.f32.gmra.mxu0 %v3903
        %v4285 = vpop.f32.mrf.mxu0
        %v4286 = vadd.f32 0.0, %v4285
        %v4287 = vpop.f32.mrf.mxu0
        %4288 = vmatprep.mubr.f32.mxu0 0.0
        %4289 = vmatmul.mubr.f32.gmra.mxu0 %v3906
        %v4290 = vpop.f32.mrf.mxu0
        %v4291 = vadd.f32 0.0, %v4290
        %v4292 = vpop.f32.mrf.mxu0
        %4293 = vmatprep.mubr.f32.mxu0 0.0
        %4294 = vmatmul.mubr.f32.gmra.mxu0 %v3909
        %v4295 = vpop.f32.mrf.mxu0
        %v4296 = vadd.f32 0.0, %v4295
        %v4297 = vpop.f32.mrf.mxu0
        %4298 = vdwg.mxu0
        %v4299 = vadd.f32 %v3589, %v3981
        %v4300 = vadd.f32 %v3590, %v3986
        %v4301 = vadd.f32 %v3591, %v3991
        %v4302 = vadd.f32 %v3592, %v3996
        %v4303 = vadd.f32 %v3593, %v4001
        %v4304 = vadd.f32 %v3594, %v4006
        %v4305 = vadd.f32 %v3595, %v4011
        %v4306 = vadd.f32 %v3596, %v4016
        %v4307 = vadd.f32 %v3597, %v4021
        %v4308 = vadd.f32 %v3598, %v4026
        %v4309 = vadd.f32 %v3599, %v4031
        %v4310 = vadd.f32 %v3600, %v4036
        %v4311 = vadd.f32 %v3601, %v4041
        %v4312 = vadd.f32 %v3602, %v4046
        %v4313 = vadd.f32 %v3603, %v4051
        %v4314 = vadd.f32 %v3604, %v4056
        %v4315 = vadd.f32 %v3605, %v4061
        %v4316 = vadd.f32 %v3606, %v4066
        %v4317 = vadd.f32 %v3607, %v4071
        %v4318 = vadd.f32 %v3608, %v4076
        %v4319 = vadd.f32 %v3609, %v4081
        %v4320 = vadd.f32 %v3610, %v4086
        %v4321 = vadd.f32 %v3611, %v4091
        %v4322 = vadd.f32 %v3612, %v4096
        %v4323 = vadd.f32 %v3613, %v4101
        %v4324 = vadd.f32 %v3614, %v4106
        %v4325 = vadd.f32 %v3615, %v4111
        %v4326 = vadd.f32 %v3616, %v4116
        %v4327 = vadd.f32 %v3617, %v4121
        %v4328 = vadd.f32 %v3618, %v4126
        %v4329 = vadd.f32 %v3619, %v4131
        %v4330 = vadd.f32 %v3620, %v4136
        %v4331 = vadd.f32 %v3621, %v4141
        %v4332 = vadd.f32 %v3622, %v4146
        %v4333 = vadd.f32 %v3623, %v4151
        %v4334 = vadd.f32 %v3624, %v4156
        %v4335 = vadd.f32 %v3625, %v4161
        %v4336 = vadd.f32 %v3626, %v4166
        %v4337 = vadd.f32 %v3627, %v4171
        %v4338 = vadd.f32 %v3628, %v4176
        %v4339 = vadd.f32 %v3629, %v4181
        %v4340 = vadd.f32 %v3630, %v4186
        %v4341 = vadd.f32 %v3631, %v4191
        %v4342 = vadd.f32 %v3632, %v4196
        %v4343 = vadd.f32 %v3633, %v4201
        %v4344 = vadd.f32 %v3634, %v4206
        %v4345 = vadd.f32 %v3635, %v4211
        %v4346 = vadd.f32 %v3636, %v4216
        %v4347 = vadd.f32 %v3637, %v4221
        %v4348 = vadd.f32 %v3638, %v4226
        %v4349 = vadd.f32 %v3639, %v4231
        %v4350 = vadd.f32 %v3640, %v4236
        %v4351 = vadd.f32 %v3641, %v4241
        %v4352 = vadd.f32 %v3642, %v4246
        %v4353 = vadd.f32 %v3643, %v4251
        %v4354 = vadd.f32 %v3644, %v4256
        %v4355 = vadd.f32 %v3645, %v4261
        %v4356 = vadd.f32 %v3646, %v4266
        %v4357 = vadd.f32 %v3647, %v4271
        %v4358 = vadd.f32 %v3648, %v4276
        %v4359 = vadd.f32 %v3649, %v4281
        %v4360 = vadd.f32 %v3650, %v4286
        %v4361 = vadd.f32 %v3651, %v4291
        %v4362 = vadd.f32 %v3652, %v4296
        %s4363 = sadd.s32 %s224, 2
        %s4364 = smul.u32 %s4363, 40
        %s4365 = scalar_lea.vmem %s215, %s4364
        %v4366 = vld [vmem:[%s4365] sm:$0xff]
        %v4367 = vld [vmem:[%s4365 + $0x8] sm:$0xff]
        %v4368 = vld [vmem:[%s4365 + $0x10] sm:$0xff]
        %v4369 = vld [vmem:[%s4365 + $0x18] sm:$0xff]
        %v4370 = vld [vmem:[%s4365 + $0x28] sm:$0xff]
        %v4371 = vld [vmem:[%s4365 + $0x30] sm:$0xff]
        %v4372 = vld [vmem:[%s4365 + $0x38] sm:$0xff]
        %v4373 = vld [vmem:[%s4365 + $0x40] sm:$0xff]
        %v4374 = vld [vmem:[%s4365 + $0x50] sm:$0xff]
        %v4375 = vld [vmem:[%s4365 + $0x58] sm:$0xff]
        %v4376 = vld [vmem:[%s4365 + $0x60] sm:$0xff]
        %v4377 = vld [vmem:[%s4365 + $0x68] sm:$0xff]
        %v4378 = vld [vmem:[%s4365 + $0x78] sm:$0xff]
        %v4379 = vld [vmem:[%s4365 + $0x80] sm:$0xff]
        %v4380 = vld [vmem:[%s4365 + $0x88] sm:$0xff]
        %v4381 = vld [vmem:[%s4365 + $0x90] sm:$0xff]
        %v4382 = vld [vmem:[%s4365 + $0xa0] sm:$0xff]
        %v4383 = vld [vmem:[%s4365 + $0xa8] sm:$0xff]
        %v4384 = vld [vmem:[%s4365 + $0xb0] sm:$0xff]
        %v4385 = vld [vmem:[%s4365 + $0xb8] sm:$0xff]
        %v4386 = vld [vmem:[%s4365 + $0xc8] sm:$0xff]
        %v4387 = vld [vmem:[%s4365 + $0xd0] sm:$0xff]
        %v4388 = vld [vmem:[%s4365 + $0xd8] sm:$0xff]
        %v4389 = vld [vmem:[%s4365 + $0xe0] sm:$0xff]
        %v4390 = vld [vmem:[%s4365 + $0xf0] sm:$0xff]
        %v4391 = vld [vmem:[%s4365 + $0xf8] sm:$0xff]
        %v4392 = vld [vmem:[%s4365 + $0x100] sm:$0xff]
        %v4393 = vld [vmem:[%s4365 + $0x108] sm:$0xff]
        %v4394 = vld [vmem:[%s4365 + $0x118] sm:$0xff]
        %v4395 = vld [vmem:[%s4365 + $0x120] sm:$0xff]
        %v4396 = vld [vmem:[%s4365 + $0x128] sm:$0xff]
        %v4397 = vld [vmem:[%s4365 + $0x130] sm:$0xff]
        %v4398 = vld [vmem:[%s4365 + $0x140] sm:$0xff]
        %v4399 = vld [vmem:[%s4365 + $0x148] sm:$0xff]
        %v4400 = vld [vmem:[%s4365 + $0x150] sm:$0xff]
        %v4401 = vld [vmem:[%s4365 + $0x158] sm:$0xff]
        %v4402 = vld [vmem:[%s4365 + $0x168] sm:$0xff]
        %v4403 = vld [vmem:[%s4365 + $0x170] sm:$0xff]
        %v4404 = vld [vmem:[%s4365 + $0x178] sm:$0xff]
        %v4405 = vld [vmem:[%s4365 + $0x180] sm:$0xff]
        %v4406 = vld [vmem:[%s4365 + $0x190] sm:$0xff]
        %v4407 = vld [vmem:[%s4365 + $0x198] sm:$0xff]
        %v4408 = vld [vmem:[%s4365 + $0x1a0] sm:$0xff]
        %v4409 = vld [vmem:[%s4365 + $0x1a8] sm:$0xff]
        %v4410 = vld [vmem:[%s4365 + $0x1b8] sm:$0xff]
        %v4411 = vld [vmem:[%s4365 + $0x1c0] sm:$0xff]
        %v4412 = vld [vmem:[%s4365 + $0x1c8] sm:$0xff]
        %v4413 = vld [vmem:[%s4365 + $0x1d0] sm:$0xff]
        %v4414 = vld [vmem:[%s4365 + $0x1e0] sm:$0xff]
        %v4415 = vld [vmem:[%s4365 + $0x1e8] sm:$0xff]
        %v4416 = vld [vmem:[%s4365 + $0x1f0] sm:$0xff]
        %v4417 = vld [vmem:[%s4365 + $0x1f8] sm:$0xff]
        %v4418 = vld [vmem:[%s4365 + $0x208] sm:$0xff]
        %v4419 = vld [vmem:[%s4365 + $0x210] sm:$0xff]
        %v4420 = vld [vmem:[%s4365 + $0x218] sm:$0xff]
        %v4421 = vld [vmem:[%s4365 + $0x220] sm:$0xff]
        %v4422 = vld [vmem:[%s4365 + $0x230] sm:$0xff]
        %v4423 = vld [vmem:[%s4365 + $0x238] sm:$0xff]
        %v4424 = vld [vmem:[%s4365 + $0x240] sm:$0xff]
        %v4425 = vld [vmem:[%s4365 + $0x248] sm:$0xff]
        %v4426 = vld [vmem:[%s4365 + $0x258] sm:$0xff]
        %v4427 = vld [vmem:[%s4365 + $0x260] sm:$0xff]
        %v4428 = vld [vmem:[%s4365 + $0x268] sm:$0xff]
        %v4429 = vld [vmem:[%s4365 + $0x270] sm:$0xff]
        %s4430 = scalar_lea.vmem %s219, 24
        %v4431 = vld [vmem:[%s4430] sm:$0x7]
        %v4433 = vsel %vm358, %v4366, 0
        %v4436 = vsel %vm358, %v4367, 0
        %v4439 = vsel %vm358, %v4368, 0
        %v4442 = vsel %vm358, %v4369, 0
        %v4445 = vsel %vm358, %v4370, 0
        %v4448 = vsel %vm358, %v4371, 0
        %v4451 = vsel %vm358, %v4372, 0
        %v4454 = vsel %vm358, %v4373, 0
        %v4457 = vsel %vm358, %v4374, 0
        %v4460 = vsel %vm358, %v4375, 0
        %v4463 = vsel %vm358, %v4376, 0
        %v4466 = vsel %vm358, %v4377, 0
        %v4469 = vsel %vm358, %v4378, 0
        %v4472 = vsel %vm358, %v4379, 0
        %v4475 = vsel %vm358, %v4380, 0
        %v4478 = vsel %vm358, %v4381, 0
        %v4481 = vsel %vm358, %v4382, 0
        %v4484 = vsel %vm358, %v4383, 0
        %v4487 = vsel %vm358, %v4384, 0
        %v4490 = vsel %vm358, %v4385, 0
        %v4493 = vsel %vm358, %v4386, 0
        %v4496 = vsel %vm358, %v4387, 0
        %v4499 = vsel %vm358, %v4388, 0
        %v4502 = vsel %vm358, %v4389, 0
        %v4505 = vsel %vm358, %v4390, 0
        %v4508 = vsel %vm358, %v4391, 0
        %v4511 = vsel %vm358, %v4392, 0
        %v4514 = vsel %vm358, %v4393, 0
        %v4517 = vsel %vm358, %v4394, 0
        %v4520 = vsel %vm358, %v4395, 0
        %v4523 = vsel %vm358, %v4396, 0
        %v4526 = vsel %vm358, %v4397, 0
        %v4529 = vsel %vm358, %v4398, 0
        %v4532 = vsel %vm358, %v4399, 0
        %v4535 = vsel %vm358, %v4400, 0
        %v4538 = vsel %vm358, %v4401, 0
        %v4541 = vsel %vm358, %v4402, 0
        %v4544 = vsel %vm358, %v4403, 0
        %v4547 = vsel %vm358, %v4404, 0
        %v4550 = vsel %vm358, %v4405, 0
        %v4553 = vsel %vm358, %v4406, 0
        %v4556 = vsel %vm358, %v4407, 0
        %v4559 = vsel %vm358, %v4408, 0
        %v4562 = vsel %vm358, %v4409, 0
        %v4565 = vsel %vm358, %v4410, 0
        %v4568 = vsel %vm358, %v4411, 0
        %v4571 = vsel %vm358, %v4412, 0
        %v4574 = vsel %vm358, %v4413, 0
        %v4577 = vsel %vm358, %v4414, 0
        %v4580 = vsel %vm358, %v4415, 0
        %v4583 = vsel %vm358, %v4416, 0
        %v4586 = vsel %vm358, %v4417, 0
        %v4589 = vsel %vm358, %v4418, 0
        %v4592 = vsel %vm358, %v4419, 0
        %v4595 = vsel %vm358, %v4420, 0
        %v4598 = vsel %vm358, %v4421, 0
        %v4601 = vsel %vm358, %v4422, 0
        %v4604 = vsel %vm358, %v4423, 0
        %v4607 = vsel %vm358, %v4424, 0
        %v4610 = vsel %vm358, %v4425, 0
        %v4613 = vsel %vm358, %v4426, 0
        %v4616 = vsel %vm358, %v4427, 0
        %v4619 = vsel %vm358, %v4428, 0
        %v4622 = vsel %vm358, %v4429, 0
        %v4625 = vsel %vm551, %v4431, 0
        %4627 = vmatprep.subr.mxu0 0.0
        %4628 = vmatpush1.msra.mxu0 0.0
        %4629 = vmatprep.subr.mxu0 0.0
        %4630 = vmatpush1.msra.mxu0 0.0
        %4631 = vmatprep.subr.mxu0 0.0
        %4632 = vmatpush1.msra.mxu0 0.0
        %4633 = vmatprep.subr.mxu0 0.0
        %4634 = vmatpush1.msra.mxu0 0.0
        %4635 = vmatprep.subr.mxu0 0.0
        %4636 = vmatpush1.msra.mxu0 0.0
        %4637 = vmatprep.subr.mxu0 0.0
        %4638 = vmatpush1.msra.mxu0 0.0
        %4639 = vmatprep.subr.mxu0 0.0
        %4640 = vmatpush1.msra.mxu0 0.0
        %4641 = vmatprep.subr.mxu0 0.0
        %4642 = vmatpush1.msra.mxu0 0.0
        %4643 = vmatprep.subr.mxu0 0.0
        %4644 = vmatpush1.msra.mxu0 0.0
        %4645 = vmatprep.subr.mxu0 0.0
        %4646 = vmatpush1.msra.mxu0 0.0
        %4647 = vmatprep.subr.mxu0 0.0
        %4648 = vmatpush1.msra.mxu0 0.0
        %4649 = vmatprep.subr.mxu0 0.0
        %4650 = vmatpush1.msra.mxu0 0.0
        %4651 = vmatprep.subr.mxu0 0.0
        %4652 = vmatpush1.msra.mxu0 0.0
        %4653 = vmatprep.subr.mxu0 0.0
        %4654 = vmatpush1.msra.mxu0 0.0
        %4655 = vmatprep.subr.mxu0 0.0
        %4656 = vmatpush1.msra.mxu0 0.0
        %4657 = vmatprep.subr.mxu0 0.0
        %4658 = vmatpush1.msra.mxu0 %v4625
        %4659 = vmatprep.subr.mxu0 0.0
        %4660 = vmatpush2.msra.mxu0 0.0
        %4661 = vmatprep.subr.mxu0 0.0
        %4662 = vmatpush2.msra.mxu0 0.0
        %4663 = vmatprep.subr.mxu0 0.0
        %4664 = vmatpush2.msra.mxu0 0.0
        %4665 = vmatprep.subr.mxu0 0.0
        %4666 = vmatpush2.msra.mxu0 0.0
        %4667 = vmatprep.subr.mxu0 0.0
        %4668 = vmatpush2.msra.mxu0 0.0
        %4669 = vmatprep.subr.mxu0 0.0
        %4670 = vmatpush2.msra.mxu0 0.0
        %4671 = vmatprep.subr.mxu0 0.0
        %4672 = vmatpush2.msra.mxu0 0.0
        %4673 = vmatprep.subr.mxu0 0.0
        %4674 = vmatpush2.msra.mxu0 0.0
        %4675 = vmatprep.subr.mxu0 0.0
        %4676 = vmatpush2.msra.mxu0 0.0
        %4677 = vmatprep.subr.mxu0 0.0
        %4678 = vmatpush2.msra.mxu0 0.0
        %4679 = vmatprep.subr.mxu0 0.0
        %4680 = vmatpush2.msra.mxu0 0.0
        %4681 = vmatprep.subr.mxu0 0.0
        %4682 = vmatpush2.msra.mxu0 0.0
        %4683 = vmatprep.subr.mxu0 0.0
        %4684 = vmatpush2.msra.mxu0 0.0
        %4685 = vmatprep.subr.mxu0 0.0
        %4686 = vmatpush2.msra.mxu0 0.0
        %4687 = vmatprep.subr.mxu0 0.0
        %4688 = vmatpush2.msra.mxu0 0.0
        %4689 = vmatprep.subr.mxu0 0.0
        %4690 = vmatpush2.msra.mxu0 0.0
        %4691 = vmatprep.mubr.f32.mxu0 0.0
        %4692 = vmatmul.mubr.f32.gmra.mxu0 %v4433
        %v4693 = vpop.f32.mrf.mxu0
        %v4694 = vadd.f32 0.0, %v4693
        %v4695 = vpop.f32.mrf.mxu0
        %4696 = vmatprep.mubr.f32.mxu0 0.0
        %4697 = vmatmul.mubr.f32.gmra.mxu0 %v4436
        %v4698 = vpop.f32.mrf.mxu0
        %v4699 = vadd.f32 0.0, %v4698
        %v4700 = vpop.f32.mrf.mxu0
        %4701 = vmatprep.mubr.f32.mxu0 0.0
        %4702 = vmatmul.mubr.f32.gmra.mxu0 %v4439
        %v4703 = vpop.f32.mrf.mxu0
        %v4704 = vadd.f32 0.0, %v4703
        %v4705 = vpop.f32.mrf.mxu0
        %4706 = vmatprep.mubr.f32.mxu0 0.0
        %4707 = vmatmul.mubr.f32.gmra.mxu0 %v4442
        %v4708 = vpop.f32.mrf.mxu0
        %v4709 = vadd.f32 0.0, %v4708
        %v4710 = vpop.f32.mrf.mxu0
        %4711 = vmatprep.mubr.f32.mxu0 0.0
        %4712 = vmatmul.mubr.f32.gmra.mxu0 %v4445
        %v4713 = vpop.f32.mrf.mxu0
        %v4714 = vadd.f32 0.0, %v4713
        %v4715 = vpop.f32.mrf.mxu0
        %4716 = vmatprep.mubr.f32.mxu0 0.0
        %4717 = vmatmul.mubr.f32.gmra.mxu0 %v4448
        %v4718 = vpop.f32.mrf.mxu0
        %v4719 = vadd.f32 0.0, %v4718
        %v4720 = vpop.f32.mrf.mxu0
        %4721 = vmatprep.mubr.f32.mxu0 0.0
        %4722 = vmatmul.mubr.f32.gmra.mxu0 %v4451
        %v4723 = vpop.f32.mrf.mxu0
        %v4724 = vadd.f32 0.0, %v4723
        %v4725 = vpop.f32.mrf.mxu0
        %4726 = vmatprep.mubr.f32.mxu0 0.0
        %4727 = vmatmul.mubr.f32.gmra.mxu0 %v4454
        %v4728 = vpop.f32.mrf.mxu0
        %v4729 = vadd.f32 0.0, %v4728
        %v4730 = vpop.f32.mrf.mxu0
        %4731 = vmatprep.mubr.f32.mxu0 0.0
        %4732 = vmatmul.mubr.f32.gmra.mxu0 %v4457
        %v4733 = vpop.f32.mrf.mxu0
        %v4734 = vadd.f32 0.0, %v4733
        %v4735 = vpop.f32.mrf.mxu0
        %4736 = vmatprep.mubr.f32.mxu0 0.0
        %4737 = vmatmul.mubr.f32.gmra.mxu0 %v4460
        %v4738 = vpop.f32.mrf.mxu0
        %v4739 = vadd.f32 0.0, %v4738
        %v4740 = vpop.f32.mrf.mxu0
        %4741 = vmatprep.mubr.f32.mxu0 0.0
        %4742 = vmatmul.mubr.f32.gmra.mxu0 %v4463
        %v4743 = vpop.f32.mrf.mxu0
        %v4744 = vadd.f32 0.0, %v4743
        %v4745 = vpop.f32.mrf.mxu0
        %4746 = vmatprep.mubr.f32.mxu0 0.0
        %4747 = vmatmul.mubr.f32.gmra.mxu0 %v4466
        %v4748 = vpop.f32.mrf.mxu0
        %v4749 = vadd.f32 0.0, %v4748
        %v4750 = vpop.f32.mrf.mxu0
        %4751 = vmatprep.mubr.f32.mxu0 0.0
        %4752 = vmatmul.mubr.f32.gmra.mxu0 %v4469
        %v4753 = vpop.f32.mrf.mxu0
        %v4754 = vadd.f32 0.0, %v4753
        %v4755 = vpop.f32.mrf.mxu0
        %4756 = vmatprep.mubr.f32.mxu0 0.0
        %4757 = vmatmul.mubr.f32.gmra.mxu0 %v4472
        %v4758 = vpop.f32.mrf.mxu0
        %v4759 = vadd.f32 0.0, %v4758
        %v4760 = vpop.f32.mrf.mxu0
        %4761 = vmatprep.mubr.f32.mxu0 0.0
        %4762 = vmatmul.mubr.f32.gmra.mxu0 %v4475
        %v4763 = vpop.f32.mrf.mxu0
        %v4764 = vadd.f32 0.0, %v4763
        %v4765 = vpop.f32.mrf.mxu0
        %4766 = vmatprep.mubr.f32.mxu0 0.0
        %4767 = vmatmul.mubr.f32.gmra.mxu0 %v4478
        %v4768 = vpop.f32.mrf.mxu0
        %v4769 = vadd.f32 0.0, %v4768
        %v4770 = vpop.f32.mrf.mxu0
        %4771 = vmatprep.mubr.f32.mxu0 0.0
        %4772 = vmatmul.mubr.f32.gmra.mxu0 %v4481
        %v4773 = vpop.f32.mrf.mxu0
        %v4774 = vadd.f32 0.0, %v4773
        %v4775 = vpop.f32.mrf.mxu0
        %4776 = vmatprep.mubr.f32.mxu0 0.0
        %4777 = vmatmul.mubr.f32.gmra.mxu0 %v4484
        %v4778 = vpop.f32.mrf.mxu0
        %v4779 = vadd.f32 0.0, %v4778
        %v4780 = vpop.f32.mrf.mxu0
        %4781 = vmatprep.mubr.f32.mxu0 0.0
        %4782 = vmatmul.mubr.f32.gmra.mxu0 %v4487
        %v4783 = vpop.f32.mrf.mxu0
        %v4784 = vadd.f32 0.0, %v4783
        %v4785 = vpop.f32.mrf.mxu0
        %4786 = vmatprep.mubr.f32.mxu0 0.0
        %4787 = vmatmul.mubr.f32.gmra.mxu0 %v4490
        %v4788 = vpop.f32.mrf.mxu0
        %v4789 = vadd.f32 0.0, %v4788
        %v4790 = vpop.f32.mrf.mxu0
        %4791 = vmatprep.mubr.f32.mxu0 0.0
        %4792 = vmatmul.mubr.f32.gmra.mxu0 %v4493
        %v4793 = vpop.f32.mrf.mxu0
        %v4794 = vadd.f32 0.0, %v4793
        %v4795 = vpop.f32.mrf.mxu0
        %4796 = vmatprep.mubr.f32.mxu0 0.0
        %4797 = vmatmul.mubr.f32.gmra.mxu0 %v4496
        %v4798 = vpop.f32.mrf.mxu0
        %v4799 = vadd.f32 0.0, %v4798
        %v4800 = vpop.f32.mrf.mxu0
        %4801 = vmatprep.mubr.f32.mxu0 0.0
        %4802 = vmatmul.mubr.f32.gmra.mxu0 %v4499
        %v4803 = vpop.f32.mrf.mxu0
        %v4804 = vadd.f32 0.0, %v4803
        %v4805 = vpop.f32.mrf.mxu0
        %4806 = vmatprep.mubr.f32.mxu0 0.0
        %4807 = vmatmul.mubr.f32.gmra.mxu0 %v4502
        %v4808 = vpop.f32.mrf.mxu0
        %v4809 = vadd.f32 0.0, %v4808
        %v4810 = vpop.f32.mrf.mxu0
        %4811 = vmatprep.mubr.f32.mxu0 0.0
        %4812 = vmatmul.mubr.f32.gmra.mxu0 %v4505
        %v4813 = vpop.f32.mrf.mxu0
        %v4814 = vadd.f32 0.0, %v4813
        %v4815 = vpop.f32.mrf.mxu0
        %4816 = vmatprep.mubr.f32.mxu0 0.0
        %4817 = vmatmul.mubr.f32.gmra.mxu0 %v4508
        %v4818 = vpop.f32.mrf.mxu0
        %v4819 = vadd.f32 0.0, %v4818
        %v4820 = vpop.f32.mrf.mxu0
        %4821 = vmatprep.mubr.f32.mxu0 0.0
        %4822 = vmatmul.mubr.f32.gmra.mxu0 %v4511
        %v4823 = vpop.f32.mrf.mxu0
        %v4824 = vadd.f32 0.0, %v4823
        %v4825 = vpop.f32.mrf.mxu0
        %4826 = vmatprep.mubr.f32.mxu0 0.0
        %4827 = vmatmul.mubr.f32.gmra.mxu0 %v4514
        %v4828 = vpop.f32.mrf.mxu0
        %v4829 = vadd.f32 0.0, %v4828
        %v4830 = vpop.f32.mrf.mxu0
        %4831 = vmatprep.mubr.f32.mxu0 0.0
        %4832 = vmatmul.mubr.f32.gmra.mxu0 %v4517
        %v4833 = vpop.f32.mrf.mxu0
        %v4834 = vadd.f32 0.0, %v4833
        %v4835 = vpop.f32.mrf.mxu0
        %4836 = vmatprep.mubr.f32.mxu0 0.0
        %4837 = vmatmul.mubr.f32.gmra.mxu0 %v4520
        %v4838 = vpop.f32.mrf.mxu0
        %v4839 = vadd.f32 0.0, %v4838
        %v4840 = vpop.f32.mrf.mxu0
        %4841 = vmatprep.mubr.f32.mxu0 0.0
        %4842 = vmatmul.mubr.f32.gmra.mxu0 %v4523
        %v4843 = vpop.f32.mrf.mxu0
        %v4844 = vadd.f32 0.0, %v4843
        %v4845 = vpop.f32.mrf.mxu0
        %4846 = vmatprep.mubr.f32.mxu0 0.0
        %4847 = vmatmul.mubr.f32.gmra.mxu0 %v4526
        %v4848 = vpop.f32.mrf.mxu0
        %v4849 = vadd.f32 0.0, %v4848
        %v4850 = vpop.f32.mrf.mxu0
        %4851 = vmatprep.mubr.f32.mxu0 0.0
        %4852 = vmatmul.mubr.f32.gmra.mxu0 %v4529
        %v4853 = vpop.f32.mrf.mxu0
        %v4854 = vadd.f32 0.0, %v4853
        %v4855 = vpop.f32.mrf.mxu0
        %4856 = vmatprep.mubr.f32.mxu0 0.0
        %4857 = vmatmul.mubr.f32.gmra.mxu0 %v4532
        %v4858 = vpop.f32.mrf.mxu0
        %v4859 = vadd.f32 0.0, %v4858
        %v4860 = vpop.f32.mrf.mxu0
        %4861 = vmatprep.mubr.f32.mxu0 0.0
        %4862 = vmatmul.mubr.f32.gmra.mxu0 %v4535
        %v4863 = vpop.f32.mrf.mxu0
        %v4864 = vadd.f32 0.0, %v4863
        %v4865 = vpop.f32.mrf.mxu0
        %4866 = vmatprep.mubr.f32.mxu0 0.0
        %4867 = vmatmul.mubr.f32.gmra.mxu0 %v4538
        %v4868 = vpop.f32.mrf.mxu0
        %v4869 = vadd.f32 0.0, %v4868
        %v4870 = vpop.f32.mrf.mxu0
        %4871 = vmatprep.mubr.f32.mxu0 0.0
        %4872 = vmatmul.mubr.f32.gmra.mxu0 %v4541
        %v4873 = vpop.f32.mrf.mxu0
        %v4874 = vadd.f32 0.0, %v4873
        %v4875 = vpop.f32.mrf.mxu0
        %4876 = vmatprep.mubr.f32.mxu0 0.0
        %4877 = vmatmul.mubr.f32.gmra.mxu0 %v4544
        %v4878 = vpop.f32.mrf.mxu0
        %v4879 = vadd.f32 0.0, %v4878
        %v4880 = vpop.f32.mrf.mxu0
        %4881 = vmatprep.mubr.f32.mxu0 0.0
        %4882 = vmatmul.mubr.f32.gmra.mxu0 %v4547
        %v4883 = vpop.f32.mrf.mxu0
        %v4884 = vadd.f32 0.0, %v4883
        %v4885 = vpop.f32.mrf.mxu0
        %4886 = vmatprep.mubr.f32.mxu0 0.0
        %4887 = vmatmul.mubr.f32.gmra.mxu0 %v4550
        %v4888 = vpop.f32.mrf.mxu0
        %v4889 = vadd.f32 0.0, %v4888
        %v4890 = vpop.f32.mrf.mxu0
        %4891 = vmatprep.mubr.f32.mxu0 0.0
        %4892 = vmatmul.mubr.f32.gmra.mxu0 %v4553
        %v4893 = vpop.f32.mrf.mxu0
        %v4894 = vadd.f32 0.0, %v4893
        %v4895 = vpop.f32.mrf.mxu0
        %4896 = vmatprep.mubr.f32.mxu0 0.0
        %4897 = vmatmul.mubr.f32.gmra.mxu0 %v4556
        %v4898 = vpop.f32.mrf.mxu0
        %v4899 = vadd.f32 0.0, %v4898
        %v4900 = vpop.f32.mrf.mxu0
        %4901 = vmatprep.mubr.f32.mxu0 0.0
        %4902 = vmatmul.mubr.f32.gmra.mxu0 %v4559
        %v4903 = vpop.f32.mrf.mxu0
        %v4904 = vadd.f32 0.0, %v4903
        %v4905 = vpop.f32.mrf.mxu0
        %4906 = vmatprep.mubr.f32.mxu0 0.0
        %4907 = vmatmul.mubr.f32.gmra.mxu0 %v4562
        %v4908 = vpop.f32.mrf.mxu0
        %v4909 = vadd.f32 0.0, %v4908
        %v4910 = vpop.f32.mrf.mxu0
        %4911 = vmatprep.mubr.f32.mxu0 0.0
        %4912 = vmatmul.mubr.f32.gmra.mxu0 %v4565
        %v4913 = vpop.f32.mrf.mxu0
        %v4914 = vadd.f32 0.0, %v4913
        %v4915 = vpop.f32.mrf.mxu0
        %4916 = vmatprep.mubr.f32.mxu0 0.0
        %4917 = vmatmul.mubr.f32.gmra.mxu0 %v4568
        %v4918 = vpop.f32.mrf.mxu0
        %v4919 = vadd.f32 0.0, %v4918
        %v4920 = vpop.f32.mrf.mxu0
        %4921 = vmatprep.mubr.f32.mxu0 0.0
        %4922 = vmatmul.mubr.f32.gmra.mxu0 %v4571
        %v4923 = vpop.f32.mrf.mxu0
        %v4924 = vadd.f32 0.0, %v4923
        %v4925 = vpop.f32.mrf.mxu0
        %4926 = vmatprep.mubr.f32.mxu0 0.0
        %4927 = vmatmul.mubr.f32.gmra.mxu0 %v4574
        %v4928 = vpop.f32.mrf.mxu0
        %v4929 = vadd.f32 0.0, %v4928
        %v4930 = vpop.f32.mrf.mxu0
        %4931 = vmatprep.mubr.f32.mxu0 0.0
        %4932 = vmatmul.mubr.f32.gmra.mxu0 %v4577
        %v4933 = vpop.f32.mrf.mxu0
        %v4934 = vadd.f32 0.0, %v4933
        %v4935 = vpop.f32.mrf.mxu0
        %4936 = vmatprep.mubr.f32.mxu0 0.0
        %4937 = vmatmul.mubr.f32.gmra.mxu0 %v4580
        %v4938 = vpop.f32.mrf.mxu0
        %v4939 = vadd.f32 0.0, %v4938
        %v4940 = vpop.f32.mrf.mxu0
        %4941 = vmatprep.mubr.f32.mxu0 0.0
        %4942 = vmatmul.mubr.f32.gmra.mxu0 %v4583
        %v4943 = vpop.f32.mrf.mxu0
        %v4944 = vadd.f32 0.0, %v4943
        %v4945 = vpop.f32.mrf.mxu0
        %4946 = vmatprep.mubr.f32.mxu0 0.0
        %4947 = vmatmul.mubr.f32.gmra.mxu0 %v4586
        %v4948 = vpop.f32.mrf.mxu0
        %v4949 = vadd.f32 0.0, %v4948
        %v4950 = vpop.f32.mrf.mxu0
        %4951 = vmatprep.mubr.f32.mxu0 0.0
        %4952 = vmatmul.mubr.f32.gmra.mxu0 %v4589
        %v4953 = vpop.f32.mrf.mxu0
        %v4954 = vadd.f32 0.0, %v4953
        %v4955 = vpop.f32.mrf.mxu0
        %4956 = vmatprep.mubr.f32.mxu0 0.0
        %4957 = vmatmul.mubr.f32.gmra.mxu0 %v4592
        %v4958 = vpop.f32.mrf.mxu0
        %v4959 = vadd.f32 0.0, %v4958
        %v4960 = vpop.f32.mrf.mxu0
        %4961 = vmatprep.mubr.f32.mxu0 0.0
        %4962 = vmatmul.mubr.f32.gmra.mxu0 %v4595
        %v4963 = vpop.f32.mrf.mxu0
        %v4964 = vadd.f32 0.0, %v4963
        %v4965 = vpop.f32.mrf.mxu0
        %4966 = vmatprep.mubr.f32.mxu0 0.0
        %4967 = vmatmul.mubr.f32.gmra.mxu0 %v4598
        %v4968 = vpop.f32.mrf.mxu0
        %v4969 = vadd.f32 0.0, %v4968
        %v4970 = vpop.f32.mrf.mxu0
        %4971 = vmatprep.mubr.f32.mxu0 0.0
        %4972 = vmatmul.mubr.f32.gmra.mxu0 %v4601
        %v4973 = vpop.f32.mrf.mxu0
        %v4974 = vadd.f32 0.0, %v4973
        %v4975 = vpop.f32.mrf.mxu0
        %4976 = vmatprep.mubr.f32.mxu0 0.0
        %4977 = vmatmul.mubr.f32.gmra.mxu0 %v4604
        %v4978 = vpop.f32.mrf.mxu0
        %v4979 = vadd.f32 0.0, %v4978
        %v4980 = vpop.f32.mrf.mxu0
        %4981 = vmatprep.mubr.f32.mxu0 0.0
        %4982 = vmatmul.mubr.f32.gmra.mxu0 %v4607
        %v4983 = vpop.f32.mrf.mxu0
        %v4984 = vadd.f32 0.0, %v4983
        %v4985 = vpop.f32.mrf.mxu0
        %4986 = vmatprep.mubr.f32.mxu0 0.0
        %4987 = vmatmul.mubr.f32.gmra.mxu0 %v4610
        %v4988 = vpop.f32.mrf.mxu0
        %v4989 = vadd.f32 0.0, %v4988
        %v4990 = vpop.f32.mrf.mxu0
        %4991 = vmatprep.mubr.f32.mxu0 0.0
        %4992 = vmatmul.mubr.f32.gmra.mxu0 %v4613
        %v4993 = vpop.f32.mrf.mxu0
        %v4994 = vadd.f32 0.0, %v4993
        %v4995 = vpop.f32.mrf.mxu0
        %4996 = vmatprep.mubr.f32.mxu0 0.0
        %4997 = vmatmul.mubr.f32.gmra.mxu0 %v4616
        %v4998 = vpop.f32.mrf.mxu0
        %v4999 = vadd.f32 0.0, %v4998
        %v5000 = vpop.f32.mrf.mxu0
        %5001 = vmatprep.mubr.f32.mxu0 0.0
        %5002 = vmatmul.mubr.f32.gmra.mxu0 %v4619
        %v5003 = vpop.f32.mrf.mxu0
        %v5004 = vadd.f32 0.0, %v5003
        %v5005 = vpop.f32.mrf.mxu0
        %5006 = vmatprep.mubr.f32.mxu0 0.0
        %5007 = vmatmul.mubr.f32.gmra.mxu0 %v4622
        %v5008 = vpop.f32.mrf.mxu0
        %v5009 = vadd.f32 0.0, %v5008
        %v5010 = vpop.f32.mrf.mxu0
        %5011 = vdwg.mxu0
        %v5012 = vadd.f32 %v4299, %v4694
        %v5013 = vadd.f32 %v4300, %v4699
        %v5014 = vadd.f32 %v4301, %v4704
        %v5015 = vadd.f32 %v4302, %v4709
        %v5016 = vadd.f32 %v4303, %v4714
        %v5017 = vadd.f32 %v4304, %v4719
        %v5018 = vadd.f32 %v4305, %v4724
        %v5019 = vadd.f32 %v4306, %v4729
        %v5020 = vadd.f32 %v4307, %v4734
        %v5021 = vadd.f32 %v4308, %v4739
        %v5022 = vadd.f32 %v4309, %v4744
        %v5023 = vadd.f32 %v4310, %v4749
        %v5024 = vadd.f32 %v4311, %v4754
        %v5025 = vadd.f32 %v4312, %v4759
        %v5026 = vadd.f32 %v4313, %v4764
        %v5027 = vadd.f32 %v4314, %v4769
        %v5028 = vadd.f32 %v4315, %v4774
        %v5029 = vadd.f32 %v4316, %v4779
        %v5030 = vadd.f32 %v4317, %v4784
        %v5031 = vadd.f32 %v4318, %v4789
        %v5032 = vadd.f32 %v4319, %v4794
        %v5033 = vadd.f32 %v4320, %v4799
        %v5034 = vadd.f32 %v4321, %v4804
        %v5035 = vadd.f32 %v4322, %v4809
        %v5036 = vadd.f32 %v4323, %v4814
        %v5037 = vadd.f32 %v4324, %v4819
        %v5038 = vadd.f32 %v4325, %v4824
        %v5039 = vadd.f32 %v4326, %v4829
        %v5040 = vadd.f32 %v4327, %v4834
        %v5041 = vadd.f32 %v4328, %v4839
        %v5042 = vadd.f32 %v4329, %v4844
        %v5043 = vadd.f32 %v4330, %v4849
        %v5044 = vadd.f32 %v4331, %v4854
        %v5045 = vadd.f32 %v4332, %v4859
        %v5046 = vadd.f32 %v4333, %v4864
        %v5047 = vadd.f32 %v4334, %v4869
        %v5048 = vadd.f32 %v4335, %v4874
        %v5049 = vadd.f32 %v4336, %v4879
        %v5050 = vadd.f32 %v4337, %v4884
        %v5051 = vadd.f32 %v4338, %v4889
        %v5052 = vadd.f32 %v4339, %v4894
        %v5053 = vadd.f32 %v4340, %v4899
        %v5054 = vadd.f32 %v4341, %v4904
        %v5055 = vadd.f32 %v4342, %v4909
        %v5056 = vadd.f32 %v4343, %v4914
        %v5057 = vadd.f32 %v4344, %v4919
        %v5058 = vadd.f32 %v4345, %v4924
        %v5059 = vadd.f32 %v4346, %v4929
        %v5060 = vadd.f32 %v4347, %v4934
        %v5061 = vadd.f32 %v4348, %v4939
        %v5062 = vadd.f32 %v4349, %v4944
        %v5063 = vadd.f32 %v4350, %v4949
        %v5064 = vadd.f32 %v4351, %v4954
        %v5065 = vadd.f32 %v4352, %v4959
        %v5066 = vadd.f32 %v4353, %v4964
        %v5067 = vadd.f32 %v4354, %v4969
        %v5068 = vadd.f32 %v4355, %v4974
        %v5069 = vadd.f32 %v4356, %v4979
        %v5070 = vadd.f32 %v4357, %v4984
        %v5071 = vadd.f32 %v4358, %v4989
        %v5072 = vadd.f32 %v4359, %v4994
        %v5073 = vadd.f32 %v4360, %v4999
        %v5074 = vadd.f32 %v4361, %v5004
        %v5075 = vadd.f32 %v4362, %v5009
        %v5076 = vld [vmem:[%s4365 + $0x1] sm:$0xff]
        %v5077 = vld [vmem:[%s4365 + $0x9] sm:$0xff]
        %v5078 = vld [vmem:[%s4365 + $0x11] sm:$0xff]
        %v5079 = vld [vmem:[%s4365 + $0x19] sm:$0xff]
        %v5080 = vld [vmem:[%s4365 + $0x29] sm:$0xff]
        %v5081 = vld [vmem:[%s4365 + $0x31] sm:$0xff]
        %v5082 = vld [vmem:[%s4365 + $0x39] sm:$0xff]
        %v5083 = vld [vmem:[%s4365 + $0x41] sm:$0xff]
        %v5084 = vld [vmem:[%s4365 + $0x51] sm:$0xff]
        %v5085 = vld [vmem:[%s4365 + $0x59] sm:$0xff]
        %v5086 = vld [vmem:[%s4365 + $0x61] sm:$0xff]
        %v5087 = vld [vmem:[%s4365 + $0x69] sm:$0xff]
        %v5088 = vld [vmem:[%s4365 + $0x79] sm:$0xff]
        %v5089 = vld [vmem:[%s4365 + $0x81] sm:$0xff]
        %v5090 = vld [vmem:[%s4365 + $0x89] sm:$0xff]
        %v5091 = vld [vmem:[%s4365 + $0x91] sm:$0xff]
        %v5092 = vld [vmem:[%s4365 + $0xa1] sm:$0xff]
        %v5093 = vld [vmem:[%s4365 + $0xa9] sm:$0xff]
        %v5094 = vld [vmem:[%s4365 + $0xb1] sm:$0xff]
        %v5095 = vld [vmem:[%s4365 + $0xb9] sm:$0xff]
        %v5096 = vld [vmem:[%s4365 + $0xc9] sm:$0xff]
        %v5097 = vld [vmem:[%s4365 + $0xd1] sm:$0xff]
        %v5098 = vld [vmem:[%s4365 + $0xd9] sm:$0xff]
        %v5099 = vld [vmem:[%s4365 + $0xe1] sm:$0xff]
        %v5100 = vld [vmem:[%s4365 + $0xf1] sm:$0xff]
        %v5101 = vld [vmem:[%s4365 + $0xf9] sm:$0xff]
        %v5102 = vld [vmem:[%s4365 + $0x101] sm:$0xff]
        %v5103 = vld [vmem:[%s4365 + $0x109] sm:$0xff]
        %v5104 = vld [vmem:[%s4365 + $0x119] sm:$0xff]
        %v5105 = vld [vmem:[%s4365 + $0x121] sm:$0xff]
        %v5106 = vld [vmem:[%s4365 + $0x129] sm:$0xff]
        %v5107 = vld [vmem:[%s4365 + $0x131] sm:$0xff]
        %v5108 = vld [vmem:[%s4365 + $0x141] sm:$0xff]
        %v5109 = vld [vmem:[%s4365 + $0x149] sm:$0xff]
        %v5110 = vld [vmem:[%s4365 + $0x151] sm:$0xff]
        %v5111 = vld [vmem:[%s4365 + $0x159] sm:$0xff]
        %v5112 = vld [vmem:[%s4365 + $0x169] sm:$0xff]
        %v5113 = vld [vmem:[%s4365 + $0x171] sm:$0xff]
        %v5114 = vld [vmem:[%s4365 + $0x179] sm:$0xff]
        %v5115 = vld [vmem:[%s4365 + $0x181] sm:$0xff]
        %v5116 = vld [vmem:[%s4365 + $0x191] sm:$0xff]
        %v5117 = vld [vmem:[%s4365 + $0x199] sm:$0xff]
        %v5118 = vld [vmem:[%s4365 + $0x1a1] sm:$0xff]
        %v5119 = vld [vmem:[%s4365 + $0x1a9] sm:$0xff]
        %v5120 = vld [vmem:[%s4365 + $0x1b9] sm:$0xff]
        %v5121 = vld [vmem:[%s4365 + $0x1c1] sm:$0xff]
        %v5122 = vld [vmem:[%s4365 + $0x1c9] sm:$0xff]
        %v5123 = vld [vmem:[%s4365 + $0x1d1] sm:$0xff]
        %v5124 = vld [vmem:[%s4365 + $0x1e1] sm:$0xff]
        %v5125 = vld [vmem:[%s4365 + $0x1e9] sm:$0xff]
        %v5126 = vld [vmem:[%s4365 + $0x1f1] sm:$0xff]
        %v5127 = vld [vmem:[%s4365 + $0x1f9] sm:$0xff]
        %v5128 = vld [vmem:[%s4365 + $0x209] sm:$0xff]
        %v5129 = vld [vmem:[%s4365 + $0x211] sm:$0xff]
        %v5130 = vld [vmem:[%s4365 + $0x219] sm:$0xff]
        %v5131 = vld [vmem:[%s4365 + $0x221] sm:$0xff]
        %v5132 = vld [vmem:[%s4365 + $0x231] sm:$0xff]
        %v5133 = vld [vmem:[%s4365 + $0x239] sm:$0xff]
        %v5134 = vld [vmem:[%s4365 + $0x241] sm:$0xff]
        %v5135 = vld [vmem:[%s4365 + $0x249] sm:$0xff]
        %v5136 = vld [vmem:[%s4365 + $0x259] sm:$0xff]
        %v5137 = vld [vmem:[%s4365 + $0x261] sm:$0xff]
        %v5138 = vld [vmem:[%s4365 + $0x269] sm:$0xff]
        %v5139 = vld [vmem:[%s4365 + $0x271] sm:$0xff]
        %s5140 = scalar_lea.vmem %s219, 28
        %v5141 = vld [vmem:[%s5140] sm:$0x7]
        %v5143 = vsel %vm358, %v5076, 0
        %v5146 = vsel %vm358, %v5077, 0
        %v5149 = vsel %vm358, %v5078, 0
        %v5152 = vsel %vm358, %v5079, 0
        %v5155 = vsel %vm358, %v5080, 0
        %v5158 = vsel %vm358, %v5081, 0
        %v5161 = vsel %vm358, %v5082, 0
        %v5164 = vsel %vm358, %v5083, 0
        %v5167 = vsel %vm358, %v5084, 0
        %v5170 = vsel %vm358, %v5085, 0
        %v5173 = vsel %vm358, %v5086, 0
        %v5176 = vsel %vm358, %v5087, 0
        %v5179 = vsel %vm358, %v5088, 0
        %v5182 = vsel %vm358, %v5089, 0
        %v5185 = vsel %vm358, %v5090, 0
        %v5188 = vsel %vm358, %v5091, 0
        %v5191 = vsel %vm358, %v5092, 0
        %v5194 = vsel %vm358, %v5093, 0
        %v5197 = vsel %vm358, %v5094, 0
        %v5200 = vsel %vm358, %v5095, 0
        %v5203 = vsel %vm358, %v5096, 0
        %v5206 = vsel %vm358, %v5097, 0
        %v5209 = vsel %vm358, %v5098, 0
        %v5212 = vsel %vm358, %v5099, 0
        %v5215 = vsel %vm358, %v5100, 0
        %v5218 = vsel %vm358, %v5101, 0
        %v5221 = vsel %vm358, %v5102, 0
        %v5224 = vsel %vm358, %v5103, 0
        %v5227 = vsel %vm358, %v5104, 0
        %v5230 = vsel %vm358, %v5105, 0
        %v5233 = vsel %vm358, %v5106, 0
        %v5236 = vsel %vm358, %v5107, 0
        %v5239 = vsel %vm358, %v5108, 0
        %v5242 = vsel %vm358, %v5109, 0
        %v5245 = vsel %vm358, %v5110, 0
        %v5248 = vsel %vm358, %v5111, 0
        %v5251 = vsel %vm358, %v5112, 0
        %v5254 = vsel %vm358, %v5113, 0
        %v5257 = vsel %vm358, %v5114, 0
        %v5260 = vsel %vm358, %v5115, 0
        %v5263 = vsel %vm358, %v5116, 0
        %v5266 = vsel %vm358, %v5117, 0
        %v5269 = vsel %vm358, %v5118, 0
        %v5272 = vsel %vm358, %v5119, 0
        %v5275 = vsel %vm358, %v5120, 0
        %v5278 = vsel %vm358, %v5121, 0
        %v5281 = vsel %vm358, %v5122, 0
        %v5284 = vsel %vm358, %v5123, 0
        %v5287 = vsel %vm358, %v5124, 0
        %v5290 = vsel %vm358, %v5125, 0
        %v5293 = vsel %vm358, %v5126, 0
        %v5296 = vsel %vm358, %v5127, 0
        %v5299 = vsel %vm358, %v5128, 0
        %v5302 = vsel %vm358, %v5129, 0
        %v5305 = vsel %vm358, %v5130, 0
        %v5308 = vsel %vm358, %v5131, 0
        %v5311 = vsel %vm358, %v5132, 0
        %v5314 = vsel %vm358, %v5133, 0
        %v5317 = vsel %vm358, %v5134, 0
        %v5320 = vsel %vm358, %v5135, 0
        %v5323 = vsel %vm358, %v5136, 0
        %v5326 = vsel %vm358, %v5137, 0
        %v5329 = vsel %vm358, %v5138, 0
        %v5332 = vsel %vm358, %v5139, 0
        %v5335 = vsel %vm551, %v5141, 0
        %5337 = vmatprep.subr.mxu0 0.0
        %5338 = vmatpush1.msra.mxu0 0.0
        %5339 = vmatprep.subr.mxu0 0.0
        %5340 = vmatpush1.msra.mxu0 0.0
        %5341 = vmatprep.subr.mxu0 0.0
        %5342 = vmatpush1.msra.mxu0 0.0
        %5343 = vmatprep.subr.mxu0 0.0
        %5344 = vmatpush1.msra.mxu0 0.0
        %5345 = vmatprep.subr.mxu0 0.0
        %5346 = vmatpush1.msra.mxu0 0.0
        %5347 = vmatprep.subr.mxu0 0.0
        %5348 = vmatpush1.msra.mxu0 0.0
        %5349 = vmatprep.subr.mxu0 0.0
        %5350 = vmatpush1.msra.mxu0 0.0
        %5351 = vmatprep.subr.mxu0 0.0
        %5352 = vmatpush1.msra.mxu0 0.0
        %5353 = vmatprep.subr.mxu0 0.0
        %5354 = vmatpush1.msra.mxu0 0.0
        %5355 = vmatprep.subr.mxu0 0.0
        %5356 = vmatpush1.msra.mxu0 0.0
        %5357 = vmatprep.subr.mxu0 0.0
        %5358 = vmatpush1.msra.mxu0 0.0
        %5359 = vmatprep.subr.mxu0 0.0
        %5360 = vmatpush1.msra.mxu0 0.0
        %5361 = vmatprep.subr.mxu0 0.0
        %5362 = vmatpush1.msra.mxu0 0.0
        %5363 = vmatprep.subr.mxu0 0.0
        %5364 = vmatpush1.msra.mxu0 0.0
        %5365 = vmatprep.subr.mxu0 0.0
        %5366 = vmatpush1.msra.mxu0 0.0
        %5367 = vmatprep.subr.mxu0 0.0
        %5368 = vmatpush1.msra.mxu0 %v5335
        %5369 = vmatprep.subr.mxu0 0.0
        %5370 = vmatpush2.msra.mxu0 0.0
        %5371 = vmatprep.subr.mxu0 0.0
        %5372 = vmatpush2.msra.mxu0 0.0
        %5373 = vmatprep.subr.mxu0 0.0
        %5374 = vmatpush2.msra.mxu0 0.0
        %5375 = vmatprep.subr.mxu0 0.0
        %5376 = vmatpush2.msra.mxu0 0.0
        %5377 = vmatprep.subr.mxu0 0.0
        %5378 = vmatpush2.msra.mxu0 0.0
        %5379 = vmatprep.subr.mxu0 0.0
        %5380 = vmatpush2.msra.mxu0 0.0
        %5381 = vmatprep.subr.mxu0 0.0
        %5382 = vmatpush2.msra.mxu0 0.0
        %5383 = vmatprep.subr.mxu0 0.0
        %5384 = vmatpush2.msra.mxu0 0.0
        %5385 = vmatprep.subr.mxu0 0.0
        %5386 = vmatpush2.msra.mxu0 0.0
        %5387 = vmatprep.subr.mxu0 0.0
        %5388 = vmatpush2.msra.mxu0 0.0
        %5389 = vmatprep.subr.mxu0 0.0
        %5390 = vmatpush2.msra.mxu0 0.0
        %5391 = vmatprep.subr.mxu0 0.0
        %5392 = vmatpush2.msra.mxu0 0.0
        %5393 = vmatprep.subr.mxu0 0.0
        %5394 = vmatpush2.msra.mxu0 0.0
        %5395 = vmatprep.subr.mxu0 0.0
        %5396 = vmatpush2.msra.mxu0 0.0
        %5397 = vmatprep.subr.mxu0 0.0
        %5398 = vmatpush2.msra.mxu0 0.0
        %5399 = vmatprep.subr.mxu0 0.0
        %5400 = vmatpush2.msra.mxu0 0.0
        %5401 = vmatprep.mubr.f32.mxu0 0.0
        %5402 = vmatmul.mubr.f32.gmra.mxu0 %v5143
        %v5403 = vpop.f32.mrf.mxu0
        %v5404 = vadd.f32 0.0, %v5403
        %v5405 = vpop.f32.mrf.mxu0
        %5406 = vmatprep.mubr.f32.mxu0 0.0
        %5407 = vmatmul.mubr.f32.gmra.mxu0 %v5146
        %v5408 = vpop.f32.mrf.mxu0
        %v5409 = vadd.f32 0.0, %v5408
        %v5410 = vpop.f32.mrf.mxu0
        %5411 = vmatprep.mubr.f32.mxu0 0.0
        %5412 = vmatmul.mubr.f32.gmra.mxu0 %v5149
        %v5413 = vpop.f32.mrf.mxu0
        %v5414 = vadd.f32 0.0, %v5413
        %v5415 = vpop.f32.mrf.mxu0
        %5416 = vmatprep.mubr.f32.mxu0 0.0
        %5417 = vmatmul.mubr.f32.gmra.mxu0 %v5152
        %v5418 = vpop.f32.mrf.mxu0
        %v5419 = vadd.f32 0.0, %v5418
        %v5420 = vpop.f32.mrf.mxu0
        %5421 = vmatprep.mubr.f32.mxu0 0.0
        %5422 = vmatmul.mubr.f32.gmra.mxu0 %v5155
        %v5423 = vpop.f32.mrf.mxu0
        %v5424 = vadd.f32 0.0, %v5423
        %v5425 = vpop.f32.mrf.mxu0
        %5426 = vmatprep.mubr.f32.mxu0 0.0
        %5427 = vmatmul.mubr.f32.gmra.mxu0 %v5158
        %v5428 = vpop.f32.mrf.mxu0
        %v5429 = vadd.f32 0.0, %v5428
        %v5430 = vpop.f32.mrf.mxu0
        %5431 = vmatprep.mubr.f32.mxu0 0.0
        %5432 = vmatmul.mubr.f32.gmra.mxu0 %v5161
        %v5433 = vpop.f32.mrf.mxu0
        %v5434 = vadd.f32 0.0, %v5433
        %v5435 = vpop.f32.mrf.mxu0
        %5436 = vmatprep.mubr.f32.mxu0 0.0
        %5437 = vmatmul.mubr.f32.gmra.mxu0 %v5164
        %v5438 = vpop.f32.mrf.mxu0
        %v5439 = vadd.f32 0.0, %v5438
        %v5440 = vpop.f32.mrf.mxu0
        %5441 = vmatprep.mubr.f32.mxu0 0.0
        %5442 = vmatmul.mubr.f32.gmra.mxu0 %v5167
        %v5443 = vpop.f32.mrf.mxu0
        %v5444 = vadd.f32 0.0, %v5443
        %v5445 = vpop.f32.mrf.mxu0
        %5446 = vmatprep.mubr.f32.mxu0 0.0
        %5447 = vmatmul.mubr.f32.gmra.mxu0 %v5170
        %v5448 = vpop.f32.mrf.mxu0
        %v5449 = vadd.f32 0.0, %v5448
        %v5450 = vpop.f32.mrf.mxu0
        %5451 = vmatprep.mubr.f32.mxu0 0.0
        %5452 = vmatmul.mubr.f32.gmra.mxu0 %v5173
        %v5453 = vpop.f32.mrf.mxu0
        %v5454 = vadd.f32 0.0, %v5453
        %v5455 = vpop.f32.mrf.mxu0
        %5456 = vmatprep.mubr.f32.mxu0 0.0
        %5457 = vmatmul.mubr.f32.gmra.mxu0 %v5176
        %v5458 = vpop.f32.mrf.mxu0
        %v5459 = vadd.f32 0.0, %v5458
        %v5460 = vpop.f32.mrf.mxu0
        %5461 = vmatprep.mubr.f32.mxu0 0.0
        %5462 = vmatmul.mubr.f32.gmra.mxu0 %v5179
        %v5463 = vpop.f32.mrf.mxu0
        %v5464 = vadd.f32 0.0, %v5463
        %v5465 = vpop.f32.mrf.mxu0
        %5466 = vmatprep.mubr.f32.mxu0 0.0
        %5467 = vmatmul.mubr.f32.gmra.mxu0 %v5182
        %v5468 = vpop.f32.mrf.mxu0
        %v5469 = vadd.f32 0.0, %v5468
        %v5470 = vpop.f32.mrf.mxu0
        %5471 = vmatprep.mubr.f32.mxu0 0.0
        %5472 = vmatmul.mubr.f32.gmra.mxu0 %v5185
        %v5473 = vpop.f32.mrf.mxu0
        %v5474 = vadd.f32 0.0, %v5473
        %v5475 = vpop.f32.mrf.mxu0
        %5476 = vmatprep.mubr.f32.mxu0 0.0
        %5477 = vmatmul.mubr.f32.gmra.mxu0 %v5188
        %v5478 = vpop.f32.mrf.mxu0
        %v5479 = vadd.f32 0.0, %v5478
        %v5480 = vpop.f32.mrf.mxu0
        %5481 = vmatprep.mubr.f32.mxu0 0.0
        %5482 = vmatmul.mubr.f32.gmra.mxu0 %v5191
        %v5483 = vpop.f32.mrf.mxu0
        %v5484 = vadd.f32 0.0, %v5483
        %v5485 = vpop.f32.mrf.mxu0
        %5486 = vmatprep.mubr.f32.mxu0 0.0
        %5487 = vmatmul.mubr.f32.gmra.mxu0 %v5194
        %v5488 = vpop.f32.mrf.mxu0
        %v5489 = vadd.f32 0.0, %v5488
        %v5490 = vpop.f32.mrf.mxu0
        %5491 = vmatprep.mubr.f32.mxu0 0.0
        %5492 = vmatmul.mubr.f32.gmra.mxu0 %v5197
        %v5493 = vpop.f32.mrf.mxu0
        %v5494 = vadd.f32 0.0, %v5493
        %v5495 = vpop.f32.mrf.mxu0
        %5496 = vmatprep.mubr.f32.mxu0 0.0
        %5497 = vmatmul.mubr.f32.gmra.mxu0 %v5200
        %v5498 = vpop.f32.mrf.mxu0
        %v5499 = vadd.f32 0.0, %v5498
        %v5500 = vpop.f32.mrf.mxu0
        %5501 = vmatprep.mubr.f32.mxu0 0.0
        %5502 = vmatmul.mubr.f32.gmra.mxu0 %v5203
        %v5503 = vpop.f32.mrf.mxu0
        %v5504 = vadd.f32 0.0, %v5503
        %v5505 = vpop.f32.mrf.mxu0
        %5506 = vmatprep.mubr.f32.mxu0 0.0
        %5507 = vmatmul.mubr.f32.gmra.mxu0 %v5206
        %v5508 = vpop.f32.mrf.mxu0
        %v5509 = vadd.f32 0.0, %v5508
        %v5510 = vpop.f32.mrf.mxu0
        %5511 = vmatprep.mubr.f32.mxu0 0.0
        %5512 = vmatmul.mubr.f32.gmra.mxu0 %v5209
        %v5513 = vpop.f32.mrf.mxu0
        %v5514 = vadd.f32 0.0, %v5513
        %v5515 = vpop.f32.mrf.mxu0
        %5516 = vmatprep.mubr.f32.mxu0 0.0
        %5517 = vmatmul.mubr.f32.gmra.mxu0 %v5212
        %v5518 = vpop.f32.mrf.mxu0
        %v5519 = vadd.f32 0.0, %v5518
        %v5520 = vpop.f32.mrf.mxu0
        %5521 = vmatprep.mubr.f32.mxu0 0.0
        %5522 = vmatmul.mubr.f32.gmra.mxu0 %v5215
        %v5523 = vpop.f32.mrf.mxu0
        %v5524 = vadd.f32 0.0, %v5523
        %v5525 = vpop.f32.mrf.mxu0
        %5526 = vmatprep.mubr.f32.mxu0 0.0
        %5527 = vmatmul.mubr.f32.gmra.mxu0 %v5218
        %v5528 = vpop.f32.mrf.mxu0
        %v5529 = vadd.f32 0.0, %v5528
        %v5530 = vpop.f32.mrf.mxu0
        %5531 = vmatprep.mubr.f32.mxu0 0.0
        %5532 = vmatmul.mubr.f32.gmra.mxu0 %v5221
        %v5533 = vpop.f32.mrf.mxu0
        %v5534 = vadd.f32 0.0, %v5533
        %v5535 = vpop.f32.mrf.mxu0
        %5536 = vmatprep.mubr.f32.mxu0 0.0
        %5537 = vmatmul.mubr.f32.gmra.mxu0 %v5224
        %v5538 = vpop.f32.mrf.mxu0
        %v5539 = vadd.f32 0.0, %v5538
        %v5540 = vpop.f32.mrf.mxu0
        %5541 = vmatprep.mubr.f32.mxu0 0.0
        %5542 = vmatmul.mubr.f32.gmra.mxu0 %v5227
        %v5543 = vpop.f32.mrf.mxu0
        %v5544 = vadd.f32 0.0, %v5543
        %v5545 = vpop.f32.mrf.mxu0
        %5546 = vmatprep.mubr.f32.mxu0 0.0
        %5547 = vmatmul.mubr.f32.gmra.mxu0 %v5230
        %v5548 = vpop.f32.mrf.mxu0
        %v5549 = vadd.f32 0.0, %v5548
        %v5550 = vpop.f32.mrf.mxu0
        %5551 = vmatprep.mubr.f32.mxu0 0.0
        %5552 = vmatmul.mubr.f32.gmra.mxu0 %v5233
        %v5553 = vpop.f32.mrf.mxu0
        %v5554 = vadd.f32 0.0, %v5553
        %v5555 = vpop.f32.mrf.mxu0
        %5556 = vmatprep.mubr.f32.mxu0 0.0
        %5557 = vmatmul.mubr.f32.gmra.mxu0 %v5236
        %v5558 = vpop.f32.mrf.mxu0
        %v5559 = vadd.f32 0.0, %v5558
        %v5560 = vpop.f32.mrf.mxu0
        %5561 = vmatprep.mubr.f32.mxu0 0.0
        %5562 = vmatmul.mubr.f32.gmra.mxu0 %v5239
        %v5563 = vpop.f32.mrf.mxu0
        %v5564 = vadd.f32 0.0, %v5563
        %v5565 = vpop.f32.mrf.mxu0
        %5566 = vmatprep.mubr.f32.mxu0 0.0
        %5567 = vmatmul.mubr.f32.gmra.mxu0 %v5242
        %v5568 = vpop.f32.mrf.mxu0
        %v5569 = vadd.f32 0.0, %v5568
        %v5570 = vpop.f32.mrf.mxu0
        %5571 = vmatprep.mubr.f32.mxu0 0.0
        %5572 = vmatmul.mubr.f32.gmra.mxu0 %v5245
        %v5573 = vpop.f32.mrf.mxu0
        %v5574 = vadd.f32 0.0, %v5573
        %v5575 = vpop.f32.mrf.mxu0
        %5576 = vmatprep.mubr.f32.mxu0 0.0
        %5577 = vmatmul.mubr.f32.gmra.mxu0 %v5248
        %v5578 = vpop.f32.mrf.mxu0
        %v5579 = vadd.f32 0.0, %v5578
        %v5580 = vpop.f32.mrf.mxu0
        %5581 = vmatprep.mubr.f32.mxu0 0.0
        %5582 = vmatmul.mubr.f32.gmra.mxu0 %v5251
        %v5583 = vpop.f32.mrf.mxu0
        %v5584 = vadd.f32 0.0, %v5583
        %v5585 = vpop.f32.mrf.mxu0
        %5586 = vmatprep.mubr.f32.mxu0 0.0
        %5587 = vmatmul.mubr.f32.gmra.mxu0 %v5254
        %v5588 = vpop.f32.mrf.mxu0
        %v5589 = vadd.f32 0.0, %v5588
        %v5590 = vpop.f32.mrf.mxu0
        %5591 = vmatprep.mubr.f32.mxu0 0.0
        %5592 = vmatmul.mubr.f32.gmra.mxu0 %v5257
        %v5593 = vpop.f32.mrf.mxu0
        %v5594 = vadd.f32 0.0, %v5593
        %v5595 = vpop.f32.mrf.mxu0
        %5596 = vmatprep.mubr.f32.mxu0 0.0
        %5597 = vmatmul.mubr.f32.gmra.mxu0 %v5260
        %v5598 = vpop.f32.mrf.mxu0
        %v5599 = vadd.f32 0.0, %v5598
        %v5600 = vpop.f32.mrf.mxu0
        %5601 = vmatprep.mubr.f32.mxu0 0.0
        %5602 = vmatmul.mubr.f32.gmra.mxu0 %v5263
        %v5603 = vpop.f32.mrf.mxu0
        %v5604 = vadd.f32 0.0, %v5603
        %v5605 = vpop.f32.mrf.mxu0
        %5606 = vmatprep.mubr.f32.mxu0 0.0
        %5607 = vmatmul.mubr.f32.gmra.mxu0 %v5266
        %v5608 = vpop.f32.mrf.mxu0
        %v5609 = vadd.f32 0.0, %v5608
        %v5610 = vpop.f32.mrf.mxu0
        %5611 = vmatprep.mubr.f32.mxu0 0.0
        %5612 = vmatmul.mubr.f32.gmra.mxu0 %v5269
        %v5613 = vpop.f32.mrf.mxu0
        %v5614 = vadd.f32 0.0, %v5613
        %v5615 = vpop.f32.mrf.mxu0
        %5616 = vmatprep.mubr.f32.mxu0 0.0
        %5617 = vmatmul.mubr.f32.gmra.mxu0 %v5272
        %v5618 = vpop.f32.mrf.mxu0
        %v5619 = vadd.f32 0.0, %v5618
        %v5620 = vpop.f32.mrf.mxu0
        %5621 = vmatprep.mubr.f32.mxu0 0.0
        %5622 = vmatmul.mubr.f32.gmra.mxu0 %v5275
        %v5623 = vpop.f32.mrf.mxu0
        %v5624 = vadd.f32 0.0, %v5623
        %v5625 = vpop.f32.mrf.mxu0
        %5626 = vmatprep.mubr.f32.mxu0 0.0
        %5627 = vmatmul.mubr.f32.gmra.mxu0 %v5278
        %v5628 = vpop.f32.mrf.mxu0
        %v5629 = vadd.f32 0.0, %v5628
        %v5630 = vpop.f32.mrf.mxu0
        %5631 = vmatprep.mubr.f32.mxu0 0.0
        %5632 = vmatmul.mubr.f32.gmra.mxu0 %v5281
        %v5633 = vpop.f32.mrf.mxu0
        %v5634 = vadd.f32 0.0, %v5633
        %v5635 = vpop.f32.mrf.mxu0
        %5636 = vmatprep.mubr.f32.mxu0 0.0
        %5637 = vmatmul.mubr.f32.gmra.mxu0 %v5284
        %v5638 = vpop.f32.mrf.mxu0
        %v5639 = vadd.f32 0.0, %v5638
        %v5640 = vpop.f32.mrf.mxu0
        %5641 = vmatprep.mubr.f32.mxu0 0.0
        %5642 = vmatmul.mubr.f32.gmra.mxu0 %v5287
        %v5643 = vpop.f32.mrf.mxu0
        %v5644 = vadd.f32 0.0, %v5643
        %v5645 = vpop.f32.mrf.mxu0
        %5646 = vmatprep.mubr.f32.mxu0 0.0
        %5647 = vmatmul.mubr.f32.gmra.mxu0 %v5290
        %v5648 = vpop.f32.mrf.mxu0
        %v5649 = vadd.f32 0.0, %v5648
        %v5650 = vpop.f32.mrf.mxu0
        %5651 = vmatprep.mubr.f32.mxu0 0.0
        %5652 = vmatmul.mubr.f32.gmra.mxu0 %v5293
        %v5653 = vpop.f32.mrf.mxu0
        %v5654 = vadd.f32 0.0, %v5653
        %v5655 = vpop.f32.mrf.mxu0
        %5656 = vmatprep.mubr.f32.mxu0 0.0
        %5657 = vmatmul.mubr.f32.gmra.mxu0 %v5296
        %v5658 = vpop.f32.mrf.mxu0
        %v5659 = vadd.f32 0.0, %v5658
        %v5660 = vpop.f32.mrf.mxu0
        %5661 = vmatprep.mubr.f32.mxu0 0.0
        %5662 = vmatmul.mubr.f32.gmra.mxu0 %v5299
        %v5663 = vpop.f32.mrf.mxu0
        %v5664 = vadd.f32 0.0, %v5663
        %v5665 = vpop.f32.mrf.mxu0
        %5666 = vmatprep.mubr.f32.mxu0 0.0
        %5667 = vmatmul.mubr.f32.gmra.mxu0 %v5302
        %v5668 = vpop.f32.mrf.mxu0
        %v5669 = vadd.f32 0.0, %v5668
        %v5670 = vpop.f32.mrf.mxu0
        %5671 = vmatprep.mubr.f32.mxu0 0.0
        %5672 = vmatmul.mubr.f32.gmra.mxu0 %v5305
        %v5673 = vpop.f32.mrf.mxu0
        %v5674 = vadd.f32 0.0, %v5673
        %v5675 = vpop.f32.mrf.mxu0
        %5676 = vmatprep.mubr.f32.mxu0 0.0
        %5677 = vmatmul.mubr.f32.gmra.mxu0 %v5308
        %v5678 = vpop.f32.mrf.mxu0
        %v5679 = vadd.f32 0.0, %v5678
        %v5680 = vpop.f32.mrf.mxu0
        %5681 = vmatprep.mubr.f32.mxu0 0.0
        %5682 = vmatmul.mubr.f32.gmra.mxu0 %v5311
        %v5683 = vpop.f32.mrf.mxu0
        %v5684 = vadd.f32 0.0, %v5683
        %v5685 = vpop.f32.mrf.mxu0
        %5686 = vmatprep.mubr.f32.mxu0 0.0
        %5687 = vmatmul.mubr.f32.gmra.mxu0 %v5314
        %v5688 = vpop.f32.mrf.mxu0
        %v5689 = vadd.f32 0.0, %v5688
        %v5690 = vpop.f32.mrf.mxu0
        %5691 = vmatprep.mubr.f32.mxu0 0.0
        %5692 = vmatmul.mubr.f32.gmra.mxu0 %v5317
        %v5693 = vpop.f32.mrf.mxu0
        %v5694 = vadd.f32 0.0, %v5693
        %v5695 = vpop.f32.mrf.mxu0
        %5696 = vmatprep.mubr.f32.mxu0 0.0
        %5697 = vmatmul.mubr.f32.gmra.mxu0 %v5320
        %v5698 = vpop.f32.mrf.mxu0
        %v5699 = vadd.f32 0.0, %v5698
        %v5700 = vpop.f32.mrf.mxu0
        %5701 = vmatprep.mubr.f32.mxu0 0.0
        %5702 = vmatmul.mubr.f32.gmra.mxu0 %v5323
        %v5703 = vpop.f32.mrf.mxu0
        %v5704 = vadd.f32 0.0, %v5703
        %v5705 = vpop.f32.mrf.mxu0
        %5706 = vmatprep.mubr.f32.mxu0 0.0
        %5707 = vmatmul.mubr.f32.gmra.mxu0 %v5326
        %v5708 = vpop.f32.mrf.mxu0
        %v5709 = vadd.f32 0.0, %v5708
        %v5710 = vpop.f32.mrf.mxu0
        %5711 = vmatprep.mubr.f32.mxu0 0.0
        %5712 = vmatmul.mubr.f32.gmra.mxu0 %v5329
        %v5713 = vpop.f32.mrf.mxu0
        %v5714 = vadd.f32 0.0, %v5713
        %v5715 = vpop.f32.mrf.mxu0
        %5716 = vmatprep.mubr.f32.mxu0 0.0
        %5717 = vmatmul.mubr.f32.gmra.mxu0 %v5332
        %v5718 = vpop.f32.mrf.mxu0
        %v5719 = vadd.f32 0.0, %v5718
        %v5720 = vpop.f32.mrf.mxu0
        %5721 = vdwg.mxu0
        %v5722 = vadd.f32 %v5012, %v5404
        %v5723 = vadd.f32 %v5013, %v5409
        %v5724 = vadd.f32 %v5014, %v5414
        %v5725 = vadd.f32 %v5015, %v5419
        %v5726 = vadd.f32 %v5016, %v5424
        %v5727 = vadd.f32 %v5017, %v5429
        %v5728 = vadd.f32 %v5018, %v5434
        %v5729 = vadd.f32 %v5019, %v5439
        %v5730 = vadd.f32 %v5020, %v5444
        %v5731 = vadd.f32 %v5021, %v5449
        %v5732 = vadd.f32 %v5022, %v5454
        %v5733 = vadd.f32 %v5023, %v5459
        %v5734 = vadd.f32 %v5024, %v5464
        %v5735 = vadd.f32 %v5025, %v5469
        %v5736 = vadd.f32 %v5026, %v5474
        %v5737 = vadd.f32 %v5027, %v5479
        %v5738 = vadd.f32 %v5028, %v5484
        %v5739 = vadd.f32 %v5029, %v5489
        %v5740 = vadd.f32 %v5030, %v5494
        %v5741 = vadd.f32 %v5031, %v5499
        %v5742 = vadd.f32 %v5032, %v5504
        %v5743 = vadd.f32 %v5033, %v5509
        %v5744 = vadd.f32 %v5034, %v5514
        %v5745 = vadd.f32 %v5035, %v5519
        %v5746 = vadd.f32 %v5036, %v5524
        %v5747 = vadd.f32 %v5037, %v5529
        %v5748 = vadd.f32 %v5038, %v5534
        %v5749 = vadd.f32 %v5039, %v5539
        %v5750 = vadd.f32 %v5040, %v5544
        %v5751 = vadd.f32 %v5041, %v5549
        %v5752 = vadd.f32 %v5042, %v5554
        %v5753 = vadd.f32 %v5043, %v5559
        %v5754 = vadd.f32 %v5044, %v5564
        %v5755 = vadd.f32 %v5045, %v5569
        %v5756 = vadd.f32 %v5046, %v5574
        %v5757 = vadd.f32 %v5047, %v5579
        %v5758 = vadd.f32 %v5048, %v5584
        %v5759 = vadd.f32 %v5049, %v5589
        %v5760 = vadd.f32 %v5050, %v5594
        %v5761 = vadd.f32 %v5051, %v5599
        %v5762 = vadd.f32 %v5052, %v5604
        %v5763 = vadd.f32 %v5053, %v5609
        %v5764 = vadd.f32 %v5054, %v5614
        %v5765 = vadd.f32 %v5055, %v5619
        %v5766 = vadd.f32 %v5056, %v5624
        %v5767 = vadd.f32 %v5057, %v5629
        %v5768 = vadd.f32 %v5058, %v5634
        %v5769 = vadd.f32 %v5059, %v5639
        %v5770 = vadd.f32 %v5060, %v5644
        %v5771 = vadd.f32 %v5061, %v5649
        %v5772 = vadd.f32 %v5062, %v5654
        %v5773 = vadd.f32 %v5063, %v5659
        %v5774 = vadd.f32 %v5064, %v5664
        %v5775 = vadd.f32 %v5065, %v5669
        %v5776 = vadd.f32 %v5066, %v5674
        %v5777 = vadd.f32 %v5067, %v5679
        %v5778 = vadd.f32 %v5068, %v5684
        %v5779 = vadd.f32 %v5069, %v5689
        %v5780 = vadd.f32 %v5070, %v5694
        %v5781 = vadd.f32 %v5071, %v5699
        %v5782 = vadd.f32 %v5072, %v5704
        %v5783 = vadd.f32 %v5073, %v5709
        %v5784 = vadd.f32 %v5074, %v5714
        %v5785 = vadd.f32 %v5075, %v5719
        %v5786 = vld [vmem:[%s4365 + $0x2] sm:$0xff]
        %v5787 = vld [vmem:[%s4365 + $0xa] sm:$0xff]
        %v5788 = vld [vmem:[%s4365 + $0x12] sm:$0xff]
        %v5789 = vld [vmem:[%s4365 + $0x1a] sm:$0xff]
        %v5790 = vld [vmem:[%s4365 + $0x2a] sm:$0xff]
        %v5791 = vld [vmem:[%s4365 + $0x32] sm:$0xff]
        %v5792 = vld [vmem:[%s4365 + $0x3a] sm:$0xff]
        %v5793 = vld [vmem:[%s4365 + $0x42] sm:$0xff]
        %v5794 = vld [vmem:[%s4365 + $0x52] sm:$0xff]
        %v5795 = vld [vmem:[%s4365 + $0x5a] sm:$0xff]
        %v5796 = vld [vmem:[%s4365 + $0x62] sm:$0xff]
        %v5797 = vld [vmem:[%s4365 + $0x6a] sm:$0xff]
        %v5798 = vld [vmem:[%s4365 + $0x7a] sm:$0xff]
        %v5799 = vld [vmem:[%s4365 + $0x82] sm:$0xff]
        %v5800 = vld [vmem:[%s4365 + $0x8a] sm:$0xff]
        %v5801 = vld [vmem:[%s4365 + $0x92] sm:$0xff]
        %v5802 = vld [vmem:[%s4365 + $0xa2] sm:$0xff]
        %v5803 = vld [vmem:[%s4365 + $0xaa] sm:$0xff]
        %v5804 = vld [vmem:[%s4365 + $0xb2] sm:$0xff]
        %v5805 = vld [vmem:[%s4365 + $0xba] sm:$0xff]
        %v5806 = vld [vmem:[%s4365 + $0xca] sm:$0xff]
        %v5807 = vld [vmem:[%s4365 + $0xd2] sm:$0xff]
        %v5808 = vld [vmem:[%s4365 + $0xda] sm:$0xff]
        %v5809 = vld [vmem:[%s4365 + $0xe2] sm:$0xff]
        %v5810 = vld [vmem:[%s4365 + $0xf2] sm:$0xff]
        %v5811 = vld [vmem:[%s4365 + $0xfa] sm:$0xff]
        %v5812 = vld [vmem:[%s4365 + $0x102] sm:$0xff]
        %v5813 = vld [vmem:[%s4365 + $0x10a] sm:$0xff]
        %v5814 = vld [vmem:[%s4365 + $0x11a] sm:$0xff]
        %v5815 = vld [vmem:[%s4365 + $0x122] sm:$0xff]
        %v5816 = vld [vmem:[%s4365 + $0x12a] sm:$0xff]
        %v5817 = vld [vmem:[%s4365 + $0x132] sm:$0xff]
        %v5818 = vld [vmem:[%s4365 + $0x142] sm:$0xff]
        %v5819 = vld [vmem:[%s4365 + $0x14a] sm:$0xff]
        %v5820 = vld [vmem:[%s4365 + $0x152] sm:$0xff]
        %v5821 = vld [vmem:[%s4365 + $0x15a] sm:$0xff]
        %v5822 = vld [vmem:[%s4365 + $0x16a] sm:$0xff]
        %v5823 = vld [vmem:[%s4365 + $0x172] sm:$0xff]
        %v5824 = vld [vmem:[%s4365 + $0x17a] sm:$0xff]
        %v5825 = vld [vmem:[%s4365 + $0x182] sm:$0xff]
        %v5826 = vld [vmem:[%s4365 + $0x192] sm:$0xff]
        %v5827 = vld [vmem:[%s4365 + $0x19a] sm:$0xff]
        %v5828 = vld [vmem:[%s4365 + $0x1a2] sm:$0xff]
        %v5829 = vld [vmem:[%s4365 + $0x1aa] sm:$0xff]
        %v5830 = vld [vmem:[%s4365 + $0x1ba] sm:$0xff]
        %v5831 = vld [vmem:[%s4365 + $0x1c2] sm:$0xff]
        %v5832 = vld [vmem:[%s4365 + $0x1ca] sm:$0xff]
        %v5833 = vld [vmem:[%s4365 + $0x1d2] sm:$0xff]
        %v5834 = vld [vmem:[%s4365 + $0x1e2] sm:$0xff]
        %v5835 = vld [vmem:[%s4365 + $0x1ea] sm:$0xff]
        %v5836 = vld [vmem:[%s4365 + $0x1f2] sm:$0xff]
        %v5837 = vld [vmem:[%s4365 + $0x1fa] sm:$0xff]
        %v5838 = vld [vmem:[%s4365 + $0x20a] sm:$0xff]
        %v5839 = vld [vmem:[%s4365 + $0x212] sm:$0xff]
        %v5840 = vld [vmem:[%s4365 + $0x21a] sm:$0xff]
        %v5841 = vld [vmem:[%s4365 + $0x222] sm:$0xff]
        %v5842 = vld [vmem:[%s4365 + $0x232] sm:$0xff]
        %v5843 = vld [vmem:[%s4365 + $0x23a] sm:$0xff]
        %v5844 = vld [vmem:[%s4365 + $0x242] sm:$0xff]
        %v5845 = vld [vmem:[%s4365 + $0x24a] sm:$0xff]
        %v5846 = vld [vmem:[%s4365 + $0x25a] sm:$0xff]
        %v5847 = vld [vmem:[%s4365 + $0x262] sm:$0xff]
        %v5848 = vld [vmem:[%s4365 + $0x26a] sm:$0xff]
        %v5849 = vld [vmem:[%s4365 + $0x272] sm:$0xff]
        %s5850 = scalar_lea.vmem %s219, 32
        %v5851 = vld [vmem:[%s5850] sm:$0x7]
        %v5853 = vsel %vm358, %v5786, 0
        %v5856 = vsel %vm358, %v5787, 0
        %v5859 = vsel %vm358, %v5788, 0
        %v5862 = vsel %vm358, %v5789, 0
        %v5865 = vsel %vm358, %v5790, 0
        %v5868 = vsel %vm358, %v5791, 0
        %v5871 = vsel %vm358, %v5792, 0
        %v5874 = vsel %vm358, %v5793, 0
        %v5877 = vsel %vm358, %v5794, 0
        %v5880 = vsel %vm358, %v5795, 0
        %v5883 = vsel %vm358, %v5796, 0
        %v5886 = vsel %vm358, %v5797, 0
        %v5889 = vsel %vm358, %v5798, 0
        %v5892 = vsel %vm358, %v5799, 0
        %v5895 = vsel %vm358, %v5800, 0
        %v5898 = vsel %vm358, %v5801, 0
        %v5901 = vsel %vm358, %v5802, 0
        %v5904 = vsel %vm358, %v5803, 0
        %v5907 = vsel %vm358, %v5804, 0
        %v5910 = vsel %vm358, %v5805, 0
        %v5913 = vsel %vm358, %v5806, 0
        %v5916 = vsel %vm358, %v5807, 0
        %v5919 = vsel %vm358, %v5808, 0
        %v5922 = vsel %vm358, %v5809, 0
        %v5925 = vsel %vm358, %v5810, 0
        %v5928 = vsel %vm358, %v5811, 0
        %v5931 = vsel %vm358, %v5812, 0
        %v5934 = vsel %vm358, %v5813, 0
        %v5937 = vsel %vm358, %v5814, 0
        %v5940 = vsel %vm358, %v5815, 0
        %v5943 = vsel %vm358, %v5816, 0
        %v5946 = vsel %vm358, %v5817, 0
        %v5949 = vsel %vm358, %v5818, 0
        %v5952 = vsel %vm358, %v5819, 0
        %v5955 = vsel %vm358, %v5820, 0
        %v5958 = vsel %vm358, %v5821, 0
        %v5961 = vsel %vm358, %v5822, 0
        %v5964 = vsel %vm358, %v5823, 0
        %v5967 = vsel %vm358, %v5824, 0
        %v5970 = vsel %vm358, %v5825, 0
        %v5973 = vsel %vm358, %v5826, 0
        %v5976 = vsel %vm358, %v5827, 0
        %v5979 = vsel %vm358, %v5828, 0
        %v5982 = vsel %vm358, %v5829, 0
        %v5985 = vsel %vm358, %v5830, 0
        %v5988 = vsel %vm358, %v5831, 0
        %v5991 = vsel %vm358, %v5832, 0
        %v5994 = vsel %vm358, %v5833, 0
        %v5997 = vsel %vm358, %v5834, 0
        %v6000 = vsel %vm358, %v5835, 0
        %v6003 = vsel %vm358, %v5836, 0
        %v6006 = vsel %vm358, %v5837, 0
        %v6009 = vsel %vm358, %v5838, 0
        %v6012 = vsel %vm358, %v5839, 0
        %v6015 = vsel %vm358, %v5840, 0
        %v6018 = vsel %vm358, %v5841, 0
        %v6021 = vsel %vm358, %v5842, 0
        %v6024 = vsel %vm358, %v5843, 0
        %v6027 = vsel %vm358, %v5844, 0
        %v6030 = vsel %vm358, %v5845, 0
        %v6033 = vsel %vm358, %v5846, 0
        %v6036 = vsel %vm358, %v5847, 0
        %v6039 = vsel %vm358, %v5848, 0
        %v6042 = vsel %vm358, %v5849, 0
        %v6045 = vsel %vm551, %v5851, 0
        %6047 = vmatprep.subr.mxu0 0.0
        %6048 = vmatpush1.msra.mxu0 0.0
        %6049 = vmatprep.subr.mxu0 0.0
        %6050 = vmatpush1.msra.mxu0 0.0
        %6051 = vmatprep.subr.mxu0 0.0
        %6052 = vmatpush1.msra.mxu0 0.0
        %6053 = vmatprep.subr.mxu0 0.0
        %6054 = vmatpush1.msra.mxu0 0.0
        %6055 = vmatprep.subr.mxu0 0.0
        %6056 = vmatpush1.msra.mxu0 0.0
        %6057 = vmatprep.subr.mxu0 0.0
        %6058 = vmatpush1.msra.mxu0 0.0
        %6059 = vmatprep.subr.mxu0 0.0
        %6060 = vmatpush1.msra.mxu0 0.0
        %6061 = vmatprep.subr.mxu0 0.0
        %6062 = vmatpush1.msra.mxu0 0.0
        %6063 = vmatprep.subr.mxu0 0.0
        %6064 = vmatpush1.msra.mxu0 0.0
        %6065 = vmatprep.subr.mxu0 0.0
        %6066 = vmatpush1.msra.mxu0 0.0
        %6067 = vmatprep.subr.mxu0 0.0
        %6068 = vmatpush1.msra.mxu0 0.0
        %6069 = vmatprep.subr.mxu0 0.0
        %6070 = vmatpush1.msra.mxu0 0.0
        %6071 = vmatprep.subr.mxu0 0.0
        %6072 = vmatpush1.msra.mxu0 0.0
        %6073 = vmatprep.subr.mxu0 0.0
        %6074 = vmatpush1.msra.mxu0 0.0
        %6075 = vmatprep.subr.mxu0 0.0
        %6076 = vmatpush1.msra.mxu0 0.0
        %6077 = vmatprep.subr.mxu0 0.0
        %6078 = vmatpush1.msra.mxu0 %v6045
        %6079 = vmatprep.subr.mxu0 0.0
        %6080 = vmatpush2.msra.mxu0 0.0
        %6081 = vmatprep.subr.mxu0 0.0
        %6082 = vmatpush2.msra.mxu0 0.0
        %6083 = vmatprep.subr.mxu0 0.0
        %6084 = vmatpush2.msra.mxu0 0.0
        %6085 = vmatprep.subr.mxu0 0.0
        %6086 = vmatpush2.msra.mxu0 0.0
        %6087 = vmatprep.subr.mxu0 0.0
        %6088 = vmatpush2.msra.mxu0 0.0
        %6089 = vmatprep.subr.mxu0 0.0
        %6090 = vmatpush2.msra.mxu0 0.0
        %6091 = vmatprep.subr.mxu0 0.0
        %6092 = vmatpush2.msra.mxu0 0.0
        %6093 = vmatprep.subr.mxu0 0.0
        %6094 = vmatpush2.msra.mxu0 0.0
        %6095 = vmatprep.subr.mxu0 0.0
        %6096 = vmatpush2.msra.mxu0 0.0
        %6097 = vmatprep.subr.mxu0 0.0
        %6098 = vmatpush2.msra.mxu0 0.0
        %6099 = vmatprep.subr.mxu0 0.0
        %6100 = vmatpush2.msra.mxu0 0.0
        %6101 = vmatprep.subr.mxu0 0.0
        %6102 = vmatpush2.msra.mxu0 0.0
        %6103 = vmatprep.subr.mxu0 0.0
        %6104 = vmatpush2.msra.mxu0 0.0
        %6105 = vmatprep.subr.mxu0 0.0
        %6106 = vmatpush2.msra.mxu0 0.0
        %6107 = vmatprep.subr.mxu0 0.0
        %6108 = vmatpush2.msra.mxu0 0.0
        %6109 = vmatprep.subr.mxu0 0.0
        %6110 = vmatpush2.msra.mxu0 0.0
        %6111 = vmatprep.mubr.f32.mxu0 0.0
        %6112 = vmatmul.mubr.f32.gmra.mxu0 %v5853
        %v6113 = vpop.f32.mrf.mxu0
        %v6114 = vadd.f32 0.0, %v6113
        %v6115 = vpop.f32.mrf.mxu0
        %6116 = vmatprep.mubr.f32.mxu0 0.0
        %6117 = vmatmul.mubr.f32.gmra.mxu0 %v5856
        %v6118 = vpop.f32.mrf.mxu0
        %v6119 = vadd.f32 0.0, %v6118
        %v6120 = vpop.f32.mrf.mxu0
        %6121 = vmatprep.mubr.f32.mxu0 0.0
        %6122 = vmatmul.mubr.f32.gmra.mxu0 %v5859
        %v6123 = vpop.f32.mrf.mxu0
        %v6124 = vadd.f32 0.0, %v6123
        %v6125 = vpop.f32.mrf.mxu0
        %6126 = vmatprep.mubr.f32.mxu0 0.0
        %6127 = vmatmul.mubr.f32.gmra.mxu0 %v5862
        %v6128 = vpop.f32.mrf.mxu0
        %v6129 = vadd.f32 0.0, %v6128
        %v6130 = vpop.f32.mrf.mxu0
        %6131 = vmatprep.mubr.f32.mxu0 0.0
        %6132 = vmatmul.mubr.f32.gmra.mxu0 %v5865
        %v6133 = vpop.f32.mrf.mxu0
        %v6134 = vadd.f32 0.0, %v6133
        %v6135 = vpop.f32.mrf.mxu0
        %6136 = vmatprep.mubr.f32.mxu0 0.0
        %6137 = vmatmul.mubr.f32.gmra.mxu0 %v5868
        %v6138 = vpop.f32.mrf.mxu0
        %v6139 = vadd.f32 0.0, %v6138
        %v6140 = vpop.f32.mrf.mxu0
        %6141 = vmatprep.mubr.f32.mxu0 0.0
        %6142 = vmatmul.mubr.f32.gmra.mxu0 %v5871
        %v6143 = vpop.f32.mrf.mxu0
        %v6144 = vadd.f32 0.0, %v6143
        %v6145 = vpop.f32.mrf.mxu0
        %6146 = vmatprep.mubr.f32.mxu0 0.0
        %6147 = vmatmul.mubr.f32.gmra.mxu0 %v5874
        %v6148 = vpop.f32.mrf.mxu0
        %v6149 = vadd.f32 0.0, %v6148
        %v6150 = vpop.f32.mrf.mxu0
        %6151 = vmatprep.mubr.f32.mxu0 0.0
        %6152 = vmatmul.mubr.f32.gmra.mxu0 %v5877
        %v6153 = vpop.f32.mrf.mxu0
        %v6154 = vadd.f32 0.0, %v6153
        %v6155 = vpop.f32.mrf.mxu0
        %6156 = vmatprep.mubr.f32.mxu0 0.0
        %6157 = vmatmul.mubr.f32.gmra.mxu0 %v5880
        %v6158 = vpop.f32.mrf.mxu0
        %v6159 = vadd.f32 0.0, %v6158
        %v6160 = vpop.f32.mrf.mxu0
        %6161 = vmatprep.mubr.f32.mxu0 0.0
        %6162 = vmatmul.mubr.f32.gmra.mxu0 %v5883
        %v6163 = vpop.f32.mrf.mxu0
        %v6164 = vadd.f32 0.0, %v6163
        %v6165 = vpop.f32.mrf.mxu0
        %6166 = vmatprep.mubr.f32.mxu0 0.0
        %6167 = vmatmul.mubr.f32.gmra.mxu0 %v5886
        %v6168 = vpop.f32.mrf.mxu0
        %v6169 = vadd.f32 0.0, %v6168
        %v6170 = vpop.f32.mrf.mxu0
        %6171 = vmatprep.mubr.f32.mxu0 0.0
        %6172 = vmatmul.mubr.f32.gmra.mxu0 %v5889
        %v6173 = vpop.f32.mrf.mxu0
        %v6174 = vadd.f32 0.0, %v6173
        %v6175 = vpop.f32.mrf.mxu0
        %6176 = vmatprep.mubr.f32.mxu0 0.0
        %6177 = vmatmul.mubr.f32.gmra.mxu0 %v5892
        %v6178 = vpop.f32.mrf.mxu0
        %v6179 = vadd.f32 0.0, %v6178
        %v6180 = vpop.f32.mrf.mxu0
        %6181 = vmatprep.mubr.f32.mxu0 0.0
        %6182 = vmatmul.mubr.f32.gmra.mxu0 %v5895
        %v6183 = vpop.f32.mrf.mxu0
        %v6184 = vadd.f32 0.0, %v6183
        %v6185 = vpop.f32.mrf.mxu0
        %6186 = vmatprep.mubr.f32.mxu0 0.0
        %6187 = vmatmul.mubr.f32.gmra.mxu0 %v5898
        %v6188 = vpop.f32.mrf.mxu0
        %v6189 = vadd.f32 0.0, %v6188
        %v6190 = vpop.f32.mrf.mxu0
        %6191 = vmatprep.mubr.f32.mxu0 0.0
        %6192 = vmatmul.mubr.f32.gmra.mxu0 %v5901
        %v6193 = vpop.f32.mrf.mxu0
        %v6194 = vadd.f32 0.0, %v6193
        %v6195 = vpop.f32.mrf.mxu0
        %6196 = vmatprep.mubr.f32.mxu0 0.0
        %6197 = vmatmul.mubr.f32.gmra.mxu0 %v5904
        %v6198 = vpop.f32.mrf.mxu0
        %v6199 = vadd.f32 0.0, %v6198
        %v6200 = vpop.f32.mrf.mxu0
        %6201 = vmatprep.mubr.f32.mxu0 0.0
        %6202 = vmatmul.mubr.f32.gmra.mxu0 %v5907
        %v6203 = vpop.f32.mrf.mxu0
        %v6204 = vadd.f32 0.0, %v6203
        %v6205 = vpop.f32.mrf.mxu0
        %6206 = vmatprep.mubr.f32.mxu0 0.0
        %6207 = vmatmul.mubr.f32.gmra.mxu0 %v5910
        %v6208 = vpop.f32.mrf.mxu0
        %v6209 = vadd.f32 0.0, %v6208
        %v6210 = vpop.f32.mrf.mxu0
        %6211 = vmatprep.mubr.f32.mxu0 0.0
        %6212 = vmatmul.mubr.f32.gmra.mxu0 %v5913
        %v6213 = vpop.f32.mrf.mxu0
        %v6214 = vadd.f32 0.0, %v6213
        %v6215 = vpop.f32.mrf.mxu0
        %6216 = vmatprep.mubr.f32.mxu0 0.0
        %6217 = vmatmul.mubr.f32.gmra.mxu0 %v5916
        %v6218 = vpop.f32.mrf.mxu0
        %v6219 = vadd.f32 0.0, %v6218
        %v6220 = vpop.f32.mrf.mxu0
        %6221 = vmatprep.mubr.f32.mxu0 0.0
        %6222 = vmatmul.mubr.f32.gmra.mxu0 %v5919
        %v6223 = vpop.f32.mrf.mxu0
        %v6224 = vadd.f32 0.0, %v6223
        %v6225 = vpop.f32.mrf.mxu0
        %6226 = vmatprep.mubr.f32.mxu0 0.0
        %6227 = vmatmul.mubr.f32.gmra.mxu0 %v5922
        %v6228 = vpop.f32.mrf.mxu0
        %v6229 = vadd.f32 0.0, %v6228
        %v6230 = vpop.f32.mrf.mxu0
        %6231 = vmatprep.mubr.f32.mxu0 0.0
        %6232 = vmatmul.mubr.f32.gmra.mxu0 %v5925
        %v6233 = vpop.f32.mrf.mxu0
        %v6234 = vadd.f32 0.0, %v6233
        %v6235 = vpop.f32.mrf.mxu0
        %6236 = vmatprep.mubr.f32.mxu0 0.0
        %6237 = vmatmul.mubr.f32.gmra.mxu0 %v5928
        %v6238 = vpop.f32.mrf.mxu0
        %v6239 = vadd.f32 0.0, %v6238
        %v6240 = vpop.f32.mrf.mxu0
        %6241 = vmatprep.mubr.f32.mxu0 0.0
        %6242 = vmatmul.mubr.f32.gmra.mxu0 %v5931
        %v6243 = vpop.f32.mrf.mxu0
        %v6244 = vadd.f32 0.0, %v6243
        %v6245 = vpop.f32.mrf.mxu0
        %6246 = vmatprep.mubr.f32.mxu0 0.0
        %6247 = vmatmul.mubr.f32.gmra.mxu0 %v5934
        %v6248 = vpop.f32.mrf.mxu0
        %v6249 = vadd.f32 0.0, %v6248
        %v6250 = vpop.f32.mrf.mxu0
        %6251 = vmatprep.mubr.f32.mxu0 0.0
        %6252 = vmatmul.mubr.f32.gmra.mxu0 %v5937
        %v6253 = vpop.f32.mrf.mxu0
        %v6254 = vadd.f32 0.0, %v6253
        %v6255 = vpop.f32.mrf.mxu0
        %6256 = vmatprep.mubr.f32.mxu0 0.0
        %6257 = vmatmul.mubr.f32.gmra.mxu0 %v5940
        %v6258 = vpop.f32.mrf.mxu0
        %v6259 = vadd.f32 0.0, %v6258
        %v6260 = vpop.f32.mrf.mxu0
        %6261 = vmatprep.mubr.f32.mxu0 0.0
        %6262 = vmatmul.mubr.f32.gmra.mxu0 %v5943
        %v6263 = vpop.f32.mrf.mxu0
        %v6264 = vadd.f32 0.0, %v6263
        %v6265 = vpop.f32.mrf.mxu0
        %6266 = vmatprep.mubr.f32.mxu0 0.0
        %6267 = vmatmul.mubr.f32.gmra.mxu0 %v5946
        %v6268 = vpop.f32.mrf.mxu0
        %v6269 = vadd.f32 0.0, %v6268
        %v6270 = vpop.f32.mrf.mxu0
        %6271 = vmatprep.mubr.f32.mxu0 0.0
        %6272 = vmatmul.mubr.f32.gmra.mxu0 %v5949
        %v6273 = vpop.f32.mrf.mxu0
        %v6274 = vadd.f32 0.0, %v6273
        %v6275 = vpop.f32.mrf.mxu0
        %6276 = vmatprep.mubr.f32.mxu0 0.0
        %6277 = vmatmul.mubr.f32.gmra.mxu0 %v5952
        %v6278 = vpop.f32.mrf.mxu0
        %v6279 = vadd.f32 0.0, %v6278
        %v6280 = vpop.f32.mrf.mxu0
        %6281 = vmatprep.mubr.f32.mxu0 0.0
        %6282 = vmatmul.mubr.f32.gmra.mxu0 %v5955
        %v6283 = vpop.f32.mrf.mxu0
        %v6284 = vadd.f32 0.0, %v6283
        %v6285 = vpop.f32.mrf.mxu0
        %6286 = vmatprep.mubr.f32.mxu0 0.0
        %6287 = vmatmul.mubr.f32.gmra.mxu0 %v5958
        %v6288 = vpop.f32.mrf.mxu0
        %v6289 = vadd.f32 0.0, %v6288
        %v6290 = vpop.f32.mrf.mxu0
        %6291 = vmatprep.mubr.f32.mxu0 0.0
        %6292 = vmatmul.mubr.f32.gmra.mxu0 %v5961
        %v6293 = vpop.f32.mrf.mxu0
        %v6294 = vadd.f32 0.0, %v6293
        %v6295 = vpop.f32.mrf.mxu0
        %6296 = vmatprep.mubr.f32.mxu0 0.0
        %6297 = vmatmul.mubr.f32.gmra.mxu0 %v5964
        %v6298 = vpop.f32.mrf.mxu0
        %v6299 = vadd.f32 0.0, %v6298
        %v6300 = vpop.f32.mrf.mxu0
        %6301 = vmatprep.mubr.f32.mxu0 0.0
        %6302 = vmatmul.mubr.f32.gmra.mxu0 %v5967
        %v6303 = vpop.f32.mrf.mxu0
        %v6304 = vadd.f32 0.0, %v6303
        %v6305 = vpop.f32.mrf.mxu0
        %6306 = vmatprep.mubr.f32.mxu0 0.0
        %6307 = vmatmul.mubr.f32.gmra.mxu0 %v5970
        %v6308 = vpop.f32.mrf.mxu0
        %v6309 = vadd.f32 0.0, %v6308
        %v6310 = vpop.f32.mrf.mxu0
        %6311 = vmatprep.mubr.f32.mxu0 0.0
        %6312 = vmatmul.mubr.f32.gmra.mxu0 %v5973
        %v6313 = vpop.f32.mrf.mxu0
        %v6314 = vadd.f32 0.0, %v6313
        %v6315 = vpop.f32.mrf.mxu0
        %6316 = vmatprep.mubr.f32.mxu0 0.0
        %6317 = vmatmul.mubr.f32.gmra.mxu0 %v5976
        %v6318 = vpop.f32.mrf.mxu0
        %v6319 = vadd.f32 0.0, %v6318
        %v6320 = vpop.f32.mrf.mxu0
        %6321 = vmatprep.mubr.f32.mxu0 0.0
        %6322 = vmatmul.mubr.f32.gmra.mxu0 %v5979
        %v6323 = vpop.f32.mrf.mxu0
        %v6324 = vadd.f32 0.0, %v6323
        %v6325 = vpop.f32.mrf.mxu0
        %6326 = vmatprep.mubr.f32.mxu0 0.0
        %6327 = vmatmul.mubr.f32.gmra.mxu0 %v5982
        %v6328 = vpop.f32.mrf.mxu0
        %v6329 = vadd.f32 0.0, %v6328
        %v6330 = vpop.f32.mrf.mxu0
        %6331 = vmatprep.mubr.f32.mxu0 0.0
        %6332 = vmatmul.mubr.f32.gmra.mxu0 %v5985
        %v6333 = vpop.f32.mrf.mxu0
        %v6334 = vadd.f32 0.0, %v6333
        %v6335 = vpop.f32.mrf.mxu0
        %6336 = vmatprep.mubr.f32.mxu0 0.0
        %6337 = vmatmul.mubr.f32.gmra.mxu0 %v5988
        %v6338 = vpop.f32.mrf.mxu0
        %v6339 = vadd.f32 0.0, %v6338
        %v6340 = vpop.f32.mrf.mxu0
        %6341 = vmatprep.mubr.f32.mxu0 0.0
        %6342 = vmatmul.mubr.f32.gmra.mxu0 %v5991
        %v6343 = vpop.f32.mrf.mxu0
        %v6344 = vadd.f32 0.0, %v6343
        %v6345 = vpop.f32.mrf.mxu0
        %6346 = vmatprep.mubr.f32.mxu0 0.0
        %6347 = vmatmul.mubr.f32.gmra.mxu0 %v5994
        %v6348 = vpop.f32.mrf.mxu0
        %v6349 = vadd.f32 0.0, %v6348
        %v6350 = vpop.f32.mrf.mxu0
        %6351 = vmatprep.mubr.f32.mxu0 0.0
        %6352 = vmatmul.mubr.f32.gmra.mxu0 %v5997
        %v6353 = vpop.f32.mrf.mxu0
        %v6354 = vadd.f32 0.0, %v6353
        %v6355 = vpop.f32.mrf.mxu0
        %6356 = vmatprep.mubr.f32.mxu0 0.0
        %6357 = vmatmul.mubr.f32.gmra.mxu0 %v6000
        %v6358 = vpop.f32.mrf.mxu0
        %v6359 = vadd.f32 0.0, %v6358
        %v6360 = vpop.f32.mrf.mxu0
        %6361 = vmatprep.mubr.f32.mxu0 0.0
        %6362 = vmatmul.mubr.f32.gmra.mxu0 %v6003
        %v6363 = vpop.f32.mrf.mxu0
        %v6364 = vadd.f32 0.0, %v6363
        %v6365 = vpop.f32.mrf.mxu0
        %6366 = vmatprep.mubr.f32.mxu0 0.0
        %6367 = vmatmul.mubr.f32.gmra.mxu0 %v6006
        %v6368 = vpop.f32.mrf.mxu0
        %v6369 = vadd.f32 0.0, %v6368
        %v6370 = vpop.f32.mrf.mxu0
        %6371 = vmatprep.mubr.f32.mxu0 0.0
        %6372 = vmatmul.mubr.f32.gmra.mxu0 %v6009
        %v6373 = vpop.f32.mrf.mxu0
        %v6374 = vadd.f32 0.0, %v6373
        %v6375 = vpop.f32.mrf.mxu0
        %6376 = vmatprep.mubr.f32.mxu0 0.0
        %6377 = vmatmul.mubr.f32.gmra.mxu0 %v6012
        %v6378 = vpop.f32.mrf.mxu0
        %v6379 = vadd.f32 0.0, %v6378
        %v6380 = vpop.f32.mrf.mxu0
        %6381 = vmatprep.mubr.f32.mxu0 0.0
        %6382 = vmatmul.mubr.f32.gmra.mxu0 %v6015
        %v6383 = vpop.f32.mrf.mxu0
        %v6384 = vadd.f32 0.0, %v6383
        %v6385 = vpop.f32.mrf.mxu0
        %6386 = vmatprep.mubr.f32.mxu0 0.0
        %6387 = vmatmul.mubr.f32.gmra.mxu0 %v6018
        %v6388 = vpop.f32.mrf.mxu0
        %v6389 = vadd.f32 0.0, %v6388
        %v6390 = vpop.f32.mrf.mxu0
        %6391 = vmatprep.mubr.f32.mxu0 0.0
        %6392 = vmatmul.mubr.f32.gmra.mxu0 %v6021
        %v6393 = vpop.f32.mrf.mxu0
        %v6394 = vadd.f32 0.0, %v6393
        %v6395 = vpop.f32.mrf.mxu0
        %6396 = vmatprep.mubr.f32.mxu0 0.0
        %6397 = vmatmul.mubr.f32.gmra.mxu0 %v6024
        %v6398 = vpop.f32.mrf.mxu0
        %v6399 = vadd.f32 0.0, %v6398
        %v6400 = vpop.f32.mrf.mxu0
        %6401 = vmatprep.mubr.f32.mxu0 0.0
        %6402 = vmatmul.mubr.f32.gmra.mxu0 %v6027
        %v6403 = vpop.f32.mrf.mxu0
        %v6404 = vadd.f32 0.0, %v6403
        %v6405 = vpop.f32.mrf.mxu0
        %6406 = vmatprep.mubr.f32.mxu0 0.0
        %6407 = vmatmul.mubr.f32.gmra.mxu0 %v6030
        %v6408 = vpop.f32.mrf.mxu0
        %v6409 = vadd.f32 0.0, %v6408
        %v6410 = vpop.f32.mrf.mxu0
        %6411 = vmatprep.mubr.f32.mxu0 0.0
        %6412 = vmatmul.mubr.f32.gmra.mxu0 %v6033
        %v6413 = vpop.f32.mrf.mxu0
        %v6414 = vadd.f32 0.0, %v6413
        %v6415 = vpop.f32.mrf.mxu0
        %6416 = vmatprep.mubr.f32.mxu0 0.0
        %6417 = vmatmul.mubr.f32.gmra.mxu0 %v6036
        %v6418 = vpop.f32.mrf.mxu0
        %v6419 = vadd.f32 0.0, %v6418
        %v6420 = vpop.f32.mrf.mxu0
        %6421 = vmatprep.mubr.f32.mxu0 0.0
        %6422 = vmatmul.mubr.f32.gmra.mxu0 %v6039
        %v6423 = vpop.f32.mrf.mxu0
        %v6424 = vadd.f32 0.0, %v6423
        %v6425 = vpop.f32.mrf.mxu0
        %6426 = vmatprep.mubr.f32.mxu0 0.0
        %6427 = vmatmul.mubr.f32.gmra.mxu0 %v6042
        %v6428 = vpop.f32.mrf.mxu0
        %v6429 = vadd.f32 0.0, %v6428
        %v6430 = vpop.f32.mrf.mxu0
        %6431 = vdwg.mxu0
        %v6432 = vadd.f32 %v5722, %v6114
        %v6433 = vadd.f32 %v5723, %v6119
        %v6434 = vadd.f32 %v5724, %v6124
        %v6435 = vadd.f32 %v5725, %v6129
        %v6436 = vadd.f32 %v5726, %v6134
        %v6437 = vadd.f32 %v5727, %v6139
        %v6438 = vadd.f32 %v5728, %v6144
        %v6439 = vadd.f32 %v5729, %v6149
        %v6440 = vadd.f32 %v5730, %v6154
        %v6441 = vadd.f32 %v5731, %v6159
        %v6442 = vadd.f32 %v5732, %v6164
        %v6443 = vadd.f32 %v5733, %v6169
        %v6444 = vadd.f32 %v5734, %v6174
        %v6445 = vadd.f32 %v5735, %v6179
        %v6446 = vadd.f32 %v5736, %v6184
        %v6447 = vadd.f32 %v5737, %v6189
        %v6448 = vadd.f32 %v5738, %v6194
        %v6449 = vadd.f32 %v5739, %v6199
        %v6450 = vadd.f32 %v5740, %v6204
        %v6451 = vadd.f32 %v5741, %v6209
        %v6452 = vadd.f32 %v5742, %v6214
        %v6453 = vadd.f32 %v5743, %v6219
        %v6454 = vadd.f32 %v5744, %v6224
        %v6455 = vadd.f32 %v5745, %v6229
        %v6456 = vadd.f32 %v5746, %v6234
        %v6457 = vadd.f32 %v5747, %v6239
        %v6458 = vadd.f32 %v5748, %v6244
        %v6459 = vadd.f32 %v5749, %v6249
        %v6460 = vadd.f32 %v5750, %v6254
        %v6461 = vadd.f32 %v5751, %v6259
        %v6462 = vadd.f32 %v5752, %v6264
        %v6463 = vadd.f32 %v5753, %v6269
        %v6464 = vadd.f32 %v5754, %v6274
        %v6465 = vadd.f32 %v5755, %v6279
        %v6466 = vadd.f32 %v5756, %v6284
        %v6467 = vadd.f32 %v5757, %v6289
        %v6468 = vadd.f32 %v5758, %v6294
        %v6469 = vadd.f32 %v5759, %v6299
        %v6470 = vadd.f32 %v5760, %v6304
        %v6471 = vadd.f32 %v5761, %v6309
        %v6472 = vadd.f32 %v5762, %v6314
        %v6473 = vadd.f32 %v5763, %v6319
        %v6474 = vadd.f32 %v5764, %v6324
        %v6475 = vadd.f32 %v5765, %v6329
        %v6476 = vadd.f32 %v5766, %v6334
        %v6477 = vadd.f32 %v5767, %v6339
        %v6478 = vadd.f32 %v5768, %v6344
        %v6479 = vadd.f32 %v5769, %v6349
        %v6480 = vadd.f32 %v5770, %v6354
        %v6481 = vadd.f32 %v5771, %v6359
        %v6482 = vadd.f32 %v5772, %v6364
        %v6483 = vadd.f32 %v5773, %v6369
        %v6484 = vadd.f32 %v5774, %v6374
        %v6485 = vadd.f32 %v5775, %v6379
        %v6486 = vadd.f32 %v5776, %v6384
        %v6487 = vadd.f32 %v5777, %v6389
        %v6488 = vadd.f32 %v5778, %v6394
        %v6489 = vadd.f32 %v5779, %v6399
        %v6490 = vadd.f32 %v5780, %v6404
        %v6491 = vadd.f32 %v5781, %v6409
        %v6492 = vadd.f32 %v5782, %v6414
        %v6493 = vadd.f32 %v5783, %v6419
        %v6494 = vadd.f32 %v5784, %v6424
        %v6495 = vadd.f32 %v5785, %v6429
        %v6496 = vld [vmem:[%s222] sm:$0x1]
        %v6498 = vlaneseq
        %v6499 = vshrl.u32 %v6498, 7
        %v6500 = vsub.s32 0, %v6499
        %v6501 = vrot.slane %v6496, %v6500
        %v6503 = vadd.f32 %v6432, %v6501
        %v6504 = vadd.f32 %v6433, %v6501
        %v6505 = vadd.f32 %v6434, %v6501
        %v6506 = vadd.f32 %v6435, %v6501
        %v6507 = vadd.f32 %v6436, %v6501
        %v6508 = vadd.f32 %v6437, %v6501
        %v6509 = vadd.f32 %v6438, %v6501
        %v6510 = vadd.f32 %v6439, %v6501
        %v6511 = vadd.f32 %v6440, %v6501
        %v6512 = vadd.f32 %v6441, %v6501
        %v6513 = vadd.f32 %v6442, %v6501
        %v6514 = vadd.f32 %v6443, %v6501
        %v6515 = vadd.f32 %v6444, %v6501
        %v6516 = vadd.f32 %v6445, %v6501
        %v6517 = vadd.f32 %v6446, %v6501
        %v6518 = vadd.f32 %v6447, %v6501
        %v6519 = vadd.f32 %v6448, %v6501
        %v6520 = vadd.f32 %v6449, %v6501
        %v6521 = vadd.f32 %v6450, %v6501
        %v6522 = vadd.f32 %v6451, %v6501
        %v6523 = vadd.f32 %v6452, %v6501
        %v6524 = vadd.f32 %v6453, %v6501
        %v6525 = vadd.f32 %v6454, %v6501
        %v6526 = vadd.f32 %v6455, %v6501
        %v6527 = vadd.f32 %v6456, %v6501
        %v6528 = vadd.f32 %v6457, %v6501
        %v6529 = vadd.f32 %v6458, %v6501
        %v6530 = vadd.f32 %v6459, %v6501
        %v6531 = vadd.f32 %v6460, %v6501
        %v6532 = vadd.f32 %v6461, %v6501
        %v6533 = vadd.f32 %v6462, %v6501
        %v6534 = vadd.f32 %v6463, %v6501
        %v6535 = vadd.f32 %v6464, %v6501
        %v6536 = vadd.f32 %v6465, %v6501
        %v6537 = vadd.f32 %v6466, %v6501
        %v6538 = vadd.f32 %v6467, %v6501
        %v6539 = vadd.f32 %v6468, %v6501
        %v6540 = vadd.f32 %v6469, %v6501
        %v6541 = vadd.f32 %v6470, %v6501
        %v6542 = vadd.f32 %v6471, %v6501
        %v6543 = vadd.f32 %v6472, %v6501
        %v6544 = vadd.f32 %v6473, %v6501
        %v6545 = vadd.f32 %v6474, %v6501
        %v6546 = vadd.f32 %v6475, %v6501
        %v6547 = vadd.f32 %v6476, %v6501
        %v6548 = vadd.f32 %v6477, %v6501
        %v6549 = vadd.f32 %v6478, %v6501
        %v6550 = vadd.f32 %v6479, %v6501
        %v6551 = vadd.f32 %v6480, %v6501
        %v6552 = vadd.f32 %v6481, %v6501
        %v6553 = vadd.f32 %v6482, %v6501
        %v6554 = vadd.f32 %v6483, %v6501
        %v6555 = vadd.f32 %v6484, %v6501
        %v6556 = vadd.f32 %v6485, %v6501
        %v6557 = vadd.f32 %v6486, %v6501
        %v6558 = vadd.f32 %v6487, %v6501
        %v6559 = vadd.f32 %v6488, %v6501
        %v6560 = vadd.f32 %v6489, %v6501
        %v6561 = vadd.f32 %v6490, %v6501
        %v6562 = vadd.f32 %v6491, %v6501
        %v6563 = vadd.f32 %v6492, %v6501
        %v6564 = vadd.f32 %v6493, %v6501
        %v6565 = vadd.f32 %v6494, %v6501
        %v6566 = vadd.f32 %v6495, %v6501
        %v6567 = vmax.f32 %v6503, 0.0
        %v6568 = vmax.f32 %v6504, 0.0
        %v6569 = vmax.f32 %v6505, 0.0
        %v6570 = vmax.f32 %v6506, 0.0
        %v6571 = vmax.f32 %v6507, 0.0
        %v6572 = vmax.f32 %v6508, 0.0
        %v6573 = vmax.f32 %v6509, 0.0
        %v6574 = vmax.f32 %v6510, 0.0
        %v6575 = vmax.f32 %v6511, 0.0
        %v6576 = vmax.f32 %v6512, 0.0
        %v6577 = vmax.f32 %v6513, 0.0
        %v6578 = vmax.f32 %v6514, 0.0
        %v6579 = vmax.f32 %v6515, 0.0
        %v6580 = vmax.f32 %v6516, 0.0
        %v6581 = vmax.f32 %v6517, 0.0
        %v6582 = vmax.f32 %v6518, 0.0
        %v6583 = vmax.f32 %v6519, 0.0
        %v6584 = vmax.f32 %v6520, 0.0
        %v6585 = vmax.f32 %v6521, 0.0
        %v6586 = vmax.f32 %v6522, 0.0
        %v6587 = vmax.f32 %v6523, 0.0
        %v6588 = vmax.f32 %v6524, 0.0
        %v6589 = vmax.f32 %v6525, 0.0
        %v6590 = vmax.f32 %v6526, 0.0
        %v6591 = vmax.f32 %v6527, 0.0
        %v6592 = vmax.f32 %v6528, 0.0
        %v6593 = vmax.f32 %v6529, 0.0
        %v6594 = vmax.f32 %v6530, 0.0
        %v6595 = vmax.f32 %v6531, 0.0
        %v6596 = vmax.f32 %v6532, 0.0
        %v6597 = vmax.f32 %v6533, 0.0
        %v6598 = vmax.f32 %v6534, 0.0
        %v6599 = vmax.f32 %v6535, 0.0
        %v6600 = vmax.f32 %v6536, 0.0
        %v6601 = vmax.f32 %v6537, 0.0
        %v6602 = vmax.f32 %v6538, 0.0
        %v6603 = vmax.f32 %v6539, 0.0
        %v6604 = vmax.f32 %v6540, 0.0
        %v6605 = vmax.f32 %v6541, 0.0
        %v6606 = vmax.f32 %v6542, 0.0
        %v6607 = vmax.f32 %v6543, 0.0
        %v6608 = vmax.f32 %v6544, 0.0
        %v6609 = vmax.f32 %v6545, 0.0
        %v6610 = vmax.f32 %v6546, 0.0
        %v6611 = vmax.f32 %v6547, 0.0
        %v6612 = vmax.f32 %v6548, 0.0
        %v6613 = vmax.f32 %v6549, 0.0
        %v6614 = vmax.f32 %v6550, 0.0
        %v6615 = vmax.f32 %v6551, 0.0
        %v6616 = vmax.f32 %v6552, 0.0
        %v6617 = vmax.f32 %v6553, 0.0
        %v6618 = vmax.f32 %v6554, 0.0
        %v6619 = vmax.f32 %v6555, 0.0
        %v6620 = vmax.f32 %v6556, 0.0
        %v6621 = vmax.f32 %v6557, 0.0
        %v6622 = vmax.f32 %v6558, 0.0
        %v6623 = vmax.f32 %v6559, 0.0
        %v6624 = vmax.f32 %v6560, 0.0
        %v6625 = vmax.f32 %v6561, 0.0
        %v6626 = vmax.f32 %v6562, 0.0
        %v6627 = vmax.f32 %v6563, 0.0
        %v6628 = vmax.f32 %v6564, 0.0
        %v6629 = vmax.f32 %v6565, 0.0
        %v6630 = vmax.f32 %v6566, 0.0
        %vm6631 = vcmask 523264
        %6632 = vst.msk [vmem:[%s210] sm:$0xff] %vm6631, %v6567
        %6633 = vst.msk [vmem:[%s210 + $0x8] sm:$0xff] %vm6631, %v6568
        %6634 = vst.msk [vmem:[%s210 + $0x10] sm:$0xff] %vm6631, %v6569
        %6635 = vst.msk [vmem:[%s210 + $0x18] sm:$0xff] %vm6631, %v6570
        %6636 = vst.msk [vmem:[%s210 + $0x20] sm:$0xff] %vm6631, %v6571
        %6637 = vst.msk [vmem:[%s210 + $0x28] sm:$0xff] %vm6631, %v6572
        %6638 = vst.msk [vmem:[%s210 + $0x30] sm:$0xff] %vm6631, %v6573
        %6639 = vst.msk [vmem:[%s210 + $0x38] sm:$0xff] %vm6631, %v6574
        %6640 = vst.msk [vmem:[%s210 + $0x40] sm:$0xff] %vm6631, %v6575
        %6641 = vst.msk [vmem:[%s210 + $0x48] sm:$0xff] %vm6631, %v6576
        %6642 = vst.msk [vmem:[%s210 + $0x50] sm:$0xff] %vm6631, %v6577
        %6643 = vst.msk [vmem:[%s210 + $0x58] sm:$0xff] %vm6631, %v6578
        %6644 = vst.msk [vmem:[%s210 + $0x60] sm:$0xff] %vm6631, %v6579
        %6645 = vst.msk [vmem:[%s210 + $0x68] sm:$0xff] %vm6631, %v6580
        %6646 = vst.msk [vmem:[%s210 + $0x70] sm:$0xff] %vm6631, %v6581
        %6647 = vst.msk [vmem:[%s210 + $0x78] sm:$0xff] %vm6631, %v6582
        %6648 = vst.msk [vmem:[%s210 + $0x80] sm:$0xff] %vm6631, %v6583
        %6649 = vst.msk [vmem:[%s210 + $0x88] sm:$0xff] %vm6631, %v6584
        %6650 = vst.msk [vmem:[%s210 + $0x90] sm:$0xff] %vm6631, %v6585
        %6651 = vst.msk [vmem:[%s210 + $0x98] sm:$0xff] %vm6631, %v6586
        %6652 = vst.msk [vmem:[%s210 + $0xa0] sm:$0xff] %vm6631, %v6587
        %6653 = vst.msk [vmem:[%s210 + $0xa8] sm:$0xff] %vm6631, %v6588
        %6654 = vst.msk [vmem:[%s210 + $0xb0] sm:$0xff] %vm6631, %v6589
        %6655 = vst.msk [vmem:[%s210 + $0xb8] sm:$0xff] %vm6631, %v6590
        %6656 = vst.msk [vmem:[%s210 + $0xc0] sm:$0xff] %vm6631, %v6591
        %6657 = vst.msk [vmem:[%s210 + $0xc8] sm:$0xff] %vm6631, %v6592
        %6658 = vst.msk [vmem:[%s210 + $0xd0] sm:$0xff] %vm6631, %v6593
        %6659 = vst.msk [vmem:[%s210 + $0xd8] sm:$0xff] %vm6631, %v6594
        %6660 = vst.msk [vmem:[%s210 + $0xe0] sm:$0xff] %vm6631, %v6595
        %6661 = vst.msk [vmem:[%s210 + $0xe8] sm:$0xff] %vm6631, %v6596
        %6662 = vst.msk [vmem:[%s210 + $0xf0] sm:$0xff] %vm6631, %v6597
        %6663 = vst.msk [vmem:[%s210 + $0xf8] sm:$0xff] %vm6631, %v6598
        %6664 = vst.msk [vmem:[%s210 + $0x100] sm:$0xff] %vm6631, %v6599
        %6665 = vst.msk [vmem:[%s210 + $0x108] sm:$0xff] %vm6631, %v6600
        %6666 = vst.msk [vmem:[%s210 + $0x110] sm:$0xff] %vm6631, %v6601
        %6667 = vst.msk [vmem:[%s210 + $0x118] sm:$0xff] %vm6631, %v6602
        %6668 = vst.msk [vmem:[%s210 + $0x120] sm:$0xff] %vm6631, %v6603
        %6669 = vst.msk [vmem:[%s210 + $0x128] sm:$0xff] %vm6631, %v6604
        %6670 = vst.msk [vmem:[%s210 + $0x130] sm:$0xff] %vm6631, %v6605
        %6671 = vst.msk [vmem:[%s210 + $0x138] sm:$0xff] %vm6631, %v6606
        %6672 = vst.msk [vmem:[%s210 + $0x140] sm:$0xff] %vm6631, %v6607
        %6673 = vst.msk [vmem:[%s210 + $0x148] sm:$0xff] %vm6631, %v6608
        %6674 = vst.msk [vmem:[%s210 + $0x150] sm:$0xff] %vm6631, %v6609
        %6675 = vst.msk [vmem:[%s210 + $0x158] sm:$0xff] %vm6631, %v6610
        %6676 = vst.msk [vmem:[%s210 + $0x160] sm:$0xff] %vm6631, %v6611
        %6677 = vst.msk [vmem:[%s210 + $0x168] sm:$0xff] %vm6631, %v6612
        %6678 = vst.msk [vmem:[%s210 + $0x170] sm:$0xff] %vm6631, %v6613
        %6679 = vst.msk [vmem:[%s210 + $0x178] sm:$0xff] %vm6631, %v6614
        %6680 = vst.msk [vmem:[%s210 + $0x180] sm:$0xff] %vm6631, %v6615
        %6681 = vst.msk [vmem:[%s210 + $0x188] sm:$0xff] %vm6631, %v6616
        %6682 = vst.msk [vmem:[%s210 + $0x190] sm:$0xff] %vm6631, %v6617
        %6683 = vst.msk [vmem:[%s210 + $0x198] sm:$0xff] %vm6631, %v6618
        %6684 = vst.msk [vmem:[%s210 + $0x1a0] sm:$0xff] %vm6631, %v6619
        %6685 = vst.msk [vmem:[%s210 + $0x1a8] sm:$0xff] %vm6631, %v6620
        %6686 = vst.msk [vmem:[%s210 + $0x1b0] sm:$0xff] %vm6631, %v6621
        %6687 = vst.msk [vmem:[%s210 + $0x1b8] sm:$0xff] %vm6631, %v6622
        %6688 = vst.msk [vmem:[%s210 + $0x1c0] sm:$0xff] %vm6631, %v6623
        %6689 = vst.msk [vmem:[%s210 + $0x1c8] sm:$0xff] %vm6631, %v6624
        %6690 = vst.msk [vmem:[%s210 + $0x1d0] sm:$0xff] %vm6631, %v6625
        %6691 = vst.msk [vmem:[%s210 + $0x1d8] sm:$0xff] %vm6631, %v6626
        %6692 = vst.msk [vmem:[%s210 + $0x1e0] sm:$0xff] %vm6631, %v6627
        %6693 = vst.msk [vmem:[%s210 + $0x1e8] sm:$0xff] %vm6631, %v6628
        %6694 = vst.msk [vmem:[%s210 + $0x1f0] sm:$0xff] %vm6631, %v6629
        %6695 = vst.msk [vmem:[%s210 + $0x1f8] sm:$0xff] %vm6631, %v6630
        %s6696 = sand.u32 %s126, 1
        %s6697 = scalar_lea.sflag [#allocation3], %s6696
        %s6698 = sand.u32 %s126, 1
        %s6699 = smul.addr %s6698, 512
        %s6700 = scalar_lea.vmem [#allocation2], %s6699
        // Predicated region
        $region33: #{tpu_custom_call.1} parent=31 // pred_check
          %p6701 = pneg %p136
        $region34: #{tpu_custom_call.1} parent=31 // pred_check_branch
          %6703 = sbr.rel (%p6701) target = $region36
        $region35: #{tpu_custom_call.1} parent=31 // pred_region
          %s6704 = smul.u32 16, %s24
          %s6706 = ssub.s32 8192, 8192
          %6707 = vsyncadd %s6697, %s6706
          %s6708 = smul.addr %s6704, 4
          %s6709 = sadd.s32 %s23, %s6708
          %s6710 = smul.addr %s22, 128
          %s6711 = sadd.s32 %s6709, %s6710
          %s6712 = smul.addr %s6711, 128
          %s6713 = scalar_lea.hbm %s3, %s6712
          %s6714 = sshll.u32 %s6700, 4
          %s6715 = int_to_ptr.vmem [resolvable:$true] %s6714
          %6720 = dma.vmem_to_hbm [thread:$0]  %s6715, 8192, %s6713, %s6697, 128, 128, 8
        $region36: #{tpu_custom_call.1} parent=31 // pred_fallthru
          _
      $region32: #{tpu_custom_call.1} parent=5 // pred_fallthru
        _
      %p6721 = scmp.le.s32.totalorder 2, %s12
      // Predicated region
      $region37: #{tpu_custom_call.1} parent=5 // pred_check
        %p6722 = pneg %p6721
      $region38: #{tpu_custom_call.1} parent=5 // pred_check_branch
        %6724 = sbr.rel (%p6722) target = $region40
      $region39: #{tpu_custom_call.1} parent=5 // pred_region
        %s6725 = ssub.s32 %s12, 2
        // Predicated region
        $region41: #{tpu_custom_call.1} parent=39 // pred_check
          %p6726 = pneg %p142
        $region42: #{tpu_custom_call.1} parent=39 // pred_check_branch
          %6728 = sbr.rel (%p6726) target = $region44
        $region43: #{tpu_custom_call.1} parent=39 // pred_region
          %s6729 = sand.u32 %s127, 1
          %s6730 = scalar_lea.sflag [#allocation3], %s6729
          %s6731 = sand.u32 %s127, 1
          %s6732 = smul.addr %s6731, 512
          %s6733 = scalar_lea.vmem [#allocation2], %s6732
          %6734 = dma.done %s6730, 8192
        $region44: #{tpu_custom_call.1} parent=39 // pred_fallthru
          _
      $region40: #{tpu_custom_call.1} parent=5 // pred_fallthru
        _
    $region6: #{tpu_custom_call.1} parent=1 // loop_footer
      %s16 = sadd.s32 1, %s12
    $region7: #{tpu_custom_call.1} parent=1 // loop_footer_branch
      %11 = sbr.rel target = $region3
    $region8: #{tpu_custom_call.1} parent=1 // loop_exit
      _
    %6735 = vsyncpa [#allocation3], 1
    %s6736 = scalar_lea.sflag [#allocation3], 1
    %6737 = vsyncpa %s6736, 1

</llo_original>
